<compile_context>
chip_gen: v6e
topology: v6e:2x2x1
jax: 0.10.0
libtpu: 0.0.40
codegen_flags: <defaults>
</compile_context>

<pallas_src>
import jax
import jax.numpy as jnp
from jax import lax
from jax.experimental import pallas as pl
from jax.experimental.pallas import tpu as pltpu

# ---- "config" (mirrors PromptRoutingConfig fields used by forward) ----
B = 2            # batch size
S = 8            # sequence length
D = 32           # token_dim
NVT = 8          # num_virtual_tokens
NVT_FULL = 32    # num_virtual_tokens_full
NSVT = 4         # num_shared_virtual_tokens
N_ROUTES = NVT_FULL // NVT   # 4
TOPK = 2

SHARED_W = NSVT * D          # 128 lanes (shared prefix, flattened)
ROUTED_W = NVT * D           # 256 lanes (routed prompt, flattened)
OUT_W = SHARED_W + ROUTED_W  # 384 lanes total
W_OFF = ROUTED_W             # router weight lane offset inside the param slab
SLAB_ROWS = 8                # sublane-padded param slab height
# Param slab layout (built once in __main__):
#   rows 0:4, lanes   0:256  -> embedding table, route-major  (R, NVT*D)
#   rows 0:4, lanes 256:288  -> router weight                 (R, D)
#   row  4,   lanes   0:128  -> shared embedding, flattened   (1, NSVT*D)


def prompt_routing_kernel(len_ref, embeds_ref, params_ref, out_ref):
    """Fused: masked mean -> router (VPU) -> softmax -> top-k -> route mix -> prepend."""
    # ---- rebuild the attention mask from SMEM lengths (no mask DMA / convert) ----
    s_iota = lax.broadcasted_iota(jnp.int32, (B, S), 1)
    b_iota = lax.broadcasted_iota(jnp.int32, (B, S), 0)
    lens_bc = jnp.zeros((B, S), jnp.int32)
    for b in range(B):                                             # B=2 static
        lens_bc = jnp.where(b_iota == b, len_ref[b], lens_bc)
    m = (s_iota < lens_bc).astype(jnp.float32)                     # (B, S)

    # ---- masked mean over sequence (clamp count to >= 1, like torch.clamp) ----
    x = embeds_ref[...]                                            # (B, S, D)
    sent_sum = jnp.sum(x * m[:, :, None], axis=1)                  # (B, D)
    cnt = jnp.maximum(lens_bc[:, 0:1].astype(jnp.float32), 1.0)    # (B, 1)
    sent = sent_sum / cnt                                          # (B, D)

    # ---- router: Linear(D -> R, bias=False) + Softmax (Dropout identity in eval) ----
    # M=2,K=32,N=4 would waste >96% of the MXU; stay on the VPU + one lane reduce.
    w = params_ref[0:N_ROUTES, W_OFF:W_OFF + D]                    # (R, D)
    logits = jnp.sum(sent[:, None, :] * w[None, :, :], axis=-1)    # (B, R)
    z = logits - jnp.max(logits, axis=-1, keepdims=True)
    e = jnp.exp(z)
    probs = e / jnp.sum(e, axis=-1, keepdims=True)                 # (B, R)

    # ---- parallel top-k via rank (no serialized max/min chain) ----
    # rank[b,r] = #{r' : probs[b,r'] > probs[b,r]  or  (== and r' < r)}
    # keep element iff rank < TOPK.  Ties break toward the lowest index
    # (matches lax.top_k; torch.topk tie order is unspecified -> benign).
    r_iota = lax.broadcasted_iota(jnp.int32, (B, N_ROUTES), 1)     # (B, R)
    rank = jnp.zeros((B, N_ROUTES), jnp.int32)
    for c in range(N_ROUTES):                                      # independent compares
        pc = probs[:, c:c + 1]                                     # lane-broadcast
        beats = (pc > probs) | ((pc == probs) & (c < r_iota))
        rank = rank + beats.astype(jnp.int32)
    route_w = jnp.where(rank < TOPK, probs, 0.0)                   # (B, R)

    # ---- route mixing: tree-summed VPU AXPYs on lane-dense 256-wide rows ----
    e_tbl = params_ref[0:N_ROUTES, 0:ROUTED_W]                     # (R, NVT*D)
    terms = [route_w[:, r:r + 1] * e_tbl[r:r + 1, :] for r in range(N_ROUTES)]
    while len(terms) > 1:                                          # pairwise tree reduce
        terms = [terms[i] + terms[i + 1] if i + 1 < len(terms) else terms[i]
                 for i in range(0, len(terms), 2)]
    acc = terms[0]                                                 # (B, NVT*D)

    # ---- fused shareType == 'Prepend': lane-aligned unmasked output slabs ----
    shared = params_ref[N_ROUTES:N_ROUTES + 1, 0:SHARED_W]         # (1, NSVT*D)
    out_ref[:, :SHARED_W] = jnp.broadcast_to(shared, (B, SHARED_W))
    out_ref[:, SHARED_W:] = acc


@jax.jit
def prompt_routing_forward(lengths, inputs_embeds, param_slab):
    """lengths: int32 (B,) valid-token counts; param_slab: (8, OUT_W) f32 packed params.
    Returns the lane-dense (B, OUT_W) prompt slab; reshape to (B, NSVT+NVT, D) only at
    the true consumer (keeps the lane->sublane relayout out of the per-call path)."""
    smem = pl.BlockSpec(memory_space=pltpu.MemorySpace.SMEM)
    vmem = pl.BlockSpec(memory_space=pltpu.MemorySpace.VMEM)
    return pl.pallas_call(
        prompt_routing_kernel,
        out_shape=jax.ShapeDtypeStruct((B, OUT_W), jnp.float32),
        in_specs=[smem, vmem, vmem],
        out_specs=pl.BlockSpec(memory_space=pltpu.MemorySpace.VMEM),
    )(lengths, inputs_embeds, param_slab)


def reference_forward(inputs_embeds, attention_mask,
                      w_router, embedding_weight, shared_embedding_weight):
    """Plain-JAX mirror of the PyTorch forward (same config/eval mode)."""
    m = attention_mask.astype(jnp.float32)
    sent_sum = jnp.sum(inputs_embeds * m[:, :, None], axis=1)
    cnt = jnp.maximum(jnp.sum(m, axis=1, keepdims=True), 1.0)
    sent = sent_sum / cnt
    probs = jax.nn.softmax(sent @ w_router.T, axis=-1)
    values, idx = lax.top_k(probs, TOPK)                           # (B, K)
    full_idx = idx[..., None] * NVT + jnp.arange(NVT)[None, None, :]
    pe = embedding_weight[full_idx] * values[..., None, None]      # (B, K, NVT, D)
    tensor1 = jnp.sum(pe, axis=1)                                  # (B, NVT, D)
    shared = jnp.broadcast_to(shared_embedding_weight[None], (B, NSVT, D))
    return jnp.concatenate([shared, tensor1], axis=1)


if __name__ == "__main__":
    key = jax.random.PRNGKey(0)
    k1, k2, k3, k4 = jax.random.split(key, 4)

    inputs_embeds = jax.random.normal(k1, (B, S, D), jnp.float32)
    lengths = jnp.array([S, 5], dtype=jnp.int32)
    attention_mask = (jnp.arange(S)[None, :] < lengths[:, None]).astype(jnp.float32)

    # deterministic parameter init (shapes from __init__)
    embedding_weight = 0.02 * jax.random.normal(k2, (NVT_FULL, D), jnp.float32)
    shared_embedding_weight = 0.02 * jax.random.normal(k3, (NSVT, D), jnp.float32)
    w_router = jax.nn.initializers.orthogonal()(k4, (N_ROUTES, D), jnp.float32)

    # Pack all parameters into ONE pre-laid-out slab, once (like a param cache):
    # one HBM->VMEM DMA per call instead of three.
    param_slab = jnp.zeros((SLAB_ROWS, OUT_W), jnp.float32)
    param_slab = param_slab.at[:N_ROUTES, :ROUTED_W].set(
        embedding_weight.reshape(N_ROUTES, ROUTED_W))
    param_slab = param_slab.at[:N_ROUTES, W_OFF:W_OFF + D].set(w_router)
    param_slab = param_slab.at[N_ROUTES, :SHARED_W].set(
        shared_embedding_weight.reshape(SHARED_W))
    param_slab = jax.block_until_ready(param_slab)
    lengths = jax.block_until_ready(lengths)

    # NOTE: if this module is called per layer / per microbatch in a hot loop,
    # stack the logical calls along a leading (sublane) axis and launch the
    # kernel once -- per-call dispatch dominates the in-kernel work here.
    out_flat = prompt_routing_forward(lengths, inputs_embeds, param_slab)
    out_flat = jax.block_until_ready(out_flat)

    # Relayout to (B, tokens, D) only at the consumer / for the correctness check.
    out = out_flat.reshape(B, NSVT + NVT, D)

    ref = reference_forward(inputs_embeds, attention_mask,
                            w_router, embedding_weight, shared_embedding_weight)

    assert out.shape == (B, NSVT + NVT, D), out.shape
    assert jnp.allclose(out, ref, atol=1e-5, rtol=1e-5), float(jnp.max(jnp.abs(out - ref)))
    print("KERNEL_OK")
</pallas_src>

<mosaic_0001>
module attributes {stable_mosaic.version = 11 : i64} {
  func.func @prompt_routing_kernel(%arg0: memref<2xi32, #tpu.memory_space<smem>>, %arg1: memref<2x8x32xf32, #tpu.memory_space<vmem>>, %arg2: memref<8x384xf32, #tpu.memory_space<vmem>>, %arg3: memref<2x384xf32, #tpu.memory_space<vmem>>) attributes {dimension_semantics = [], scalar_prefetch = 0 : i64, scratch_operands = 0 : i64, tpu.core_type = #tpu.core_type<tc>} {
    %0 = tpu.iota {dimensions = array<i32: 1>} : vector<2x8xi32>
    %1 = tpu.iota {dimensions = array<i32: 0>} : vector<2x8xi32>
    %c0_i32 = arith.constant 0 : i32
    %2 = vector.broadcast %c0_i32 : i32 to vector<2x8xi32>
    %c0_i32_0 = arith.constant 0 : i32
    %3 = vector.broadcast %c0_i32_0 : i32 to vector<2x8xi32>
    %4 = arith.cmpi eq, %1, %3 : vector<2x8xi32>
    %c0 = arith.constant 0 : index
    %5 = memref.load %arg0[%c0] : memref<2xi32, #tpu.memory_space<smem>>
    %6 = vector.broadcast %5 : i32 to vector<2x8xi32>
    %7 = arith.select %4, %6, %2 : vector<2x8xi1>, vector<2x8xi32>
    %c1_i32 = arith.constant 1 : i32
    %8 = vector.broadcast %c1_i32 : i32 to vector<2x8xi32>
    %9 = arith.cmpi eq, %1, %8 : vector<2x8xi32>
    %c1 = arith.constant 1 : index
    %10 = memref.load %arg0[%c1] : memref<2xi32, #tpu.memory_space<smem>>
    %11 = vector.broadcast %10 : i32 to vector<2x8xi32>
    %12 = arith.select %9, %11, %7 : vector<2x8xi1>, vector<2x8xi32>
    %13 = arith.cmpi slt, %0, %12 : vector<2x8xi32>
    %14 = arith.extui %13 : vector<2x8xi1> to vector<2x8xi32>
    %15 = arith.sitofp %14 : vector<2x8xi32> to vector<2x8xf32>
    %c0_1 = arith.constant 0 : index
    %c0_2 = arith.constant 0 : index
    %c0_3 = arith.constant 0 : index
    %16 = vector.load %arg1[%c0_1, %c0_2, %c0_3] : memref<2x8x32xf32, #tpu.memory_space<vmem>>, vector<2x8x32xf32>
    %17 = vector.shape_cast %15 : vector<2x8xf32> to vector<2x8x1xf32>
    %18 = vector.broadcast %17 : vector<2x8x1xf32> to vector<2x8x32xf32>
    %19 = arith.mulf %16, %18 : vector<2x8x32xf32>
    %cst = arith.constant dense<0.000000e+00> : vector<2x32xf32>
    %20 = vector.multi_reduction <add>, %19, %cst [1] : vector<2x8x32xf32> to vector<2x32xf32>
    %21 = vector.extract_strided_slice %12 {offsets = [0, 0], sizes = [2, 1], strides = [1, 1]} : vector<2x8xi32> to vector<2x1xi32>
    %22 = arith.sitofp %21 : vector<2x1xi32> to vector<2x1xf32>
    %cst_4 = arith.constant 1.000000e+00 : f32
    %23 = vector.broadcast %cst_4 : f32 to vector<2x1xf32>
    %24 = arith.maximumf %22, %23 : vector<2x1xf32>
    %25 = vector.broadcast %24 : vector<2x1xf32> to vector<2x32xf32>
    %26 = arith.divf %20, %25 : vector<2x32xf32>
    %c0_5 = arith.constant 0 : index
    %c256 = arith.constant 256 : index
    %27 = vector.load %arg2[%c0_5, %c256] : memref<8x384xf32, #tpu.memory_space<vmem>>, vector<4x32xf32>
    %28 = vector.shape_cast %26 : vector<2x32xf32> to vector<2x1x32xf32>
    %29 = vector.shape_cast %27 : vector<4x32xf32> to vector<1x4x32xf32>
    %30 = vector.broadcast %28 : vector<2x1x32xf32> to vector<2x4x32xf32>
    %31 = vector.broadcast %29 : vector<1x4x32xf32> to vector<2x4x32xf32>
    %32 = arith.mulf %30, %31 : vector<2x4x32xf32>
    %cst_6 = arith.constant dense<0.000000e+00> : vector<2x4xf32>
    %33 = vector.multi_reduction <add>, %32, %cst_6 [2] : vector<2x4x32xf32> to vector<2x4xf32>
    %cst_7 = arith.constant dense<0xFF800000> : vector<2xf32>
    %34 = vector.multi_reduction <maximumf>, %33, %cst_7 [1] : vector<2x4xf32> to vector<2xf32>
    %35 = vector.shape_cast %34 : vector<2xf32> to vector<2x1xf32>
    %36 = vector.broadcast %35 : vector<2x1xf32> to vector<2x4xf32>
    %37 = arith.subf %33, %36 : vector<2x4xf32>
    %38 = math.exp %37 : vector<2x4xf32>
    %cst_8 = arith.constant dense<0.000000e+00> : vector<2xf32>
    %39 = vector.multi_reduction <add>, %38, %cst_8 [1] : vector<2x4xf32> to vector<2xf32>
    %40 = vector.shape_cast %39 : vector<2xf32> to vector<2x1xf32>
    %41 = vector.broadcast %40 : vector<2x1xf32> to vector<2x4xf32>
    %42 = arith.divf %38, %41 : vector<2x4xf32>
    %43 = tpu.iota {dimensions = array<i32: 1>} : vector<2x4xi32>
    %c0_i32_9 = arith.constant 0 : i32
    %44 = vector.broadcast %c0_i32_9 : i32 to vector<2x4xi32>
    %45 = vector.extract_strided_slice %42 {offsets = [0, 0], sizes = [2, 1], strides = [1, 1]} : vector<2x4xf32> to vector<2x1xf32>
    %46 = vector.broadcast %45 : vector<2x1xf32> to vector<2x4xf32>
    %47 = arith.cmpf ogt, %46, %42 : vector<2x4xf32>
    %48 = vector.broadcast %45 : vector<2x1xf32> to vector<2x4xf32>
    %49 = arith.cmpf oeq, %48, %42 : vector<2x4xf32>
    %c0_i32_10 = arith.constant 0 : i32
    %50 = vector.broadcast %c0_i32_10 : i32 to vector<2x4xi32>
    %51 = arith.cmpi sgt, %43, %50 : vector<2x4xi32>
    %52 = arith.andi %49, %51 : vector<2x4xi1>
    %53 = arith.ori %47, %52 : vector<2x4xi1>
    %54 = arith.extui %53 : vector<2x4xi1> to vector<2x4xi32>
    %55 = arith.addi %44, %54 : vector<2x4xi32>
    %56 = vector.extract_strided_slice %42 {offsets = [0, 1], sizes = [2, 1], strides = [1, 1]} : vector<2x4xf32> to vector<2x1xf32>
    %57 = vector.broadcast %56 : vector<2x1xf32> to vector<2x4xf32>
    %58 = arith.cmpf ogt, %57, %42 : vector<2x4xf32>
    %59 = vector.broadcast %56 : vector<2x1xf32> to vector<2x4xf32>
    %60 = arith.cmpf oeq, %59, %42 : vector<2x4xf32>
    %c1_i32_11 = arith.constant 1 : i32
    %61 = vector.broadcast %c1_i32_11 : i32 to vector<2x4xi32>
    %62 = arith.cmpi sgt, %43, %61 : vector<2x4xi32>
    %63 = arith.andi %60, %62 : vector<2x4xi1>
    %64 = arith.ori %58, %63 : vector<2x4xi1>
    %65 = arith.extui %64 : vector<2x4xi1> to vector<2x4xi32>
    %66 = arith.addi %55, %65 : vector<2x4xi32>
    %67 = vector.extract_strided_slice %42 {offsets = [0, 2], sizes = [2, 1], strides = [1, 1]} : vector<2x4xf32> to vector<2x1xf32>
    %68 = vector.broadcast %67 : vector<2x1xf32> to vector<2x4xf32>
    %69 = arith.cmpf ogt, %68, %42 : vector<2x4xf32>
    %70 = vector.broadcast %67 : vector<2x1xf32> to vector<2x4xf32>
    %71 = arith.cmpf oeq, %70, %42 : vector<2x4xf32>
    %c2_i32 = arith.constant 2 : i32
    %72 = vector.broadcast %c2_i32 : i32 to vector<2x4xi32>
    %73 = arith.cmpi sgt, %43, %72 : vector<2x4xi32>
    %74 = arith.andi %71, %73 : vector<2x4xi1>
    %75 = arith.ori %69, %74 : vector<2x4xi1>
    %76 = arith.extui %75 : vector<2x4xi1> to vector<2x4xi32>
    %77 = arith.addi %66, %76 : vector<2x4xi32>
    %78 = vector.extract_strided_slice %42 {offsets = [0, 3], sizes = [2, 1], strides = [1, 1]} : vector<2x4xf32> to vector<2x1xf32>
    %79 = vector.broadcast %78 : vector<2x1xf32> to vector<2x4xf32>
    %80 = arith.cmpf ogt, %79, %42 : vector<2x4xf32>
    %81 = vector.broadcast %78 : vector<2x1xf32> to vector<2x4xf32>
    %82 = arith.cmpf oeq, %81, %42 : vector<2x4xf32>
    %c3_i32 = arith.constant 3 : i32
    %83 = vector.broadcast %c3_i32 : i32 to vector<2x4xi32>
    %84 = arith.cmpi sgt, %43, %83 : vector<2x4xi32>
    %85 = arith.andi %82, %84 : vector<2x4xi1>
    %86 = arith.ori %80, %85 : vector<2x4xi1>
    %87 = arith.extui %86 : vector<2x4xi1> to vector<2x4xi32>
    %88 = arith.addi %77, %87 : vector<2x4xi32>
    %c2_i32_12 = arith.constant 2 : i32
    %89 = vector.broadcast %c2_i32_12 : i32 to vector<2x4xi32>
    %90 = arith.cmpi slt, %88, %89 : vector<2x4xi32>
    %cst_13 = arith.constant 0.000000e+00 : f32
    %91 = vector.broadcast %cst_13 : f32 to vector<2x4xf32>
    %92 = arith.select %90, %42, %91 : vector<2x4xi1>, vector<2x4xf32>
    %c0_14 = arith.constant 0 : index
    %c0_15 = arith.constant 0 : index
    %93 = vector.load %arg2[%c0_14, %c0_15] : memref<8x384xf32, #tpu.memory_space<vmem>>, vector<4x256xf32>
    %94 = vector.extract_strided_slice %92 {offsets = [0, 0], sizes = [2, 1], strides = [1, 1]} : vector<2x4xf32> to vector<2x1xf32>
    %95 = vector.extract_strided_slice %93 {offsets = [0, 0], sizes = [1, 256], strides = [1, 1]} : vector<4x256xf32> to vector<1x256xf32>
    %96 = vector.broadcast %94 : vector<2x1xf32> to vector<2x256xf32>
    %97 = vector.broadcast %95 : vector<1x256xf32> to vector<2x256xf32>
    %98 = arith.mulf %96, %97 : vector<2x256xf32>
    %99 = vector.extract_strided_slice %92 {offsets = [0, 1], sizes = [2, 1], strides = [1, 1]} : vector<2x4xf32> to vector<2x1xf32>
    %100 = vector.extract_strided_slice %93 {offsets = [1, 0], sizes = [1, 256], strides = [1, 1]} : vector<4x256xf32> to vector<1x256xf32>
    %101 = vector.broadcast %99 : vector<2x1xf32> to vector<2x256xf32>
    %102 = vector.broadcast %100 : vector<1x256xf32> to vector<2x256xf32>
    %103 = arith.mulf %101, %102 : vector<2x256xf32>
    %104 = vector.extract_strided_slice %92 {offsets = [0, 2], sizes = [2, 1], strides = [1, 1]} : vector<2x4xf32> to vector<2x1xf32>
    %105 = vector.extract_strided_slice %93 {offsets = [2, 0], sizes = [1, 256], strides = [1, 1]} : vector<4x256xf32> to vector<1x256xf32>
    %106 = vector.broadcast %104 : vector<2x1xf32> to vector<2x256xf32>
    %107 = vector.broadcast %105 : vector<1x256xf32> to vector<2x256xf32>
    %108 = arith.mulf %106, %107 : vector<2x256xf32>
    %109 = vector.extract_strided_slice %92 {offsets = [0, 3], sizes = [2, 1], strides = [1, 1]} : vector<2x4xf32> to vector<2x1xf32>
    %110 = vector.extract_strided_slice %93 {offsets = [3, 0], sizes = [1, 256], strides = [1, 1]} : vector<4x256xf32> to vector<1x256xf32>
    %111 = vector.broadcast %109 : vector<2x1xf32> to vector<2x256xf32>
    %112 = vector.broadcast %110 : vector<1x256xf32> to vector<2x256xf32>
    %113 = arith.mulf %111, %112 : vector<2x256xf32>
    %114 = arith.addf %98, %103 : vector<2x256xf32>
    %115 = arith.addf %108, %113 : vector<2x256xf32>
    %116 = arith.addf %114, %115 : vector<2x256xf32>
    %c4 = arith.constant 4 : index
    %c0_16 = arith.constant 0 : index
    %117 = vector.load %arg2[%c4, %c0_16] : memref<8x384xf32, #tpu.memory_space<vmem>>, vector<1x128xf32>
    %118 = vector.shape_cast %117 : vector<1x128xf32> to vector<1x128xf32>
    %119 = vector.broadcast %118 : vector<1x128xf32> to vector<2x128xf32>
    %c0_17 = arith.constant 0 : index
    %c0_18 = arith.constant 0 : index
    %120 = vector.load %arg3[%c0_17, %c0_18] : memref<2x384xf32, #tpu.memory_space<vmem>>, vector<2x128xf32>
    tpu.vector_store %arg3[%c0_17, %c0_18], %119 {strides = array<i32>} : memref<2x384xf32, #tpu.memory_space<vmem>>, vector<2x128xf32>,
    %c0_19 = arith.constant 0 : index
    %c128 = arith.constant 128 : index
    %121 = vector.load %arg3[%c0_19, %c128] : memref<2x384xf32, #tpu.memory_space<vmem>>, vector<2x256xf32>
    tpu.vector_store %arg3[%c0_19, %c128], %116 {strides = array<i32>} : memref<2x384xf32, #tpu.memory_space<vmem>>, vector<2x256xf32>,
    return
  }
}

</mosaic_0001>

<llo_original>
// kernel: prompt_routing_forward.1
$region0: #{prompt_routing_forward.1}
  #allocation0 [shape = 'u32[]', space=smem, size = 0x4, offset = 0x4, fixed_abs, tag = 'smem constant byte address 0x4 - core index']
  #allocation1 [shape = 'u32[144,128]{1,0:T(1,128)}', space=vmem, size = 0x12000, scoped, tag = 'internal scratch']
  %s0 = inlined_call_operand.hbm [shape: s32[2], index: 0, kind: input, shape index: {}]
  %s1 = inlined_call_operand.hbm [shape: f32[2,8,32], index: 1, kind: input, shape index: {}]
  %s2 = inlined_call_operand.hbm [shape: f32[8,384], index: 2, kind: input, shape index: {}]
  %s3 = inlined_call_operand.hbm [shape: f32[2,384], index: 3, kind: output, shape index: {}]
  %s4 = sld [smem:[#allocation0]]
  $region34: #{prompt_routing_forward.1} parent=0
    _
  %s6 = ssub.s32 1, %s4
  %s7 = scalar_select 0, %s6, %s4
  $region1: #{prompt_routing_forward.1} parent=0
    #allocation2 [shape = 'u8[512]{0}', space=smem, size = 0x200, scoped, tag = 'input window, operand 0, single buffered']
    #allocation3 [shape = 's32[1]{0}', space=sflag, size = 0x4, scoped, tag = 'scoped memory for prompt_routing_forward.1']
    #allocation4 [shape = 's32[1]{0}', space=sflag, size = 0x4, scoped, tag = 'scoped memory for prompt_routing_forward.1']
    #allocation5 [shape = 's32[1]{0}', space=sflag, size = 0x4, scoped, tag = 'scoped memory for prompt_routing_forward.1']
    #allocation6 [shape = 'u8[8192]{0}', space=vmem, size = 0x2000, scoped, tag = 'input window, operand 1, single buffered']
    #allocation7 [shape = 'u8[12288]{0}', space=vmem, size = 0x3000, scoped, tag = 'input window, operand 2, single buffered']
    #allocation8 [shape = 's32[1]{0}', space=sflag, size = 0x4, scoped, tag = 'scoped memory for prompt_routing_forward.1']
    #allocation9 [shape = 'u8[3072]{0}', space=vmem, size = 0xc00, scoped, tag = 'output window, operand 0, single buffered']
    %8 = vsyncpa [#allocation5], 0
    %9 = vsyncpa [#allocation3], 0
    %10 = vsyncpa [#allocation8], 0
    %11 = vsyncpa [#allocation4], 0
    // Predicated region
    $region2: #{prompt_routing_forward.1} parent=1 // pred_check
      _
    $region3: #{prompt_routing_forward.1} parent=1 // pred_check_branch
      %13 = sbr.rel (0) target = $region5
    $region4: #{prompt_routing_forward.1} parent=1 // pred_region
      %s15 = ssub.s32 16, 16
      %16 = vsyncadd [#allocation5], %s15
      %19 = dma.hbm_to_smem %s0, 16, [#allocation2], [#allocation5]
    $region5: #{prompt_routing_forward.1} parent=1 // pred_fallthru
      _
    // Predicated region
    $region6: #{prompt_routing_forward.1} parent=1 // pred_check
      _
    $region7: #{prompt_routing_forward.1} parent=1 // pred_check_branch
      %21 = sbr.rel (0) target = $region9
    $region8: #{prompt_routing_forward.1} parent=1 // pred_region
      %s23 = ssub.s32 256, 256
      %24 = vsyncadd [#allocation3], %s23
      %s25 = sshll.u32 [#allocation6], 4
      %s26 = int_to_ptr.vmem [resolvable:$true] %s25
      %31 = dma.hbm_to_vmem [thread:$0]  %s1, 256, %s26, [#allocation3], 128, 128, 8
    $region9: #{prompt_routing_forward.1} parent=1 // pred_fallthru
      _
    // Predicated region
    $region10: #{prompt_routing_forward.1} parent=1 // pred_check
      _
    $region11: #{prompt_routing_forward.1} parent=1 // pred_check_branch
      %33 = sbr.rel (0) target = $region13
    $region12: #{prompt_routing_forward.1} parent=1 // pred_region
      %s35 = ssub.s32 384, 384
      %36 = vsyncadd [#allocation8], %s35
      %s38 = sshll.u32 [#allocation7], 4
      %s39 = int_to_ptr.vmem [resolvable:$true] %s38
      %41 = dma.hbm_to_vmem [thread:$0]  %s2, 384, %s39, [#allocation8]
    $region13: #{prompt_routing_forward.1} parent=1 // pred_fallthru
      _
    // Predicated region
    $region14: #{prompt_routing_forward.1} parent=1 // pred_check
      _
    $region15: #{prompt_routing_forward.1} parent=1 // pred_check_branch
      %43 = sbr.rel (0) target = $region17
    $region16: #{prompt_routing_forward.1} parent=1 // pred_region
      %44 = dma.done [#allocation5], 16
    $region17: #{prompt_routing_forward.1} parent=1 // pred_fallthru
      _
    // Predicated region
    $region18: #{prompt_routing_forward.1} parent=1 // pred_check
      _
    $region19: #{prompt_routing_forward.1} parent=1 // pred_check_branch
      %46 = sbr.rel (0) target = $region21
    $region20: #{prompt_routing_forward.1} parent=1 // pred_region
      %47 = dma.done [#allocation3], 256
    $region21: #{prompt_routing_forward.1} parent=1 // pred_fallthru
      _
    // Predicated region
    $region22: #{prompt_routing_forward.1} parent=1 // pred_check
      _
    $region23: #{prompt_routing_forward.1} parent=1 // pred_check_branch
      %49 = sbr.rel (0) target = $region25
    $region24: #{prompt_routing_forward.1} parent=1 // pred_region
      %50 = dma.done [#allocation8], 384
    $region25: #{prompt_routing_forward.1} parent=1 // pred_fallthru
      _
    %51 = sfence
    %v52 = vlaneseq
    %v53 = vand.u32 %v52, 127
    %v54 = vlaneseq
    %v55 = vshrl.u32 %v54, 7
    %vm56 = vcmp.eq.s32.totalorder %v55, 0
    %s57 = sld [smem:[#allocation2]]
    %v58 = vstv %s57
    %v59 = vsel %vm56, %v58, 0
    %vm60 = vcmp.eq.s32.totalorder %v55, 1
    %s61 = sld [smem:[#allocation2 + $0x1]]
    %v62 = vstv %s61
    %v63 = vsel %vm60, %v62, %v59
    %vm64 = vcmp.lt.s32.totalorder %v53, %v63
    %v65 = vsel %vm64, 1, 0
    %v66 = vcvt.s32.f32 %v65
    %v67 = vld [vmem:[#allocation6] sm:$0xff]
    %v68 = vld [vmem:[#allocation6 + $0x8] sm:$0xff]
    %v69 = vlaneseq
    %v70 = vshrl.u32 %v69, 7
    %v71 = vsub.s32 0, %v70
    %v72 = vrot.slane %v66, %v71
    %74 = vbcast.lane.b32.xlu0 %v72, 256
    %v75 = vpop.permute.xlu0 %74
    %v76 = vlaneseq
    %v77 = vshrl.u32 %v76, 7
    %v78 = vsub.s32 1, %v77
    %v79 = vrot.slane %v66, %v78
    %81 = vbcast.lane.b32.xlu0 %v79, 256
    %v82 = vpop.permute.xlu0 %81
    %v83 = vmul.f32 %v67, %v75
    %v84 = vmul.f32 %v68, %v82
    %vm85 = vcmask 261120
    %v86 = vsel %vm85, %v83, 0.0
    %v87 = vrot.slane %v86, 4
    %v88 = vadd.f32 %v86, %v87
    %v89 = vrot.slane %v88, 2
    %v90 = vadd.f32 %v88, %v89
    %v91 = vrot.slane %v90, 1
    %v92 = vadd.f32 %v90, %v91
    %v93 = vsel %vm85, %v84, 0.0
    %v94 = vrot.slane %v93, 4
    %v95 = vadd.f32 %v93, %v94
    %v96 = vrot.slane %v95, 2
    %v97 = vadd.f32 %v95, %v96
    %v98 = vrot.slane %v97, 1
    %v99 = vadd.f32 %v97, %v98
    %v100 = vcvt.s32.f32 %v63
    %v101 = vmax.f32 %v100, 1.0
    %v103 = vrot.slane %v101, 1
    %v106 = vrcp.pop %v101
    %v107 = vmul.f32 %v92, %v106
    %v108 = vrcp.pop %v103
    %v109 = vmul.f32 %v99, %v108
    %v110 = vld [vmem:[#allocation7 + $0x10] sm:$0xf]
    %v111 = vlaneseq
    %v112 = vshrl.u32 %v111, 7
    %v113 = vsub.s32 0, %v112
    %v114 = vrot.slane %v107, %v113
    %v115 = vlaneseq
    %v116 = vshrl.u32 %v115, 7
    %v117 = vsub.s32 0, %v116
    %v118 = vrot.slane %v109, %v117
    %v119 = vmul.f32 %v114, %v110
    %v120 = vmul.f32 %v118, %v110
    %vm121 = vcmask 257024
    %v122 = vsel %vm121, %v119, 0.0
    %123 = vadd.xlane.f32.xlu0 %v122
    %v124 = vpop.xlane.xlu0 %123
    %v125 = vsel %vm121, %v120, 0.0
    %126 = vadd.xlane.f32.xlu0 %v125
    %v127 = vpop.xlane.xlu0 %126
    %v130 = vlaneseq
    %v131 = vshrl.u32 %v130, 7
    %v132 = vsub.s32 %v53, %v131
    %v133 = vrot.slane %v124, %v132
    %v134 = vlaneseq
    %v135 = vshrl.u32 %v134, 7
    %v136 = vsub.s32 %v53, %v135
    %v137 = vrot.slane %v127, %v136
    %vm138 = vcmask 1041409
    %v139 = vsel %vm138, %v137, %v133
    %vm141 = vcmask 25600
    %v142 = vsel %vm141, %v139, -inf
    %143 = vmax.xlane.f32.xlu0 %v142
    %v144 = vpop.xlane.xlu0 %143
    %v146 = vlaneseq
    %v147 = vshrl.u32 %v146, 7
    %v148 = vsub.s32 0, %v147
    %v149 = vrot.slane %v144, %v148
    %v150 = vlaneseq
    %v151 = vshrl.u32 %v150, 7
    %v152 = vsub.s32 1, %v151
    %v153 = vrot.slane %v144, %v152
    %v156 = vsub.f32 %v124, %v149
    %v157 = vsub.f32 %v127, %v153
    %v158 = vmul.f32 %v156, 1.442695
    %v159 = vpow.pop %v158
    %v160 = vmul.f32 %v157, 1.442695
    %v161 = vpow.pop %v160
    %164 = vset.pattern.permute.xlu0 0
    %165 = vperm.xlu0 %164, %v159
    %v166 = vpop.permute.xlu0 %165
    %167 = vset.pattern.permute.xlu0 0
    %168 = vperm.xlu0 %167, %v161
    %v169 = vpop.permute.xlu0 %168
    %v170 = vlaneseq
    %v171 = vshrl.u32 %v170, 7
    %v172 = vsub.s32 %v53, %v171
    %v173 = vrot.slane %v166, %v172
    %v174 = vlaneseq
    %v175 = vshrl.u32 %v174, 7
    %v176 = vsub.s32 %v53, %v175
    %v177 = vrot.slane %v169, %v176
    %v178 = vsel %vm138, %v177, %v173
    %v180 = vsel %vm141, %v178, 0.0
    %181 = vadd.xlane.f32.xlu0 %v180
    %v182 = vpop.xlane.xlu0 %181
    %v184 = vlaneseq
    %v185 = vshrl.u32 %v184, 7
    %v186 = vsub.s32 0, %v185
    %v187 = vrot.slane %v182, %v186
    %v188 = vlaneseq
    %v189 = vshrl.u32 %v188, 7
    %v190 = vsub.s32 1, %v189
    %v191 = vrot.slane %v182, %v190
    %v194 = vrcp.pop %v187
    %v195 = vmul.f32 %v159, %v194
    %v196 = vrcp.pop %v191
    %v197 = vmul.f32 %v161, %v196
    %v198 = vlaneseq
    %v199 = vshrl.u32 %v198, 7
    %v200 = vsub.s32 0, %v199
    %v201 = vrot.slane %v195, %v200
    %v202 = vlaneseq
    %v203 = vshrl.u32 %v202, 7
    %v204 = vsub.s32 0, %v203
    %v205 = vrot.slane %v197, %v204
    %vm206 = vcmp.gt.f32.partialorder %v201, %v195
    %vm207 = vcmp.gt.f32.partialorder %v205, %v197
    %vm208 = vcmp.eq.f32.partialorder %v201, %v195
    %vm209 = vcmp.eq.f32.partialorder %v205, %v197
    %vm210 = vcmp.gt.s32.totalorder %v53, 0
    %v211 = vsel %vm210, 1, 0
    %213 = vbcast.lane.b32.xlu0 %v211, 256
    %v214 = vpop.permute.xlu0 %213
    %vm215 = vcmp.ne.s32.totalorder %v214, 0
    %vm216 = vmand %vm208, %vm215
    %vm217 = vmand %vm209, %vm215
    %vm218 = vmor %vm206, %vm216
    %vm219 = vmor %vm207, %vm217
    %v220 = vsel %vm218, 1, 0
    %v221 = vsel %vm219, 1, 0
    %v222 = vlaneseq
    %v223 = vshrl.u32 %v222, 7
    %v224 = vsub.s32 1, %v223
    %v225 = vrot.slane %v195, %v224
    %v226 = vlaneseq
    %v227 = vshrl.u32 %v226, 7
    %v228 = vsub.s32 1, %v227
    %v229 = vrot.slane %v197, %v228
    %vm230 = vcmp.gt.f32.partialorder %v225, %v195
    %vm231 = vcmp.gt.f32.partialorder %v229, %v197
    %vm232 = vcmp.eq.f32.partialorder %v225, %v195
    %vm233 = vcmp.eq.f32.partialorder %v229, %v197
    %vm234 = vcmp.gt.s32.totalorder %v53, 1
    %v235 = vsel %vm234, 1, 0
    %237 = vbcast.lane.b32.xlu0 %v235, 256
    %v238 = vpop.permute.xlu0 %237
    %vm239 = vcmp.ne.s32.totalorder %v238, 0
    %vm240 = vmand %vm232, %vm239
    %vm241 = vmand %vm233, %vm239
    %vm242 = vmor %vm230, %vm240
    %vm243 = vmor %vm231, %vm241
    %v244 = vsel %vm242, 1, 0
    %v245 = vsel %vm243, 1, 0
    %v246 = vadd.s32 %v220, %v244
    %v247 = vadd.s32 %v221, %v245
    %v248 = vlaneseq
    %v249 = vshrl.u32 %v248, 7
    %v250 = vsub.s32 2, %v249
    %v251 = vrot.slane %v195, %v250
    %v252 = vlaneseq
    %v253 = vshrl.u32 %v252, 7
    %v254 = vsub.s32 2, %v253
    %v255 = vrot.slane %v197, %v254
    %vm256 = vcmp.gt.f32.partialorder %v251, %v195
    %vm257 = vcmp.gt.f32.partialorder %v255, %v197
    %vm258 = vcmp.eq.f32.partialorder %v251, %v195
    %vm259 = vcmp.eq.f32.partialorder %v255, %v197
    %vm260 = vcmp.gt.s32.totalorder %v53, 2
    %v261 = vsel %vm260, 1, 0
    %263 = vbcast.lane.b32.xlu0 %v261, 256
    %v264 = vpop.permute.xlu0 %263
    %vm265 = vcmp.ne.s32.totalorder %v264, 0
    %vm266 = vmand %vm258, %vm265
    %vm267 = vmand %vm259, %vm265
    %vm268 = vmor %vm256, %vm266
    %vm269 = vmor %vm257, %vm267
    %v270 = vsel %vm268, 1, 0
    %v271 = vsel %vm269, 1, 0
    %v272 = vadd.s32 %v246, %v270
    %v273 = vadd.s32 %v247, %v271
    %v274 = vlaneseq
    %v275 = vshrl.u32 %v274, 7
    %v276 = vsub.s32 3, %v275
    %v277 = vrot.slane %v195, %v276
    %v278 = vlaneseq
    %v279 = vshrl.u32 %v278, 7
    %v280 = vsub.s32 3, %v279
    %v281 = vrot.slane %v197, %v280
    %vm282 = vcmp.gt.f32.partialorder %v277, %v195
    %vm283 = vcmp.gt.f32.partialorder %v281, %v197
    %vm284 = vcmp.eq.f32.partialorder %v277, %v195
    %vm285 = vcmp.eq.f32.partialorder %v281, %v197
    %vm286 = vcmp.gt.s32.totalorder %v53, 3
    %v287 = vsel %vm286, 1, 0
    %289 = vbcast.lane.b32.xlu0 %v287, 256
    %v290 = vpop.permute.xlu0 %289
    %vm291 = vcmp.ne.s32.totalorder %v290, 0
    %vm292 = vmand %vm284, %vm291
    %vm293 = vmand %vm285, %vm291
    %vm294 = vmor %vm282, %vm292
    %vm295 = vmor %vm283, %vm293
    %v296 = vsel %vm294, 1, 0
    %v297 = vsel %vm295, 1, 0
    %v298 = vadd.s32 %v272, %v296
    %v299 = vadd.s32 %v273, %v297
    %vm300 = vcmp.lt.s32.totalorder %v298, 2
    %vm301 = vcmp.lt.s32.totalorder %v299, 2
    %v302 = vsel %vm300, %v195, 0.0
    %v303 = vsel %vm301, %v197, 0.0
    %v304 = vld [vmem:[#allocation7] sm:$0xf]
    %v305 = vld [vmem:[#allocation7 + $0x8] sm:$0xf]
    %v306 = vlaneseq
    %v307 = vshrl.u32 %v306, 7
    %v308 = vsub.s32 0, %v307
    %v309 = vrot.slane %v302, %v308
    %v310 = vlaneseq
    %v311 = vshrl.u32 %v310, 7
    %v312 = vsub.s32 0, %v311
    %v313 = vrot.slane %v303, %v312
    %v314 = vlaneseq
    %v315 = vshrl.u32 %v314, 7
    %v316 = vsub.s32 0, %v315
    %v317 = vrot.slane %v304, %v316
    %v318 = vlaneseq
    %v319 = vshrl.u32 %v318, 7
    %v320 = vsub.s32 0, %v319
    %v321 = vrot.slane %v305, %v320
    %325 = vbcast.lane.b32.xlu0 %v317, 256
    %v326 = vpop.permute.xlu0 %325
    %s328 = sor.u32 256, 8
    %329 = vbcast.lane.b32.xlu0 %v317, %s328
    %v330 = vpop.permute.xlu0 %329
    %s332 = sor.u32 256, 16
    %333 = vbcast.lane.b32.xlu0 %v317, %s332
    %v334 = vpop.permute.xlu0 %333
    %s336 = sor.u32 256, 24
    %337 = vbcast.lane.b32.xlu0 %v317, %s336
    %v338 = vpop.permute.xlu0 %337
    %s340 = sor.u32 256, 32
    %341 = vbcast.lane.b32.xlu0 %v317, %s340
    %v342 = vpop.permute.xlu0 %341
    %s344 = sor.u32 256, 40
    %345 = vbcast.lane.b32.xlu0 %v317, %s344
    %v346 = vpop.permute.xlu0 %345
    %s348 = sor.u32 256, 48
    %349 = vbcast.lane.b32.xlu0 %v317, %s348
    %v350 = vpop.permute.xlu0 %349
    %s352 = sor.u32 256, 56
    %353 = vbcast.lane.b32.xlu0 %v317, %s352
    %v354 = vpop.permute.xlu0 %353
    %s356 = sor.u32 256, 64
    %357 = vbcast.lane.b32.xlu0 %v317, %s356
    %v358 = vpop.permute.xlu0 %357
    %s360 = sor.u32 256, 72
    %361 = vbcast.lane.b32.xlu0 %v317, %s360
    %v362 = vpop.permute.xlu0 %361
    %s364 = sor.u32 256, 80
    %365 = vbcast.lane.b32.xlu0 %v317, %s364
    %v366 = vpop.permute.xlu0 %365
    %s368 = sor.u32 256, 88
    %369 = vbcast.lane.b32.xlu0 %v317, %s368
    %v370 = vpop.permute.xlu0 %369
    %s372 = sor.u32 256, 96
    %373 = vbcast.lane.b32.xlu0 %v317, %s372
    %v374 = vpop.permute.xlu0 %373
    %s376 = sor.u32 256, 104
    %377 = vbcast.lane.b32.xlu0 %v317, %s376
    %v378 = vpop.permute.xlu0 %377
    %s380 = sor.u32 256, 112
    %381 = vbcast.lane.b32.xlu0 %v317, %s380
    %v382 = vpop.permute.xlu0 %381
    %s384 = sor.u32 256, 120
    %385 = vbcast.lane.b32.xlu0 %v317, %s384
    %v386 = vpop.permute.xlu0 %385
    %388 = vbcast.lane.b32.xlu0 %v321, 256
    %v389 = vpop.permute.xlu0 %388
    %s391 = sor.u32 256, 8
    %392 = vbcast.lane.b32.xlu0 %v321, %s391
    %v393 = vpop.permute.xlu0 %392
    %s395 = sor.u32 256, 16
    %396 = vbcast.lane.b32.xlu0 %v321, %s395
    %v397 = vpop.permute.xlu0 %396
    %s399 = sor.u32 256, 24
    %400 = vbcast.lane.b32.xlu0 %v321, %s399
    %v401 = vpop.permute.xlu0 %400
    %s403 = sor.u32 256, 32
    %404 = vbcast.lane.b32.xlu0 %v321, %s403
    %v405 = vpop.permute.xlu0 %404
    %s407 = sor.u32 256, 40
    %408 = vbcast.lane.b32.xlu0 %v321, %s407
    %v409 = vpop.permute.xlu0 %408
    %s411 = sor.u32 256, 48
    %412 = vbcast.lane.b32.xlu0 %v321, %s411
    %v413 = vpop.permute.xlu0 %412
    %s415 = sor.u32 256, 56
    %416 = vbcast.lane.b32.xlu0 %v321, %s415
    %v417 = vpop.permute.xlu0 %416
    %s419 = sor.u32 256, 64
    %420 = vbcast.lane.b32.xlu0 %v321, %s419
    %v421 = vpop.permute.xlu0 %420
    %s423 = sor.u32 256, 72
    %424 = vbcast.lane.b32.xlu0 %v321, %s423
    %v425 = vpop.permute.xlu0 %424
    %s427 = sor.u32 256, 80
    %428 = vbcast.lane.b32.xlu0 %v321, %s427
    %v429 = vpop.permute.xlu0 %428
    %s431 = sor.u32 256, 88
    %432 = vbcast.lane.b32.xlu0 %v321, %s431
    %v433 = vpop.permute.xlu0 %432
    %s435 = sor.u32 256, 96
    %436 = vbcast.lane.b32.xlu0 %v321, %s435
    %v437 = vpop.permute.xlu0 %436
    %s439 = sor.u32 256, 104
    %440 = vbcast.lane.b32.xlu0 %v321, %s439
    %v441 = vpop.permute.xlu0 %440
    %s443 = sor.u32 256, 112
    %444 = vbcast.lane.b32.xlu0 %v321, %s443
    %v445 = vpop.permute.xlu0 %444
    %s447 = sor.u32 256, 120
    %448 = vbcast.lane.b32.xlu0 %v321, %s447
    %v449 = vpop.permute.xlu0 %448
    %v482 = vmul.f32 %v309, %v326
    %v483 = vmul.f32 %v309, %v330
    %v484 = vmul.f32 %v309, %v334
    %v485 = vmul.f32 %v309, %v338
    %v486 = vmul.f32 %v309, %v342
    %v487 = vmul.f32 %v309, %v346
    %v488 = vmul.f32 %v309, %v350
    %v489 = vmul.f32 %v309, %v354
    %v490 = vmul.f32 %v309, %v358
    %v491 = vmul.f32 %v309, %v362
    %v492 = vmul.f32 %v309, %v366
    %v493 = vmul.f32 %v309, %v370
    %v494 = vmul.f32 %v309, %v374
    %v495 = vmul.f32 %v309, %v378
    %v496 = vmul.f32 %v309, %v382
    %v497 = vmul.f32 %v309, %v386
    %v498 = vmul.f32 %v309, %v389
    %v499 = vmul.f32 %v309, %v393
    %v500 = vmul.f32 %v309, %v397
    %v501 = vmul.f32 %v309, %v401
    %v502 = vmul.f32 %v309, %v405
    %v503 = vmul.f32 %v309, %v409
    %v504 = vmul.f32 %v309, %v413
    %v505 = vmul.f32 %v309, %v417
    %v506 = vmul.f32 %v309, %v421
    %v507 = vmul.f32 %v309, %v425
    %v508 = vmul.f32 %v309, %v429
    %v509 = vmul.f32 %v309, %v433
    %v510 = vmul.f32 %v309, %v437
    %v511 = vmul.f32 %v309, %v441
    %v512 = vmul.f32 %v309, %v445
    %v513 = vmul.f32 %v309, %v449
    %v514 = vmul.f32 %v313, %v326
    %v515 = vmul.f32 %v313, %v330
    %v516 = vmul.f32 %v313, %v334
    %v517 = vmul.f32 %v313, %v338
    %v518 = vmul.f32 %v313, %v342
    %v519 = vmul.f32 %v313, %v346
    %v520 = vmul.f32 %v313, %v350
    %v521 = vmul.f32 %v313, %v354
    %v522 = vmul.f32 %v313, %v358
    %v523 = vmul.f32 %v313, %v362
    %v524 = vmul.f32 %v313, %v366
    %v525 = vmul.f32 %v313, %v370
    %v526 = vmul.f32 %v313, %v374
    %v527 = vmul.f32 %v313, %v378
    %v528 = vmul.f32 %v313, %v382
    %v529 = vmul.f32 %v313, %v386
    %v530 = vmul.f32 %v313, %v389
    %v531 = vmul.f32 %v313, %v393
    %v532 = vmul.f32 %v313, %v397
    %v533 = vmul.f32 %v313, %v401
    %v534 = vmul.f32 %v313, %v405
    %v535 = vmul.f32 %v313, %v409
    %v536 = vmul.f32 %v313, %v413
    %v537 = vmul.f32 %v313, %v417
    %v538 = vmul.f32 %v313, %v421
    %v539 = vmul.f32 %v313, %v425
    %v540 = vmul.f32 %v313, %v429
    %v541 = vmul.f32 %v313, %v433
    %v542 = vmul.f32 %v313, %v437
    %v543 = vmul.f32 %v313, %v441
    %v544 = vmul.f32 %v313, %v445
    %v545 = vmul.f32 %v313, %v449
    %v546 = vlaneseq
    %v547 = vshrl.u32 %v546, 7
    %v548 = vsub.s32 1, %v547
    %v549 = vrot.slane %v302, %v548
    %v550 = vlaneseq
    %v551 = vshrl.u32 %v550, 7
    %v552 = vsub.s32 1, %v551
    %v553 = vrot.slane %v303, %v552
    %v554 = vlaneseq
    %v555 = vshrl.u32 %v554, 7
    %v556 = vsub.s32 1, %v555
    %v557 = vrot.slane %v304, %v556
    %v558 = vlaneseq
    %v559 = vshrl.u32 %v558, 7
    %v560 = vsub.s32 1, %v559
    %v561 = vrot.slane %v305, %v560
    %565 = vbcast.lane.b32.xlu0 %v557, 256
    %v566 = vpop.permute.xlu0 %565
    %s568 = sor.u32 256, 8
    %569 = vbcast.lane.b32.xlu0 %v557, %s568
    %v570 = vpop.permute.xlu0 %569
    %s572 = sor.u32 256, 16
    %573 = vbcast.lane.b32.xlu0 %v557, %s572
    %v574 = vpop.permute.xlu0 %573
    %s576 = sor.u32 256, 24
    %577 = vbcast.lane.b32.xlu0 %v557, %s576
    %v578 = vpop.permute.xlu0 %577
    %s580 = sor.u32 256, 32
    %581 = vbcast.lane.b32.xlu0 %v557, %s580
    %v582 = vpop.permute.xlu0 %581
    %s584 = sor.u32 256, 40
    %585 = vbcast.lane.b32.xlu0 %v557, %s584
    %v586 = vpop.permute.xlu0 %585
    %s588 = sor.u32 256, 48
    %589 = vbcast.lane.b32.xlu0 %v557, %s588
    %v590 = vpop.permute.xlu0 %589
    %s592 = sor.u32 256, 56
    %593 = vbcast.lane.b32.xlu0 %v557, %s592
    %v594 = vpop.permute.xlu0 %593
    %s596 = sor.u32 256, 64
    %597 = vbcast.lane.b32.xlu0 %v557, %s596
    %v598 = vpop.permute.xlu0 %597
    %s600 = sor.u32 256, 72
    %601 = vbcast.lane.b32.xlu0 %v557, %s600
    %v602 = vpop.permute.xlu0 %601
    %s604 = sor.u32 256, 80
    %605 = vbcast.lane.b32.xlu0 %v557, %s604
    %v606 = vpop.permute.xlu0 %605
    %s608 = sor.u32 256, 88
    %609 = vbcast.lane.b32.xlu0 %v557, %s608
    %v610 = vpop.permute.xlu0 %609
    %s612 = sor.u32 256, 96
    %613 = vbcast.lane.b32.xlu0 %v557, %s612
    %v614 = vpop.permute.xlu0 %613
    %s616 = sor.u32 256, 104
    %617 = vbcast.lane.b32.xlu0 %v557, %s616
    %v618 = vpop.permute.xlu0 %617
    %s620 = sor.u32 256, 112
    %621 = vbcast.lane.b32.xlu0 %v557, %s620
    %v622 = vpop.permute.xlu0 %621
    %s624 = sor.u32 256, 120
    %625 = vbcast.lane.b32.xlu0 %v557, %s624
    %v626 = vpop.permute.xlu0 %625
    %628 = vbcast.lane.b32.xlu0 %v561, 256
    %v629 = vpop.permute.xlu0 %628
    %s631 = sor.u32 256, 8
    %632 = vbcast.lane.b32.xlu0 %v561, %s631
    %v633 = vpop.permute.xlu0 %632
    %s635 = sor.u32 256, 16
    %636 = vbcast.lane.b32.xlu0 %v561, %s635
    %v637 = vpop.permute.xlu0 %636
    %s639 = sor.u32 256, 24
    %640 = vbcast.lane.b32.xlu0 %v561, %s639
    %v641 = vpop.permute.xlu0 %640
    %s643 = sor.u32 256, 32
    %644 = vbcast.lane.b32.xlu0 %v561, %s643
    %v645 = vpop.permute.xlu0 %644
    %s647 = sor.u32 256, 40
    %648 = vbcast.lane.b32.xlu0 %v561, %s647
    %v649 = vpop.permute.xlu0 %648
    %s651 = sor.u32 256, 48
    %652 = vbcast.lane.b32.xlu0 %v561, %s651
    %v653 = vpop.permute.xlu0 %652
    %s655 = sor.u32 256, 56
    %656 = vbcast.lane.b32.xlu0 %v561, %s655
    %v657 = vpop.permute.xlu0 %656
    %s659 = sor.u32 256, 64
    %660 = vbcast.lane.b32.xlu0 %v561, %s659
    %v661 = vpop.permute.xlu0 %660
    %s663 = sor.u32 256, 72
    %664 = vbcast.lane.b32.xlu0 %v561, %s663
    %v665 = vpop.permute.xlu0 %664
    %s667 = sor.u32 256, 80
    %668 = vbcast.lane.b32.xlu0 %v561, %s667
    %v669 = vpop.permute.xlu0 %668
    %s671 = sor.u32 256, 88
    %672 = vbcast.lane.b32.xlu0 %v561, %s671
    %v673 = vpop.permute.xlu0 %672
    %s675 = sor.u32 256, 96
    %676 = vbcast.lane.b32.xlu0 %v561, %s675
    %v677 = vpop.permute.xlu0 %676
    %s679 = sor.u32 256, 104
    %680 = vbcast.lane.b32.xlu0 %v561, %s679
    %v681 = vpop.permute.xlu0 %680
    %s683 = sor.u32 256, 112
    %684 = vbcast.lane.b32.xlu0 %v561, %s683
    %v685 = vpop.permute.xlu0 %684
    %s687 = sor.u32 256, 120
    %688 = vbcast.lane.b32.xlu0 %v561, %s687
    %v689 = vpop.permute.xlu0 %688
    %v722 = vmul.f32 %v549, %v566
    %v723 = vmul.f32 %v549, %v570
    %v724 = vmul.f32 %v549, %v574
    %v725 = vmul.f32 %v549, %v578
    %v726 = vmul.f32 %v549, %v582
    %v727 = vmul.f32 %v549, %v586
    %v728 = vmul.f32 %v549, %v590
    %v729 = vmul.f32 %v549, %v594
    %v730 = vmul.f32 %v549, %v598
    %v731 = vmul.f32 %v549, %v602
    %v732 = vmul.f32 %v549, %v606
    %v733 = vmul.f32 %v549, %v610
    %v734 = vmul.f32 %v549, %v614
    %v735 = vmul.f32 %v549, %v618
    %v736 = vmul.f32 %v549, %v622
    %v737 = vmul.f32 %v549, %v626
    %v738 = vmul.f32 %v549, %v629
    %v739 = vmul.f32 %v549, %v633
    %v740 = vmul.f32 %v549, %v637
    %v741 = vmul.f32 %v549, %v641
    %v742 = vmul.f32 %v549, %v645
    %v743 = vmul.f32 %v549, %v649
    %v744 = vmul.f32 %v549, %v653
    %v745 = vmul.f32 %v549, %v657
    %v746 = vmul.f32 %v549, %v661
    %v747 = vmul.f32 %v549, %v665
    %v748 = vmul.f32 %v549, %v669
    %v749 = vmul.f32 %v549, %v673
    %v750 = vmul.f32 %v549, %v677
    %v751 = vmul.f32 %v549, %v681
    %v752 = vmul.f32 %v549, %v685
    %v753 = vmul.f32 %v549, %v689
    %v754 = vmul.f32 %v553, %v566
    %v755 = vmul.f32 %v553, %v570
    %v756 = vmul.f32 %v553, %v574
    %v757 = vmul.f32 %v553, %v578
    %v758 = vmul.f32 %v553, %v582
    %v759 = vmul.f32 %v553, %v586
    %v760 = vmul.f32 %v553, %v590
    %v761 = vmul.f32 %v553, %v594
    %v762 = vmul.f32 %v553, %v598
    %v763 = vmul.f32 %v553, %v602
    %v764 = vmul.f32 %v553, %v606
    %v765 = vmul.f32 %v553, %v610
    %v766 = vmul.f32 %v553, %v614
    %v767 = vmul.f32 %v553, %v618
    %v768 = vmul.f32 %v553, %v622
    %v769 = vmul.f32 %v553, %v626
    %v770 = vmul.f32 %v553, %v629
    %v771 = vmul.f32 %v553, %v633
    %v772 = vmul.f32 %v553, %v637
    %v773 = vmul.f32 %v553, %v641
    %v774 = vmul.f32 %v553, %v645
    %v775 = vmul.f32 %v553, %v649
    %v776 = vmul.f32 %v553, %v653
    %v777 = vmul.f32 %v553, %v657
    %v778 = vmul.f32 %v553, %v661
    %v779 = vmul.f32 %v553, %v665
    %v780 = vmul.f32 %v553, %v669
    %v781 = vmul.f32 %v553, %v673
    %v782 = vmul.f32 %v553, %v677
    %v783 = vmul.f32 %v553, %v681
    %v784 = vmul.f32 %v553, %v685
    %v785 = vmul.f32 %v553, %v689
    %v786 = vlaneseq
    %v787 = vshrl.u32 %v786, 7
    %v788 = vsub.s32 2, %v787
    %v789 = vrot.slane %v302, %v788
    %v790 = vlaneseq
    %v791 = vshrl.u32 %v790, 7
    %v792 = vsub.s32 2, %v791
    %v793 = vrot.slane %v303, %v792
    %v794 = vlaneseq
    %v795 = vshrl.u32 %v794, 7
    %v796 = vsub.s32 2, %v795
    %v797 = vrot.slane %v304, %v796
    %v798 = vlaneseq
    %v799 = vshrl.u32 %v798, 7
    %v800 = vsub.s32 2, %v799
    %v801 = vrot.slane %v305, %v800
    %805 = vbcast.lane.b32.xlu0 %v797, 256
    %v806 = vpop.permute.xlu0 %805
    %s808 = sor.u32 256, 8
    %809 = vbcast.lane.b32.xlu0 %v797, %s808
    %v810 = vpop.permute.xlu0 %809
    %s812 = sor.u32 256, 16
    %813 = vbcast.lane.b32.xlu0 %v797, %s812
    %v814 = vpop.permute.xlu0 %813
    %s816 = sor.u32 256, 24
    %817 = vbcast.lane.b32.xlu0 %v797, %s816
    %v818 = vpop.permute.xlu0 %817
    %s820 = sor.u32 256, 32
    %821 = vbcast.lane.b32.xlu0 %v797, %s820
    %v822 = vpop.permute.xlu0 %821
    %s824 = sor.u32 256, 40
    %825 = vbcast.lane.b32.xlu0 %v797, %s824
    %v826 = vpop.permute.xlu0 %825
    %s828 = sor.u32 256, 48
    %829 = vbcast.lane.b32.xlu0 %v797, %s828
    %v830 = vpop.permute.xlu0 %829
    %s832 = sor.u32 256, 56
    %833 = vbcast.lane.b32.xlu0 %v797, %s832
    %v834 = vpop.permute.xlu0 %833
    %s836 = sor.u32 256, 64
    %837 = vbcast.lane.b32.xlu0 %v797, %s836
    %v838 = vpop.permute.xlu0 %837
    %s840 = sor.u32 256, 72
    %841 = vbcast.lane.b32.xlu0 %v797, %s840
    %v842 = vpop.permute.xlu0 %841
    %s844 = sor.u32 256, 80
    %845 = vbcast.lane.b32.xlu0 %v797, %s844
    %v846 = vpop.permute.xlu0 %845
    %s848 = sor.u32 256, 88
    %849 = vbcast.lane.b32.xlu0 %v797, %s848
    %v850 = vpop.permute.xlu0 %849
    %s852 = sor.u32 256, 96
    %853 = vbcast.lane.b32.xlu0 %v797, %s852
    %v854 = vpop.permute.xlu0 %853
    %s856 = sor.u32 256, 104
    %857 = vbcast.lane.b32.xlu0 %v797, %s856
    %v858 = vpop.permute.xlu0 %857
    %s860 = sor.u32 256, 112
    %861 = vbcast.lane.b32.xlu0 %v797, %s860
    %v862 = vpop.permute.xlu0 %861
    %s864 = sor.u32 256, 120
    %865 = vbcast.lane.b32.xlu0 %v797, %s864
    %v866 = vpop.permute.xlu0 %865
    %868 = vbcast.lane.b32.xlu0 %v801, 256
    %v869 = vpop.permute.xlu0 %868
    %s871 = sor.u32 256, 8
    %872 = vbcast.lane.b32.xlu0 %v801, %s871
    %v873 = vpop.permute.xlu0 %872
    %s875 = sor.u32 256, 16
    %876 = vbcast.lane.b32.xlu0 %v801, %s875
    %v877 = vpop.permute.xlu0 %876
    %s879 = sor.u32 256, 24
    %880 = vbcast.lane.b32.xlu0 %v801, %s879
    %v881 = vpop.permute.xlu0 %880
    %s883 = sor.u32 256, 32
    %884 = vbcast.lane.b32.xlu0 %v801, %s883
    %v885 = vpop.permute.xlu0 %884
    %s887 = sor.u32 256, 40
    %888 = vbcast.lane.b32.xlu0 %v801, %s887
    %v889 = vpop.permute.xlu0 %888
    %s891 = sor.u32 256, 48
    %892 = vbcast.lane.b32.xlu0 %v801, %s891
    %v893 = vpop.permute.xlu0 %892
    %s895 = sor.u32 256, 56
    %896 = vbcast.lane.b32.xlu0 %v801, %s895
    %v897 = vpop.permute.xlu0 %896
    %s899 = sor.u32 256, 64
    %900 = vbcast.lane.b32.xlu0 %v801, %s899
    %v901 = vpop.permute.xlu0 %900
    %s903 = sor.u32 256, 72
    %904 = vbcast.lane.b32.xlu0 %v801, %s903
    %v905 = vpop.permute.xlu0 %904
    %s907 = sor.u32 256, 80
    %908 = vbcast.lane.b32.xlu0 %v801, %s907
    %v909 = vpop.permute.xlu0 %908
    %s911 = sor.u32 256, 88
    %912 = vbcast.lane.b32.xlu0 %v801, %s911
    %v913 = vpop.permute.xlu0 %912
    %s915 = sor.u32 256, 96
    %916 = vbcast.lane.b32.xlu0 %v801, %s915
    %v917 = vpop.permute.xlu0 %916
    %s919 = sor.u32 256, 104
    %920 = vbcast.lane.b32.xlu0 %v801, %s919
    %v921 = vpop.permute.xlu0 %920
    %s923 = sor.u32 256, 112
    %924 = vbcast.lane.b32.xlu0 %v801, %s923
    %v925 = vpop.permute.xlu0 %924
    %s927 = sor.u32 256, 120
    %928 = vbcast.lane.b32.xlu0 %v801, %s927
    %v929 = vpop.permute.xlu0 %928
    %v962 = vmul.f32 %v789, %v806
    %v963 = vmul.f32 %v789, %v810
    %v964 = vmul.f32 %v789, %v814
    %v965 = vmul.f32 %v789, %v818
    %v966 = vmul.f32 %v789, %v822
    %v967 = vmul.f32 %v789, %v826
    %v968 = vmul.f32 %v789, %v830
    %v969 = vmul.f32 %v789, %v834
    %v970 = vmul.f32 %v789, %v838
    %v971 = vmul.f32 %v789, %v842
    %v972 = vmul.f32 %v789, %v846
    %v973 = vmul.f32 %v789, %v850
    %v974 = vmul.f32 %v789, %v854
    %v975 = vmul.f32 %v789, %v858
    %v976 = vmul.f32 %v789, %v862
    %v977 = vmul.f32 %v789, %v866
    %v978 = vmul.f32 %v789, %v869
    %v979 = vmul.f32 %v789, %v873
    %v980 = vmul.f32 %v789, %v877
    %v981 = vmul.f32 %v789, %v881
    %v982 = vmul.f32 %v789, %v885
    %v983 = vmul.f32 %v789, %v889
    %v984 = vmul.f32 %v789, %v893
    %v985 = vmul.f32 %v789, %v897
    %v986 = vmul.f32 %v789, %v901
    %v987 = vmul.f32 %v789, %v905
    %v988 = vmul.f32 %v789, %v909
    %v989 = vmul.f32 %v789, %v913
    %v990 = vmul.f32 %v789, %v917
    %v991 = vmul.f32 %v789, %v921
    %v992 = vmul.f32 %v789, %v925
    %v993 = vmul.f32 %v789, %v929
    %v994 = vmul.f32 %v793, %v806
    %v995 = vmul.f32 %v793, %v810
    %v996 = vmul.f32 %v793, %v814
    %v997 = vmul.f32 %v793, %v818
    %v998 = vmul.f32 %v793, %v822
    %v999 = vmul.f32 %v793, %v826
    %v1000 = vmul.f32 %v793, %v830
    %v1001 = vmul.f32 %v793, %v834
    %v1002 = vmul.f32 %v793, %v838
    %v1003 = vmul.f32 %v793, %v842
    %v1004 = vmul.f32 %v793, %v846
    %v1005 = vmul.f32 %v793, %v850
    %v1006 = vmul.f32 %v793, %v854
    %v1007 = vmul.f32 %v793, %v858
    %v1008 = vmul.f32 %v793, %v862
    %v1009 = vmul.f32 %v793, %v866
    %v1010 = vmul.f32 %v793, %v869
    %v1011 = vmul.f32 %v793, %v873
    %v1012 = vmul.f32 %v793, %v877
    %v1013 = vmul.f32 %v793, %v881
    %v1014 = vmul.f32 %v793, %v885
    %v1015 = vmul.f32 %v793, %v889
    %v1016 = vmul.f32 %v793, %v893
    %v1017 = vmul.f32 %v793, %v897
    %v1018 = vmul.f32 %v793, %v901
    %v1019 = vmul.f32 %v793, %v905
    %v1020 = vmul.f32 %v793, %v909
    %v1021 = vmul.f32 %v793, %v913
    %v1022 = vmul.f32 %v793, %v917
    %v1023 = vmul.f32 %v793, %v921
    %v1024 = vmul.f32 %v793, %v925
    %v1025 = vmul.f32 %v793, %v929
    %v1026 = vlaneseq
    %v1027 = vshrl.u32 %v1026, 7
    %v1028 = vsub.s32 3, %v1027
    %v1029 = vrot.slane %v302, %v1028
    %v1030 = vlaneseq
    %v1031 = vshrl.u32 %v1030, 7
    %v1032 = vsub.s32 3, %v1031
    %v1033 = vrot.slane %v303, %v1032
    %v1034 = vlaneseq
    %v1035 = vshrl.u32 %v1034, 7
    %v1036 = vsub.s32 3, %v1035
    %v1037 = vrot.slane %v304, %v1036
    %v1038 = vlaneseq
    %v1039 = vshrl.u32 %v1038, 7
    %v1040 = vsub.s32 3, %v1039
    %v1041 = vrot.slane %v305, %v1040
    %1045 = vbcast.lane.b32.xlu0 %v1037, 256
    %v1046 = vpop.permute.xlu0 %1045
    %s1048 = sor.u32 256, 8
    %1049 = vbcast.lane.b32.xlu0 %v1037, %s1048
    %v1050 = vpop.permute.xlu0 %1049
    %s1052 = sor.u32 256, 16
    %1053 = vbcast.lane.b32.xlu0 %v1037, %s1052
    %v1054 = vpop.permute.xlu0 %1053
    %s1056 = sor.u32 256, 24
    %1057 = vbcast.lane.b32.xlu0 %v1037, %s1056
    %v1058 = vpop.permute.xlu0 %1057
    %s1060 = sor.u32 256, 32
    %1061 = vbcast.lane.b32.xlu0 %v1037, %s1060
    %v1062 = vpop.permute.xlu0 %1061
    %s1064 = sor.u32 256, 40
    %1065 = vbcast.lane.b32.xlu0 %v1037, %s1064
    %v1066 = vpop.permute.xlu0 %1065
    %s1068 = sor.u32 256, 48
    %1069 = vbcast.lane.b32.xlu0 %v1037, %s1068
    %v1070 = vpop.permute.xlu0 %1069
    %s1072 = sor.u32 256, 56
    %1073 = vbcast.lane.b32.xlu0 %v1037, %s1072
    %v1074 = vpop.permute.xlu0 %1073
    %s1076 = sor.u32 256, 64
    %1077 = vbcast.lane.b32.xlu0 %v1037, %s1076
    %v1078 = vpop.permute.xlu0 %1077
    %s1080 = sor.u32 256, 72
    %1081 = vbcast.lane.b32.xlu0 %v1037, %s1080
    %v1082 = vpop.permute.xlu0 %1081
    %s1084 = sor.u32 256, 80
    %1085 = vbcast.lane.b32.xlu0 %v1037, %s1084
    %v1086 = vpop.permute.xlu0 %1085
    %s1088 = sor.u32 256, 88
    %1089 = vbcast.lane.b32.xlu0 %v1037, %s1088
    %v1090 = vpop.permute.xlu0 %1089
    %s1092 = sor.u32 256, 96
    %1093 = vbcast.lane.b32.xlu0 %v1037, %s1092
    %v1094 = vpop.permute.xlu0 %1093
    %s1096 = sor.u32 256, 104
    %1097 = vbcast.lane.b32.xlu0 %v1037, %s1096
    %v1098 = vpop.permute.xlu0 %1097
    %s1100 = sor.u32 256, 112
    %1101 = vbcast.lane.b32.xlu0 %v1037, %s1100
    %v1102 = vpop.permute.xlu0 %1101
    %s1104 = sor.u32 256, 120
    %1105 = vbcast.lane.b32.xlu0 %v1037, %s1104
    %v1106 = vpop.permute.xlu0 %1105
    %1108 = vbcast.lane.b32.xlu0 %v1041, 256
    %v1109 = vpop.permute.xlu0 %1108
    %s1111 = sor.u32 256, 8
    %1112 = vbcast.lane.b32.xlu0 %v1041, %s1111
    %v1113 = vpop.permute.xlu0 %1112
    %s1115 = sor.u32 256, 16
    %1116 = vbcast.lane.b32.xlu0 %v1041, %s1115
    %v1117 = vpop.permute.xlu0 %1116
    %s1119 = sor.u32 256, 24
    %1120 = vbcast.lane.b32.xlu0 %v1041, %s1119
    %v1121 = vpop.permute.xlu0 %1120
    %s1123 = sor.u32 256, 32
    %1124 = vbcast.lane.b32.xlu0 %v1041, %s1123
    %v1125 = vpop.permute.xlu0 %1124
    %s1127 = sor.u32 256, 40
    %1128 = vbcast.lane.b32.xlu0 %v1041, %s1127
    %v1129 = vpop.permute.xlu0 %1128
    %s1131 = sor.u32 256, 48
    %1132 = vbcast.lane.b32.xlu0 %v1041, %s1131
    %v1133 = vpop.permute.xlu0 %1132
    %s1135 = sor.u32 256, 56
    %1136 = vbcast.lane.b32.xlu0 %v1041, %s1135
    %v1137 = vpop.permute.xlu0 %1136
    %s1139 = sor.u32 256, 64
    %1140 = vbcast.lane.b32.xlu0 %v1041, %s1139
    %v1141 = vpop.permute.xlu0 %1140
    %s1143 = sor.u32 256, 72
    %1144 = vbcast.lane.b32.xlu0 %v1041, %s1143
    %v1145 = vpop.permute.xlu0 %1144
    %s1147 = sor.u32 256, 80
    %1148 = vbcast.lane.b32.xlu0 %v1041, %s1147
    %v1149 = vpop.permute.xlu0 %1148
    %s1151 = sor.u32 256, 88
    %1152 = vbcast.lane.b32.xlu0 %v1041, %s1151
    %v1153 = vpop.permute.xlu0 %1152
    %s1155 = sor.u32 256, 96
    %1156 = vbcast.lane.b32.xlu0 %v1041, %s1155
    %v1157 = vpop.permute.xlu0 %1156
    %s1159 = sor.u32 256, 104
    %1160 = vbcast.lane.b32.xlu0 %v1041, %s1159
    %v1161 = vpop.permute.xlu0 %1160
    %s1163 = sor.u32 256, 112
    %1164 = vbcast.lane.b32.xlu0 %v1041, %s1163
    %v1165 = vpop.permute.xlu0 %1164
    %s1167 = sor.u32 256, 120
    %1168 = vbcast.lane.b32.xlu0 %v1041, %s1167
    %v1169 = vpop.permute.xlu0 %1168
    %v1202 = vmul.f32 %v1029, %v1046
    %v1203 = vmul.f32 %v1029, %v1050
    %v1204 = vmul.f32 %v1029, %v1054
    %v1205 = vmul.f32 %v1029, %v1058
    %v1206 = vmul.f32 %v1029, %v1062
    %v1207 = vmul.f32 %v1029, %v1066
    %v1208 = vmul.f32 %v1029, %v1070
    %v1209 = vmul.f32 %v1029, %v1074
    %v1210 = vmul.f32 %v1029, %v1078
    %v1211 = vmul.f32 %v1029, %v1082
    %v1212 = vmul.f32 %v1029, %v1086
    %v1213 = vmul.f32 %v1029, %v1090
    %v1214 = vmul.f32 %v1029, %v1094
    %v1215 = vmul.f32 %v1029, %v1098
    %v1216 = vmul.f32 %v1029, %v1102
    %v1217 = vmul.f32 %v1029, %v1106
    %v1218 = vmul.f32 %v1029, %v1109
    %v1219 = vmul.f32 %v1029, %v1113
    %v1220 = vmul.f32 %v1029, %v1117
    %v1221 = vmul.f32 %v1029, %v1121
    %v1222 = vmul.f32 %v1029, %v1125
    %v1223 = vmul.f32 %v1029, %v1129
    %v1224 = vmul.f32 %v1029, %v1133
    %v1225 = vmul.f32 %v1029, %v1137
    %v1226 = vmul.f32 %v1029, %v1141
    %v1227 = vmul.f32 %v1029, %v1145
    %v1228 = vmul.f32 %v1029, %v1149
    %v1229 = vmul.f32 %v1029, %v1153
    %v1230 = vmul.f32 %v1029, %v1157
    %v1231 = vmul.f32 %v1029, %v1161
    %v1232 = vmul.f32 %v1029, %v1165
    %v1233 = vmul.f32 %v1029, %v1169
    %v1234 = vmul.f32 %v1033, %v1046
    %v1235 = vmul.f32 %v1033, %v1050
    %v1236 = vmul.f32 %v1033, %v1054
    %v1237 = vmul.f32 %v1033, %v1058
    %v1238 = vmul.f32 %v1033, %v1062
    %v1239 = vmul.f32 %v1033, %v1066
    %v1240 = vmul.f32 %v1033, %v1070
    %v1241 = vmul.f32 %v1033, %v1074
    %v1242 = vmul.f32 %v1033, %v1078
    %v1243 = vmul.f32 %v1033, %v1082
    %v1244 = vmul.f32 %v1033, %v1086
    %v1245 = vmul.f32 %v1033, %v1090
    %v1246 = vmul.f32 %v1033, %v1094
    %v1247 = vmul.f32 %v1033, %v1098
    %v1248 = vmul.f32 %v1033, %v1102
    %v1249 = vmul.f32 %v1033, %v1106
    %v1250 = vmul.f32 %v1033, %v1109
    %v1251 = vmul.f32 %v1033, %v1113
    %v1252 = vmul.f32 %v1033, %v1117
    %v1253 = vmul.f32 %v1033, %v1121
    %v1254 = vmul.f32 %v1033, %v1125
    %v1255 = vmul.f32 %v1033, %v1129
    %v1256 = vmul.f32 %v1033, %v1133
    %v1257 = vmul.f32 %v1033, %v1137
    %v1258 = vmul.f32 %v1033, %v1141
    %v1259 = vmul.f32 %v1033, %v1145
    %v1260 = vmul.f32 %v1033, %v1149
    %v1261 = vmul.f32 %v1033, %v1153
    %v1262 = vmul.f32 %v1033, %v1157
    %v1263 = vmul.f32 %v1033, %v1161
    %v1264 = vmul.f32 %v1033, %v1165
    %v1265 = vmul.f32 %v1033, %v1169
    %v1266 = vadd.f32 %v482, %v722
    %v1267 = vadd.f32 %v483, %v723
    %v1268 = vadd.f32 %v484, %v724
    %v1269 = vadd.f32 %v485, %v725
    %v1270 = vadd.f32 %v486, %v726
    %v1271 = vadd.f32 %v487, %v727
    %v1272 = vadd.f32 %v488, %v728
    %v1273 = vadd.f32 %v489, %v729
    %v1274 = vadd.f32 %v490, %v730
    %v1275 = vadd.f32 %v491, %v731
    %v1276 = vadd.f32 %v492, %v732
    %v1277 = vadd.f32 %v493, %v733
    %v1278 = vadd.f32 %v494, %v734
    %v1279 = vadd.f32 %v495, %v735
    %v1280 = vadd.f32 %v496, %v736
    %v1281 = vadd.f32 %v497, %v737
    %v1282 = vadd.f32 %v498, %v738
    %v1283 = vadd.f32 %v499, %v739
    %v1284 = vadd.f32 %v500, %v740
    %v1285 = vadd.f32 %v501, %v741
    %v1286 = vadd.f32 %v502, %v742
    %v1287 = vadd.f32 %v503, %v743
    %v1288 = vadd.f32 %v504, %v744
    %v1289 = vadd.f32 %v505, %v745
    %v1290 = vadd.f32 %v506, %v746
    %v1291 = vadd.f32 %v507, %v747
    %v1292 = vadd.f32 %v508, %v748
    %v1293 = vadd.f32 %v509, %v749
    %v1294 = vadd.f32 %v510, %v750
    %v1295 = vadd.f32 %v511, %v751
    %v1296 = vadd.f32 %v512, %v752
    %v1297 = vadd.f32 %v513, %v753
    %v1298 = vadd.f32 %v514, %v754
    %v1299 = vadd.f32 %v515, %v755
    %v1300 = vadd.f32 %v516, %v756
    %v1301 = vadd.f32 %v517, %v757
    %v1302 = vadd.f32 %v518, %v758
    %v1303 = vadd.f32 %v519, %v759
    %v1304 = vadd.f32 %v520, %v760
    %v1305 = vadd.f32 %v521, %v761
    %v1306 = vadd.f32 %v522, %v762
    %v1307 = vadd.f32 %v523, %v763
    %v1308 = vadd.f32 %v524, %v764
    %v1309 = vadd.f32 %v525, %v765
    %v1310 = vadd.f32 %v526, %v766
    %v1311 = vadd.f32 %v527, %v767
    %v1312 = vadd.f32 %v528, %v768
    %v1313 = vadd.f32 %v529, %v769
    %v1314 = vadd.f32 %v530, %v770
    %v1315 = vadd.f32 %v531, %v771
    %v1316 = vadd.f32 %v532, %v772
    %v1317 = vadd.f32 %v533, %v773
    %v1318 = vadd.f32 %v534, %v774
    %v1319 = vadd.f32 %v535, %v775
    %v1320 = vadd.f32 %v536, %v776
    %v1321 = vadd.f32 %v537, %v777
    %v1322 = vadd.f32 %v538, %v778
    %v1323 = vadd.f32 %v539, %v779
    %v1324 = vadd.f32 %v540, %v780
    %v1325 = vadd.f32 %v541, %v781
    %v1326 = vadd.f32 %v542, %v782
    %v1327 = vadd.f32 %v543, %v783
    %v1328 = vadd.f32 %v544, %v784
    %v1329 = vadd.f32 %v545, %v785
    %v1330 = vadd.f32 %v962, %v1202
    %v1331 = vadd.f32 %v963, %v1203
    %v1332 = vadd.f32 %v964, %v1204
    %v1333 = vadd.f32 %v965, %v1205
    %v1334 = vadd.f32 %v966, %v1206
    %v1335 = vadd.f32 %v967, %v1207
    %v1336 = vadd.f32 %v968, %v1208
    %v1337 = vadd.f32 %v969, %v1209
    %v1338 = vadd.f32 %v970, %v1210
    %v1339 = vadd.f32 %v971, %v1211
    %v1340 = vadd.f32 %v972, %v1212
    %v1341 = vadd.f32 %v973, %v1213
    %v1342 = vadd.f32 %v974, %v1214
    %v1343 = vadd.f32 %v975, %v1215
    %v1344 = vadd.f32 %v976, %v1216
    %v1345 = vadd.f32 %v977, %v1217
    %v1346 = vadd.f32 %v978, %v1218
    %v1347 = vadd.f32 %v979, %v1219
    %v1348 = vadd.f32 %v980, %v1220
    %v1349 = vadd.f32 %v981, %v1221
    %v1350 = vadd.f32 %v982, %v1222
    %v1351 = vadd.f32 %v983, %v1223
    %v1352 = vadd.f32 %v984, %v1224
    %v1353 = vadd.f32 %v985, %v1225
    %v1354 = vadd.f32 %v986, %v1226
    %v1355 = vadd.f32 %v987, %v1227
    %v1356 = vadd.f32 %v988, %v1228
    %v1357 = vadd.f32 %v989, %v1229
    %v1358 = vadd.f32 %v990, %v1230
    %v1359 = vadd.f32 %v991, %v1231
    %v1360 = vadd.f32 %v992, %v1232
    %v1361 = vadd.f32 %v993, %v1233
    %v1362 = vadd.f32 %v994, %v1234
    %v1363 = vadd.f32 %v995, %v1235
    %v1364 = vadd.f32 %v996, %v1236
    %v1365 = vadd.f32 %v997, %v1237
    %v1366 = vadd.f32 %v998, %v1238
    %v1367 = vadd.f32 %v999, %v1239
    %v1368 = vadd.f32 %v1000, %v1240
    %v1369 = vadd.f32 %v1001, %v1241
    %v1370 = vadd.f32 %v1002, %v1242
    %v1371 = vadd.f32 %v1003, %v1243
    %v1372 = vadd.f32 %v1004, %v1244
    %v1373 = vadd.f32 %v1005, %v1245
    %v1374 = vadd.f32 %v1006, %v1246
    %v1375 = vadd.f32 %v1007, %v1247
    %v1376 = vadd.f32 %v1008, %v1248
    %v1377 = vadd.f32 %v1009, %v1249
    %v1378 = vadd.f32 %v1010, %v1250
    %v1379 = vadd.f32 %v1011, %v1251
    %v1380 = vadd.f32 %v1012, %v1252
    %v1381 = vadd.f32 %v1013, %v1253
    %v1382 = vadd.f32 %v1014, %v1254
    %v1383 = vadd.f32 %v1015, %v1255
    %v1384 = vadd.f32 %v1016, %v1256
    %v1385 = vadd.f32 %v1017, %v1257
    %v1386 = vadd.f32 %v1018, %v1258
    %v1387 = vadd.f32 %v1019, %v1259
    %v1388 = vadd.f32 %v1020, %v1260
    %v1389 = vadd.f32 %v1021, %v1261
    %v1390 = vadd.f32 %v1022, %v1262
    %v1391 = vadd.f32 %v1023, %v1263
    %v1392 = vadd.f32 %v1024, %v1264
    %v1393 = vadd.f32 %v1025, %v1265
    %v1394 = vadd.f32 %v1266, %v1330
    %v1395 = vadd.f32 %v1267, %v1331
    %v1396 = vadd.f32 %v1268, %v1332
    %v1397 = vadd.f32 %v1269, %v1333
    %v1398 = vadd.f32 %v1270, %v1334
    %v1399 = vadd.f32 %v1271, %v1335
    %v1400 = vadd.f32 %v1272, %v1336
    %v1401 = vadd.f32 %v1273, %v1337
    %v1402 = vadd.f32 %v1274, %v1338
    %v1403 = vadd.f32 %v1275, %v1339
    %v1404 = vadd.f32 %v1276, %v1340
    %v1405 = vadd.f32 %v1277, %v1341
    %v1406 = vadd.f32 %v1278, %v1342
    %v1407 = vadd.f32 %v1279, %v1343
    %v1408 = vadd.f32 %v1280, %v1344
    %v1409 = vadd.f32 %v1281, %v1345
    %v1410 = vadd.f32 %v1282, %v1346
    %v1411 = vadd.f32 %v1283, %v1347
    %v1412 = vadd.f32 %v1284, %v1348
    %v1413 = vadd.f32 %v1285, %v1349
    %v1414 = vadd.f32 %v1286, %v1350
    %v1415 = vadd.f32 %v1287, %v1351
    %v1416 = vadd.f32 %v1288, %v1352
    %v1417 = vadd.f32 %v1289, %v1353
    %v1418 = vadd.f32 %v1290, %v1354
    %v1419 = vadd.f32 %v1291, %v1355
    %v1420 = vadd.f32 %v1292, %v1356
    %v1421 = vadd.f32 %v1293, %v1357
    %v1422 = vadd.f32 %v1294, %v1358
    %v1423 = vadd.f32 %v1295, %v1359
    %v1424 = vadd.f32 %v1296, %v1360
    %v1425 = vadd.f32 %v1297, %v1361
    %v1426 = vadd.f32 %v1298, %v1362
    %v1427 = vadd.f32 %v1299, %v1363
    %v1428 = vadd.f32 %v1300, %v1364
    %v1429 = vadd.f32 %v1301, %v1365
    %v1430 = vadd.f32 %v1302, %v1366
    %v1431 = vadd.f32 %v1303, %v1367
    %v1432 = vadd.f32 %v1304, %v1368
    %v1433 = vadd.f32 %v1305, %v1369
    %v1434 = vadd.f32 %v1306, %v1370
    %v1435 = vadd.f32 %v1307, %v1371
    %v1436 = vadd.f32 %v1308, %v1372
    %v1437 = vadd.f32 %v1309, %v1373
    %v1438 = vadd.f32 %v1310, %v1374
    %v1439 = vadd.f32 %v1311, %v1375
    %v1440 = vadd.f32 %v1312, %v1376
    %v1441 = vadd.f32 %v1313, %v1377
    %v1442 = vadd.f32 %v1314, %v1378
    %v1443 = vadd.f32 %v1315, %v1379
    %v1444 = vadd.f32 %v1316, %v1380
    %v1445 = vadd.f32 %v1317, %v1381
    %v1446 = vadd.f32 %v1318, %v1382
    %v1447 = vadd.f32 %v1319, %v1383
    %v1448 = vadd.f32 %v1320, %v1384
    %v1449 = vadd.f32 %v1321, %v1385
    %v1450 = vadd.f32 %v1322, %v1386
    %v1451 = vadd.f32 %v1323, %v1387
    %v1452 = vadd.f32 %v1324, %v1388
    %v1453 = vadd.f32 %v1325, %v1389
    %v1454 = vadd.f32 %v1326, %v1390
    %v1455 = vadd.f32 %v1327, %v1391
    %v1456 = vadd.f32 %v1328, %v1392
    %v1457 = vadd.f32 %v1329, %v1393
    %v1458 = vld [vmem:[#allocation7 + $0x4] ss:$0 sm:$0xff]
    %1459 = vst [vmem:[#allocation9] sm:$0x3] %v1458
    %v1524 = vcombine.high %v1394, %v1394
    %v1526 = vunpack.c.l.s4 1983009808
    %v1527 = vunpack.c.0.s8 %v1526
    %v1528 = vlaneseq
    %v1529 = vshrl.u32 %v1528, 7
    %v1530 = vsub.s32 %v1527, %v1529
    %v1531 = vrot.slane %v1394, %v1530
    %v1533 = vunpack.c.l.s4 1983009808
    %v1534 = vunpack.c.0.s8 %v1533
    %v1535 = vlaneseq
    %v1536 = vshrl.u32 %v1535, 7
    %v1537 = vsub.s32 %v1534, %v1536
    %v1538 = vrot.slane %v1524, %v1537
    %v1539 = vcombine.high %v1531, %v1531
    %v1540 = vcombine.high %v1538, %v1538
    %v1541 = vcombine.high %v1395, %v1395
    %v1543 = vunpack.c.l.s4 1983009808
    %v1544 = vunpack.c.0.s8 %v1543
    %v1545 = vlaneseq
    %v1546 = vshrl.u32 %v1545, 7
    %v1547 = vsub.s32 %v1544, %v1546
    %v1548 = vrot.slane %v1395, %v1547
    %v1550 = vunpack.c.l.s4 1983009808
    %v1551 = vunpack.c.0.s8 %v1550
    %v1552 = vlaneseq
    %v1553 = vshrl.u32 %v1552, 7
    %v1554 = vsub.s32 %v1551, %v1553
    %v1555 = vrot.slane %v1541, %v1554
    %v1556 = vcombine.high %v1548, %v1548
    %v1557 = vcombine.high %v1555, %v1555
    %v1558 = vcombine.high %v1396, %v1396
    %v1560 = vunpack.c.l.s4 1983009808
    %v1561 = vunpack.c.0.s8 %v1560
    %v1562 = vlaneseq
    %v1563 = vshrl.u32 %v1562, 7
    %v1564 = vsub.s32 %v1561, %v1563
    %v1565 = vrot.slane %v1396, %v1564
    %v1567 = vunpack.c.l.s4 1983009808
    %v1568 = vunpack.c.0.s8 %v1567
    %v1569 = vlaneseq
    %v1570 = vshrl.u32 %v1569, 7
    %v1571 = vsub.s32 %v1568, %v1570
    %v1572 = vrot.slane %v1558, %v1571
    %v1573 = vcombine.high %v1565, %v1565
    %v1574 = vcombine.high %v1572, %v1572
    %v1575 = vcombine.high %v1397, %v1397
    %v1577 = vunpack.c.l.s4 1983009808
    %v1578 = vunpack.c.0.s8 %v1577
    %v1579 = vlaneseq
    %v1580 = vshrl.u32 %v1579, 7
    %v1581 = vsub.s32 %v1578, %v1580
    %v1582 = vrot.slane %v1397, %v1581
    %v1584 = vunpack.c.l.s4 1983009808
    %v1585 = vunpack.c.0.s8 %v1584
    %v1586 = vlaneseq
    %v1587 = vshrl.u32 %v1586, 7
    %v1588 = vsub.s32 %v1585, %v1587
    %v1589 = vrot.slane %v1575, %v1588
    %v1590 = vcombine.high %v1582, %v1582
    %v1591 = vcombine.high %v1589, %v1589
    %v1592 = vcombine.high %v1398, %v1398
    %v1594 = vunpack.c.l.s4 1983009808
    %v1595 = vunpack.c.0.s8 %v1594
    %v1596 = vlaneseq
    %v1597 = vshrl.u32 %v1596, 7
    %v1598 = vsub.s32 %v1595, %v1597
    %v1599 = vrot.slane %v1398, %v1598
    %v1601 = vunpack.c.l.s4 1983009808
    %v1602 = vunpack.c.0.s8 %v1601
    %v1603 = vlaneseq
    %v1604 = vshrl.u32 %v1603, 7
    %v1605 = vsub.s32 %v1602, %v1604
    %v1606 = vrot.slane %v1592, %v1605
    %v1607 = vcombine.high %v1599, %v1599
    %v1608 = vcombine.high %v1606, %v1606
    %v1609 = vcombine.high %v1399, %v1399
    %v1611 = vunpack.c.l.s4 1983009808
    %v1612 = vunpack.c.0.s8 %v1611
    %v1613 = vlaneseq
    %v1614 = vshrl.u32 %v1613, 7
    %v1615 = vsub.s32 %v1612, %v1614
    %v1616 = vrot.slane %v1399, %v1615
    %v1618 = vunpack.c.l.s4 1983009808
    %v1619 = vunpack.c.0.s8 %v1618
    %v1620 = vlaneseq
    %v1621 = vshrl.u32 %v1620, 7
    %v1622 = vsub.s32 %v1619, %v1621
    %v1623 = vrot.slane %v1609, %v1622
    %v1624 = vcombine.high %v1616, %v1616
    %v1625 = vcombine.high %v1623, %v1623
    %v1626 = vcombine.high %v1400, %v1400
    %v1628 = vunpack.c.l.s4 1983009808
    %v1629 = vunpack.c.0.s8 %v1628
    %v1630 = vlaneseq
    %v1631 = vshrl.u32 %v1630, 7
    %v1632 = vsub.s32 %v1629, %v1631
    %v1633 = vrot.slane %v1400, %v1632
    %v1635 = vunpack.c.l.s4 1983009808
    %v1636 = vunpack.c.0.s8 %v1635
    %v1637 = vlaneseq
    %v1638 = vshrl.u32 %v1637, 7
    %v1639 = vsub.s32 %v1636, %v1638
    %v1640 = vrot.slane %v1626, %v1639
    %v1641 = vcombine.high %v1633, %v1633
    %v1642 = vcombine.high %v1640, %v1640
    %v1643 = vcombine.high %v1401, %v1401
    %v1645 = vunpack.c.l.s4 1983009808
    %v1646 = vunpack.c.0.s8 %v1645
    %v1647 = vlaneseq
    %v1648 = vshrl.u32 %v1647, 7
    %v1649 = vsub.s32 %v1646, %v1648
    %v1650 = vrot.slane %v1401, %v1649
    %v1652 = vunpack.c.l.s4 1983009808
    %v1653 = vunpack.c.0.s8 %v1652
    %v1654 = vlaneseq
    %v1655 = vshrl.u32 %v1654, 7
    %v1656 = vsub.s32 %v1653, %v1655
    %v1657 = vrot.slane %v1643, %v1656
    %v1658 = vcombine.high %v1650, %v1650
    %v1659 = vcombine.high %v1657, %v1657
    %v1660 = vcombine.high %v1402, %v1402
    %v1662 = vunpack.c.l.s4 1983009808
    %v1663 = vunpack.c.0.s8 %v1662
    %v1664 = vlaneseq
    %v1665 = vshrl.u32 %v1664, 7
    %v1666 = vsub.s32 %v1663, %v1665
    %v1667 = vrot.slane %v1402, %v1666
    %v1669 = vunpack.c.l.s4 1983009808
    %v1670 = vunpack.c.0.s8 %v1669
    %v1671 = vlaneseq
    %v1672 = vshrl.u32 %v1671, 7
    %v1673 = vsub.s32 %v1670, %v1672
    %v1674 = vrot.slane %v1660, %v1673
    %v1675 = vcombine.high %v1667, %v1667
    %v1676 = vcombine.high %v1674, %v1674
    %v1677 = vcombine.high %v1403, %v1403
    %v1679 = vunpack.c.l.s4 1983009808
    %v1680 = vunpack.c.0.s8 %v1679
    %v1681 = vlaneseq
    %v1682 = vshrl.u32 %v1681, 7
    %v1683 = vsub.s32 %v1680, %v1682
    %v1684 = vrot.slane %v1403, %v1683
    %v1686 = vunpack.c.l.s4 1983009808
    %v1687 = vunpack.c.0.s8 %v1686
    %v1688 = vlaneseq
    %v1689 = vshrl.u32 %v1688, 7
    %v1690 = vsub.s32 %v1687, %v1689
    %v1691 = vrot.slane %v1677, %v1690
    %v1692 = vcombine.high %v1684, %v1684
    %v1693 = vcombine.high %v1691, %v1691
    %v1694 = vcombine.high %v1404, %v1404
    %v1696 = vunpack.c.l.s4 1983009808
    %v1697 = vunpack.c.0.s8 %v1696
    %v1698 = vlaneseq
    %v1699 = vshrl.u32 %v1698, 7
    %v1700 = vsub.s32 %v1697, %v1699
    %v1701 = vrot.slane %v1404, %v1700
    %v1703 = vunpack.c.l.s4 1983009808
    %v1704 = vunpack.c.0.s8 %v1703
    %v1705 = vlaneseq
    %v1706 = vshrl.u32 %v1705, 7
    %v1707 = vsub.s32 %v1704, %v1706
    %v1708 = vrot.slane %v1694, %v1707
    %v1709 = vcombine.high %v1701, %v1701
    %v1710 = vcombine.high %v1708, %v1708
    %v1711 = vcombine.high %v1405, %v1405
    %v1713 = vunpack.c.l.s4 1983009808
    %v1714 = vunpack.c.0.s8 %v1713
    %v1715 = vlaneseq
    %v1716 = vshrl.u32 %v1715, 7
    %v1717 = vsub.s32 %v1714, %v1716
    %v1718 = vrot.slane %v1405, %v1717
    %v1720 = vunpack.c.l.s4 1983009808
    %v1721 = vunpack.c.0.s8 %v1720
    %v1722 = vlaneseq
    %v1723 = vshrl.u32 %v1722, 7
    %v1724 = vsub.s32 %v1721, %v1723
    %v1725 = vrot.slane %v1711, %v1724
    %v1726 = vcombine.high %v1718, %v1718
    %v1727 = vcombine.high %v1725, %v1725
    %v1728 = vcombine.high %v1406, %v1406
    %v1730 = vunpack.c.l.s4 1983009808
    %v1731 = vunpack.c.0.s8 %v1730
    %v1732 = vlaneseq
    %v1733 = vshrl.u32 %v1732, 7
    %v1734 = vsub.s32 %v1731, %v1733
    %v1735 = vrot.slane %v1406, %v1734
    %v1737 = vunpack.c.l.s4 1983009808
    %v1738 = vunpack.c.0.s8 %v1737
    %v1739 = vlaneseq
    %v1740 = vshrl.u32 %v1739, 7
    %v1741 = vsub.s32 %v1738, %v1740
    %v1742 = vrot.slane %v1728, %v1741
    %v1743 = vcombine.high %v1735, %v1735
    %v1744 = vcombine.high %v1742, %v1742
    %v1745 = vcombine.high %v1407, %v1407
    %v1747 = vunpack.c.l.s4 1983009808
    %v1748 = vunpack.c.0.s8 %v1747
    %v1749 = vlaneseq
    %v1750 = vshrl.u32 %v1749, 7
    %v1751 = vsub.s32 %v1748, %v1750
    %v1752 = vrot.slane %v1407, %v1751
    %v1754 = vunpack.c.l.s4 1983009808
    %v1755 = vunpack.c.0.s8 %v1754
    %v1756 = vlaneseq
    %v1757 = vshrl.u32 %v1756, 7
    %v1758 = vsub.s32 %v1755, %v1757
    %v1759 = vrot.slane %v1745, %v1758
    %v1760 = vcombine.high %v1752, %v1752
    %v1761 = vcombine.high %v1759, %v1759
    %v1762 = vcombine.high %v1408, %v1408
    %v1764 = vunpack.c.l.s4 1983009808
    %v1765 = vunpack.c.0.s8 %v1764
    %v1766 = vlaneseq
    %v1767 = vshrl.u32 %v1766, 7
    %v1768 = vsub.s32 %v1765, %v1767
    %v1769 = vrot.slane %v1408, %v1768
    %v1771 = vunpack.c.l.s4 1983009808
    %v1772 = vunpack.c.0.s8 %v1771
    %v1773 = vlaneseq
    %v1774 = vshrl.u32 %v1773, 7
    %v1775 = vsub.s32 %v1772, %v1774
    %v1776 = vrot.slane %v1762, %v1775
    %v1777 = vcombine.high %v1769, %v1769
    %v1778 = vcombine.high %v1776, %v1776
    %v1779 = vcombine.high %v1409, %v1409
    %v1781 = vunpack.c.l.s4 1983009808
    %v1782 = vunpack.c.0.s8 %v1781
    %v1783 = vlaneseq
    %v1784 = vshrl.u32 %v1783, 7
    %v1785 = vsub.s32 %v1782, %v1784
    %v1786 = vrot.slane %v1409, %v1785
    %v1788 = vunpack.c.l.s4 1983009808
    %v1789 = vunpack.c.0.s8 %v1788
    %v1790 = vlaneseq
    %v1791 = vshrl.u32 %v1790, 7
    %v1792 = vsub.s32 %v1789, %v1791
    %v1793 = vrot.slane %v1779, %v1792
    %v1794 = vcombine.high %v1786, %v1786
    %v1795 = vcombine.high %v1793, %v1793
    %v1796 = vcombine.high %v1410, %v1410
    %v1798 = vunpack.c.l.s4 1983009808
    %v1799 = vunpack.c.0.s8 %v1798
    %v1800 = vlaneseq
    %v1801 = vshrl.u32 %v1800, 7
    %v1802 = vsub.s32 %v1799, %v1801
    %v1803 = vrot.slane %v1410, %v1802
    %v1805 = vunpack.c.l.s4 1983009808
    %v1806 = vunpack.c.0.s8 %v1805
    %v1807 = vlaneseq
    %v1808 = vshrl.u32 %v1807, 7
    %v1809 = vsub.s32 %v1806, %v1808
    %v1810 = vrot.slane %v1796, %v1809
    %v1811 = vcombine.high %v1803, %v1803
    %v1812 = vcombine.high %v1810, %v1810
    %v1813 = vcombine.high %v1411, %v1411
    %v1815 = vunpack.c.l.s4 1983009808
    %v1816 = vunpack.c.0.s8 %v1815
    %v1817 = vlaneseq
    %v1818 = vshrl.u32 %v1817, 7
    %v1819 = vsub.s32 %v1816, %v1818
    %v1820 = vrot.slane %v1411, %v1819
    %v1822 = vunpack.c.l.s4 1983009808
    %v1823 = vunpack.c.0.s8 %v1822
    %v1824 = vlaneseq
    %v1825 = vshrl.u32 %v1824, 7
    %v1826 = vsub.s32 %v1823, %v1825
    %v1827 = vrot.slane %v1813, %v1826
    %v1828 = vcombine.high %v1820, %v1820
    %v1829 = vcombine.high %v1827, %v1827
    %v1830 = vcombine.high %v1412, %v1412
    %v1832 = vunpack.c.l.s4 1983009808
    %v1833 = vunpack.c.0.s8 %v1832
    %v1834 = vlaneseq
    %v1835 = vshrl.u32 %v1834, 7
    %v1836 = vsub.s32 %v1833, %v1835
    %v1837 = vrot.slane %v1412, %v1836
    %v1839 = vunpack.c.l.s4 1983009808
    %v1840 = vunpack.c.0.s8 %v1839
    %v1841 = vlaneseq
    %v1842 = vshrl.u32 %v1841, 7
    %v1843 = vsub.s32 %v1840, %v1842
    %v1844 = vrot.slane %v1830, %v1843
    %v1845 = vcombine.high %v1837, %v1837
    %v1846 = vcombine.high %v1844, %v1844
    %v1847 = vcombine.high %v1413, %v1413
    %v1849 = vunpack.c.l.s4 1983009808
    %v1850 = vunpack.c.0.s8 %v1849
    %v1851 = vlaneseq
    %v1852 = vshrl.u32 %v1851, 7
    %v1853 = vsub.s32 %v1850, %v1852
    %v1854 = vrot.slane %v1413, %v1853
    %v1856 = vunpack.c.l.s4 1983009808
    %v1857 = vunpack.c.0.s8 %v1856
    %v1858 = vlaneseq
    %v1859 = vshrl.u32 %v1858, 7
    %v1860 = vsub.s32 %v1857, %v1859
    %v1861 = vrot.slane %v1847, %v1860
    %v1862 = vcombine.high %v1854, %v1854
    %v1863 = vcombine.high %v1861, %v1861
    %v1864 = vcombine.high %v1414, %v1414
    %v1866 = vunpack.c.l.s4 1983009808
    %v1867 = vunpack.c.0.s8 %v1866
    %v1868 = vlaneseq
    %v1869 = vshrl.u32 %v1868, 7
    %v1870 = vsub.s32 %v1867, %v1869
    %v1871 = vrot.slane %v1414, %v1870
    %v1873 = vunpack.c.l.s4 1983009808
    %v1874 = vunpack.c.0.s8 %v1873
    %v1875 = vlaneseq
    %v1876 = vshrl.u32 %v1875, 7
    %v1877 = vsub.s32 %v1874, %v1876
    %v1878 = vrot.slane %v1864, %v1877
    %v1879 = vcombine.high %v1871, %v1871
    %v1880 = vcombine.high %v1878, %v1878
    %v1881 = vcombine.high %v1415, %v1415
    %v1883 = vunpack.c.l.s4 1983009808
    %v1884 = vunpack.c.0.s8 %v1883
    %v1885 = vlaneseq
    %v1886 = vshrl.u32 %v1885, 7
    %v1887 = vsub.s32 %v1884, %v1886
    %v1888 = vrot.slane %v1415, %v1887
    %v1890 = vunpack.c.l.s4 1983009808
    %v1891 = vunpack.c.0.s8 %v1890
    %v1892 = vlaneseq
    %v1893 = vshrl.u32 %v1892, 7
    %v1894 = vsub.s32 %v1891, %v1893
    %v1895 = vrot.slane %v1881, %v1894
    %v1896 = vcombine.high %v1888, %v1888
    %v1897 = vcombine.high %v1895, %v1895
    %v1898 = vcombine.high %v1416, %v1416
    %v1900 = vunpack.c.l.s4 1983009808
    %v1901 = vunpack.c.0.s8 %v1900
    %v1902 = vlaneseq
    %v1903 = vshrl.u32 %v1902, 7
    %v1904 = vsub.s32 %v1901, %v1903
    %v1905 = vrot.slane %v1416, %v1904
    %v1907 = vunpack.c.l.s4 1983009808
    %v1908 = vunpack.c.0.s8 %v1907
    %v1909 = vlaneseq
    %v1910 = vshrl.u32 %v1909, 7
    %v1911 = vsub.s32 %v1908, %v1910
    %v1912 = vrot.slane %v1898, %v1911
    %v1913 = vcombine.high %v1905, %v1905
    %v1914 = vcombine.high %v1912, %v1912
    %v1915 = vcombine.high %v1417, %v1417
    %v1917 = vunpack.c.l.s4 1983009808
    %v1918 = vunpack.c.0.s8 %v1917
    %v1919 = vlaneseq
    %v1920 = vshrl.u32 %v1919, 7
    %v1921 = vsub.s32 %v1918, %v1920
    %v1922 = vrot.slane %v1417, %v1921
    %v1924 = vunpack.c.l.s4 1983009808
    %v1925 = vunpack.c.0.s8 %v1924
    %v1926 = vlaneseq
    %v1927 = vshrl.u32 %v1926, 7
    %v1928 = vsub.s32 %v1925, %v1927
    %v1929 = vrot.slane %v1915, %v1928
    %v1930 = vcombine.high %v1922, %v1922
    %v1931 = vcombine.high %v1929, %v1929
    %v1932 = vcombine.high %v1418, %v1418
    %v1934 = vunpack.c.l.s4 1983009808
    %v1935 = vunpack.c.0.s8 %v1934
    %v1936 = vlaneseq
    %v1937 = vshrl.u32 %v1936, 7
    %v1938 = vsub.s32 %v1935, %v1937
    %v1939 = vrot.slane %v1418, %v1938
    %v1941 = vunpack.c.l.s4 1983009808
    %v1942 = vunpack.c.0.s8 %v1941
    %v1943 = vlaneseq
    %v1944 = vshrl.u32 %v1943, 7
    %v1945 = vsub.s32 %v1942, %v1944
    %v1946 = vrot.slane %v1932, %v1945
    %v1947 = vcombine.high %v1939, %v1939
    %v1948 = vcombine.high %v1946, %v1946
    %v1949 = vcombine.high %v1419, %v1419
    %v1951 = vunpack.c.l.s4 1983009808
    %v1952 = vunpack.c.0.s8 %v1951
    %v1953 = vlaneseq
    %v1954 = vshrl.u32 %v1953, 7
    %v1955 = vsub.s32 %v1952, %v1954
    %v1956 = vrot.slane %v1419, %v1955
    %v1958 = vunpack.c.l.s4 1983009808
    %v1959 = vunpack.c.0.s8 %v1958
    %v1960 = vlaneseq
    %v1961 = vshrl.u32 %v1960, 7
    %v1962 = vsub.s32 %v1959, %v1961
    %v1963 = vrot.slane %v1949, %v1962
    %v1964 = vcombine.high %v1956, %v1956
    %v1965 = vcombine.high %v1963, %v1963
    %v1966 = vcombine.high %v1420, %v1420
    %v1968 = vunpack.c.l.s4 1983009808
    %v1969 = vunpack.c.0.s8 %v1968
    %v1970 = vlaneseq
    %v1971 = vshrl.u32 %v1970, 7
    %v1972 = vsub.s32 %v1969, %v1971
    %v1973 = vrot.slane %v1420, %v1972
    %v1975 = vunpack.c.l.s4 1983009808
    %v1976 = vunpack.c.0.s8 %v1975
    %v1977 = vlaneseq
    %v1978 = vshrl.u32 %v1977, 7
    %v1979 = vsub.s32 %v1976, %v1978
    %v1980 = vrot.slane %v1966, %v1979
    %v1981 = vcombine.high %v1973, %v1973
    %v1982 = vcombine.high %v1980, %v1980
    %v1983 = vcombine.high %v1421, %v1421
    %v1985 = vunpack.c.l.s4 1983009808
    %v1986 = vunpack.c.0.s8 %v1985
    %v1987 = vlaneseq
    %v1988 = vshrl.u32 %v1987, 7
    %v1989 = vsub.s32 %v1986, %v1988
    %v1990 = vrot.slane %v1421, %v1989
    %v1992 = vunpack.c.l.s4 1983009808
    %v1993 = vunpack.c.0.s8 %v1992
    %v1994 = vlaneseq
    %v1995 = vshrl.u32 %v1994, 7
    %v1996 = vsub.s32 %v1993, %v1995
    %v1997 = vrot.slane %v1983, %v1996
    %v1998 = vcombine.high %v1990, %v1990
    %v1999 = vcombine.high %v1997, %v1997
    %v2000 = vcombine.high %v1422, %v1422
    %v2002 = vunpack.c.l.s4 1983009808
    %v2003 = vunpack.c.0.s8 %v2002
    %v2004 = vlaneseq
    %v2005 = vshrl.u32 %v2004, 7
    %v2006 = vsub.s32 %v2003, %v2005
    %v2007 = vrot.slane %v1422, %v2006
    %v2009 = vunpack.c.l.s4 1983009808
    %v2010 = vunpack.c.0.s8 %v2009
    %v2011 = vlaneseq
    %v2012 = vshrl.u32 %v2011, 7
    %v2013 = vsub.s32 %v2010, %v2012
    %v2014 = vrot.slane %v2000, %v2013
    %v2015 = vcombine.high %v2007, %v2007
    %v2016 = vcombine.high %v2014, %v2014
    %v2017 = vcombine.high %v1423, %v1423
    %v2019 = vunpack.c.l.s4 1983009808
    %v2020 = vunpack.c.0.s8 %v2019
    %v2021 = vlaneseq
    %v2022 = vshrl.u32 %v2021, 7
    %v2023 = vsub.s32 %v2020, %v2022
    %v2024 = vrot.slane %v1423, %v2023
    %v2026 = vunpack.c.l.s4 1983009808
    %v2027 = vunpack.c.0.s8 %v2026
    %v2028 = vlaneseq
    %v2029 = vshrl.u32 %v2028, 7
    %v2030 = vsub.s32 %v2027, %v2029
    %v2031 = vrot.slane %v2017, %v2030
    %v2032 = vcombine.high %v2024, %v2024
    %v2033 = vcombine.high %v2031, %v2031
    %v2034 = vcombine.high %v1424, %v1424
    %v2036 = vunpack.c.l.s4 1983009808
    %v2037 = vunpack.c.0.s8 %v2036
    %v2038 = vlaneseq
    %v2039 = vshrl.u32 %v2038, 7
    %v2040 = vsub.s32 %v2037, %v2039
    %v2041 = vrot.slane %v1424, %v2040
    %v2043 = vunpack.c.l.s4 1983009808
    %v2044 = vunpack.c.0.s8 %v2043
    %v2045 = vlaneseq
    %v2046 = vshrl.u32 %v2045, 7
    %v2047 = vsub.s32 %v2044, %v2046
    %v2048 = vrot.slane %v2034, %v2047
    %v2049 = vcombine.high %v2041, %v2041
    %v2050 = vcombine.high %v2048, %v2048
    %v2051 = vcombine.high %v1425, %v1425
    %v2053 = vunpack.c.l.s4 1983009808
    %v2054 = vunpack.c.0.s8 %v2053
    %v2055 = vlaneseq
    %v2056 = vshrl.u32 %v2055, 7
    %v2057 = vsub.s32 %v2054, %v2056
    %v2058 = vrot.slane %v1425, %v2057
    %v2060 = vunpack.c.l.s4 1983009808
    %v2061 = vunpack.c.0.s8 %v2060
    %v2062 = vlaneseq
    %v2063 = vshrl.u32 %v2062, 7
    %v2064 = vsub.s32 %v2061, %v2063
    %v2065 = vrot.slane %v2051, %v2064
    %v2066 = vcombine.high %v2058, %v2058
    %v2067 = vcombine.high %v2065, %v2065
    %v2068 = vcombine.high %v1426, %v1426
    %v2070 = vunpack.c.l.s4 1983009808
    %v2071 = vunpack.c.0.s8 %v2070
    %v2072 = vlaneseq
    %v2073 = vshrl.u32 %v2072, 7
    %v2074 = vsub.s32 %v2071, %v2073
    %v2075 = vrot.slane %v1426, %v2074
    %v2077 = vunpack.c.l.s4 1983009808
    %v2078 = vunpack.c.0.s8 %v2077
    %v2079 = vlaneseq
    %v2080 = vshrl.u32 %v2079, 7
    %v2081 = vsub.s32 %v2078, %v2080
    %v2082 = vrot.slane %v2068, %v2081
    %v2083 = vcombine.high %v2075, %v2075
    %v2084 = vcombine.high %v2082, %v2082
    %v2085 = vcombine.high %v1427, %v1427
    %v2087 = vunpack.c.l.s4 1983009808
    %v2088 = vunpack.c.0.s8 %v2087
    %v2089 = vlaneseq
    %v2090 = vshrl.u32 %v2089, 7
    %v2091 = vsub.s32 %v2088, %v2090
    %v2092 = vrot.slane %v1427, %v2091
    %v2094 = vunpack.c.l.s4 1983009808
    %v2095 = vunpack.c.0.s8 %v2094
    %v2096 = vlaneseq
    %v2097 = vshrl.u32 %v2096, 7
    %v2098 = vsub.s32 %v2095, %v2097
    %v2099 = vrot.slane %v2085, %v2098
    %v2100 = vcombine.high %v2092, %v2092
    %v2101 = vcombine.high %v2099, %v2099
    %v2102 = vcombine.high %v1428, %v1428
    %v2104 = vunpack.c.l.s4 1983009808
    %v2105 = vunpack.c.0.s8 %v2104
    %v2106 = vlaneseq
    %v2107 = vshrl.u32 %v2106, 7
    %v2108 = vsub.s32 %v2105, %v2107
    %v2109 = vrot.slane %v1428, %v2108
    %v2111 = vunpack.c.l.s4 1983009808
    %v2112 = vunpack.c.0.s8 %v2111
    %v2113 = vlaneseq
    %v2114 = vshrl.u32 %v2113, 7
    %v2115 = vsub.s32 %v2112, %v2114
    %v2116 = vrot.slane %v2102, %v2115
    %v2117 = vcombine.high %v2109, %v2109
    %v2118 = vcombine.high %v2116, %v2116
    %v2119 = vcombine.high %v1429, %v1429
    %v2121 = vunpack.c.l.s4 1983009808
    %v2122 = vunpack.c.0.s8 %v2121
    %v2123 = vlaneseq
    %v2124 = vshrl.u32 %v2123, 7
    %v2125 = vsub.s32 %v2122, %v2124
    %v2126 = vrot.slane %v1429, %v2125
    %v2128 = vunpack.c.l.s4 1983009808
    %v2129 = vunpack.c.0.s8 %v2128
    %v2130 = vlaneseq
    %v2131 = vshrl.u32 %v2130, 7
    %v2132 = vsub.s32 %v2129, %v2131
    %v2133 = vrot.slane %v2119, %v2132
    %v2134 = vcombine.high %v2126, %v2126
    %v2135 = vcombine.high %v2133, %v2133
    %v2136 = vcombine.high %v1430, %v1430
    %v2138 = vunpack.c.l.s4 1983009808
    %v2139 = vunpack.c.0.s8 %v2138
    %v2140 = vlaneseq
    %v2141 = vshrl.u32 %v2140, 7
    %v2142 = vsub.s32 %v2139, %v2141
    %v2143 = vrot.slane %v1430, %v2142
    %v2145 = vunpack.c.l.s4 1983009808
    %v2146 = vunpack.c.0.s8 %v2145
    %v2147 = vlaneseq
    %v2148 = vshrl.u32 %v2147, 7
    %v2149 = vsub.s32 %v2146, %v2148
    %v2150 = vrot.slane %v2136, %v2149
    %v2151 = vcombine.high %v2143, %v2143
    %v2152 = vcombine.high %v2150, %v2150
    %v2153 = vcombine.high %v1431, %v1431
    %v2155 = vunpack.c.l.s4 1983009808
    %v2156 = vunpack.c.0.s8 %v2155
    %v2157 = vlaneseq
    %v2158 = vshrl.u32 %v2157, 7
    %v2159 = vsub.s32 %v2156, %v2158
    %v2160 = vrot.slane %v1431, %v2159
    %v2162 = vunpack.c.l.s4 1983009808
    %v2163 = vunpack.c.0.s8 %v2162
    %v2164 = vlaneseq
    %v2165 = vshrl.u32 %v2164, 7
    %v2166 = vsub.s32 %v2163, %v2165
    %v2167 = vrot.slane %v2153, %v2166
    %v2168 = vcombine.high %v2160, %v2160
    %v2169 = vcombine.high %v2167, %v2167
    %v2170 = vcombine.high %v1432, %v1432
    %v2172 = vunpack.c.l.s4 1983009808
    %v2173 = vunpack.c.0.s8 %v2172
    %v2174 = vlaneseq
    %v2175 = vshrl.u32 %v2174, 7
    %v2176 = vsub.s32 %v2173, %v2175
    %v2177 = vrot.slane %v1432, %v2176
    %v2179 = vunpack.c.l.s4 1983009808
    %v2180 = vunpack.c.0.s8 %v2179
    %v2181 = vlaneseq
    %v2182 = vshrl.u32 %v2181, 7
    %v2183 = vsub.s32 %v2180, %v2182
    %v2184 = vrot.slane %v2170, %v2183
    %v2185 = vcombine.high %v2177, %v2177
    %v2186 = vcombine.high %v2184, %v2184
    %v2187 = vcombine.high %v1433, %v1433
    %v2189 = vunpack.c.l.s4 1983009808
    %v2190 = vunpack.c.0.s8 %v2189
    %v2191 = vlaneseq
    %v2192 = vshrl.u32 %v2191, 7
    %v2193 = vsub.s32 %v2190, %v2192
    %v2194 = vrot.slane %v1433, %v2193
    %v2196 = vunpack.c.l.s4 1983009808
    %v2197 = vunpack.c.0.s8 %v2196
    %v2198 = vlaneseq
    %v2199 = vshrl.u32 %v2198, 7
    %v2200 = vsub.s32 %v2197, %v2199
    %v2201 = vrot.slane %v2187, %v2200
    %v2202 = vcombine.high %v2194, %v2194
    %v2203 = vcombine.high %v2201, %v2201
    %v2204 = vcombine.high %v1434, %v1434
    %v2206 = vunpack.c.l.s4 1983009808
    %v2207 = vunpack.c.0.s8 %v2206
    %v2208 = vlaneseq
    %v2209 = vshrl.u32 %v2208, 7
    %v2210 = vsub.s32 %v2207, %v2209
    %v2211 = vrot.slane %v1434, %v2210
    %v2213 = vunpack.c.l.s4 1983009808
    %v2214 = vunpack.c.0.s8 %v2213
    %v2215 = vlaneseq
    %v2216 = vshrl.u32 %v2215, 7
    %v2217 = vsub.s32 %v2214, %v2216
    %v2218 = vrot.slane %v2204, %v2217
    %v2219 = vcombine.high %v2211, %v2211
    %v2220 = vcombine.high %v2218, %v2218
    %v2221 = vcombine.high %v1435, %v1435
    %v2223 = vunpack.c.l.s4 1983009808
    %v2224 = vunpack.c.0.s8 %v2223
    %v2225 = vlaneseq
    %v2226 = vshrl.u32 %v2225, 7
    %v2227 = vsub.s32 %v2224, %v2226
    %v2228 = vrot.slane %v1435, %v2227
    %v2230 = vunpack.c.l.s4 1983009808
    %v2231 = vunpack.c.0.s8 %v2230
    %v2232 = vlaneseq
    %v2233 = vshrl.u32 %v2232, 7
    %v2234 = vsub.s32 %v2231, %v2233
    %v2235 = vrot.slane %v2221, %v2234
    %v2236 = vcombine.high %v2228, %v2228
    %v2237 = vcombine.high %v2235, %v2235
    %v2238 = vcombine.high %v1436, %v1436
    %v2240 = vunpack.c.l.s4 1983009808
    %v2241 = vunpack.c.0.s8 %v2240
    %v2242 = vlaneseq
    %v2243 = vshrl.u32 %v2242, 7
    %v2244 = vsub.s32 %v2241, %v2243
    %v2245 = vrot.slane %v1436, %v2244
    %v2247 = vunpack.c.l.s4 1983009808
    %v2248 = vunpack.c.0.s8 %v2247
    %v2249 = vlaneseq
    %v2250 = vshrl.u32 %v2249, 7
    %v2251 = vsub.s32 %v2248, %v2250
    %v2252 = vrot.slane %v2238, %v2251
    %v2253 = vcombine.high %v2245, %v2245
    %v2254 = vcombine.high %v2252, %v2252
    %v2255 = vcombine.high %v1437, %v1437
    %v2257 = vunpack.c.l.s4 1983009808
    %v2258 = vunpack.c.0.s8 %v2257
    %v2259 = vlaneseq
    %v2260 = vshrl.u32 %v2259, 7
    %v2261 = vsub.s32 %v2258, %v2260
    %v2262 = vrot.slane %v1437, %v2261
    %v2264 = vunpack.c.l.s4 1983009808
    %v2265 = vunpack.c.0.s8 %v2264
    %v2266 = vlaneseq
    %v2267 = vshrl.u32 %v2266, 7
    %v2268 = vsub.s32 %v2265, %v2267
    %v2269 = vrot.slane %v2255, %v2268
    %v2270 = vcombine.high %v2262, %v2262
    %v2271 = vcombine.high %v2269, %v2269
    %v2272 = vcombine.high %v1438, %v1438
    %v2274 = vunpack.c.l.s4 1983009808
    %v2275 = vunpack.c.0.s8 %v2274
    %v2276 = vlaneseq
    %v2277 = vshrl.u32 %v2276, 7
    %v2278 = vsub.s32 %v2275, %v2277
    %v2279 = vrot.slane %v1438, %v2278
    %v2281 = vunpack.c.l.s4 1983009808
    %v2282 = vunpack.c.0.s8 %v2281
    %v2283 = vlaneseq
    %v2284 = vshrl.u32 %v2283, 7
    %v2285 = vsub.s32 %v2282, %v2284
    %v2286 = vrot.slane %v2272, %v2285
    %v2287 = vcombine.high %v2279, %v2279
    %v2288 = vcombine.high %v2286, %v2286
    %v2289 = vcombine.high %v1439, %v1439
    %v2291 = vunpack.c.l.s4 1983009808
    %v2292 = vunpack.c.0.s8 %v2291
    %v2293 = vlaneseq
    %v2294 = vshrl.u32 %v2293, 7
    %v2295 = vsub.s32 %v2292, %v2294
    %v2296 = vrot.slane %v1439, %v2295
    %v2298 = vunpack.c.l.s4 1983009808
    %v2299 = vunpack.c.0.s8 %v2298
    %v2300 = vlaneseq
    %v2301 = vshrl.u32 %v2300, 7
    %v2302 = vsub.s32 %v2299, %v2301
    %v2303 = vrot.slane %v2289, %v2302
    %v2304 = vcombine.high %v2296, %v2296
    %v2305 = vcombine.high %v2303, %v2303
    %v2306 = vcombine.high %v1440, %v1440
    %v2308 = vunpack.c.l.s4 1983009808
    %v2309 = vunpack.c.0.s8 %v2308
    %v2310 = vlaneseq
    %v2311 = vshrl.u32 %v2310, 7
    %v2312 = vsub.s32 %v2309, %v2311
    %v2313 = vrot.slane %v1440, %v2312
    %v2315 = vunpack.c.l.s4 1983009808
    %v2316 = vunpack.c.0.s8 %v2315
    %v2317 = vlaneseq
    %v2318 = vshrl.u32 %v2317, 7
    %v2319 = vsub.s32 %v2316, %v2318
    %v2320 = vrot.slane %v2306, %v2319
    %v2321 = vcombine.high %v2313, %v2313
    %v2322 = vcombine.high %v2320, %v2320
    %v2323 = vcombine.high %v1441, %v1441
    %v2325 = vunpack.c.l.s4 1983009808
    %v2326 = vunpack.c.0.s8 %v2325
    %v2327 = vlaneseq
    %v2328 = vshrl.u32 %v2327, 7
    %v2329 = vsub.s32 %v2326, %v2328
    %v2330 = vrot.slane %v1441, %v2329
    %v2332 = vunpack.c.l.s4 1983009808
    %v2333 = vunpack.c.0.s8 %v2332
    %v2334 = vlaneseq
    %v2335 = vshrl.u32 %v2334, 7
    %v2336 = vsub.s32 %v2333, %v2335
    %v2337 = vrot.slane %v2323, %v2336
    %v2338 = vcombine.high %v2330, %v2330
    %v2339 = vcombine.high %v2337, %v2337
    %v2340 = vcombine.high %v1442, %v1442
    %v2342 = vunpack.c.l.s4 1983009808
    %v2343 = vunpack.c.0.s8 %v2342
    %v2344 = vlaneseq
    %v2345 = vshrl.u32 %v2344, 7
    %v2346 = vsub.s32 %v2343, %v2345
    %v2347 = vrot.slane %v1442, %v2346
    %v2349 = vunpack.c.l.s4 1983009808
    %v2350 = vunpack.c.0.s8 %v2349
    %v2351 = vlaneseq
    %v2352 = vshrl.u32 %v2351, 7
    %v2353 = vsub.s32 %v2350, %v2352
    %v2354 = vrot.slane %v2340, %v2353
    %v2355 = vcombine.high %v2347, %v2347
    %v2356 = vcombine.high %v2354, %v2354
    %v2357 = vcombine.high %v1443, %v1443
    %v2359 = vunpack.c.l.s4 1983009808
    %v2360 = vunpack.c.0.s8 %v2359
    %v2361 = vlaneseq
    %v2362 = vshrl.u32 %v2361, 7
    %v2363 = vsub.s32 %v2360, %v2362
    %v2364 = vrot.slane %v1443, %v2363
    %v2366 = vunpack.c.l.s4 1983009808
    %v2367 = vunpack.c.0.s8 %v2366
    %v2368 = vlaneseq
    %v2369 = vshrl.u32 %v2368, 7
    %v2370 = vsub.s32 %v2367, %v2369
    %v2371 = vrot.slane %v2357, %v2370
    %v2372 = vcombine.high %v2364, %v2364
    %v2373 = vcombine.high %v2371, %v2371
    %v2374 = vcombine.high %v1444, %v1444
    %v2376 = vunpack.c.l.s4 1983009808
    %v2377 = vunpack.c.0.s8 %v2376
    %v2378 = vlaneseq
    %v2379 = vshrl.u32 %v2378, 7
    %v2380 = vsub.s32 %v2377, %v2379
    %v2381 = vrot.slane %v1444, %v2380
    %v2383 = vunpack.c.l.s4 1983009808
    %v2384 = vunpack.c.0.s8 %v2383
    %v2385 = vlaneseq
    %v2386 = vshrl.u32 %v2385, 7
    %v2387 = vsub.s32 %v2384, %v2386
    %v2388 = vrot.slane %v2374, %v2387
    %v2389 = vcombine.high %v2381, %v2381
    %v2390 = vcombine.high %v2388, %v2388
    %v2391 = vcombine.high %v1445, %v1445
    %v2393 = vunpack.c.l.s4 1983009808
    %v2394 = vunpack.c.0.s8 %v2393
    %v2395 = vlaneseq
    %v2396 = vshrl.u32 %v2395, 7
    %v2397 = vsub.s32 %v2394, %v2396
    %v2398 = vrot.slane %v1445, %v2397
    %v2400 = vunpack.c.l.s4 1983009808
    %v2401 = vunpack.c.0.s8 %v2400
    %v2402 = vlaneseq
    %v2403 = vshrl.u32 %v2402, 7
    %v2404 = vsub.s32 %v2401, %v2403
    %v2405 = vrot.slane %v2391, %v2404
    %v2406 = vcombine.high %v2398, %v2398
    %v2407 = vcombine.high %v2405, %v2405
    %v2408 = vcombine.high %v1446, %v1446
    %v2410 = vunpack.c.l.s4 1983009808
    %v2411 = vunpack.c.0.s8 %v2410
    %v2412 = vlaneseq
    %v2413 = vshrl.u32 %v2412, 7
    %v2414 = vsub.s32 %v2411, %v2413
    %v2415 = vrot.slane %v1446, %v2414
    %v2417 = vunpack.c.l.s4 1983009808
    %v2418 = vunpack.c.0.s8 %v2417
    %v2419 = vlaneseq
    %v2420 = vshrl.u32 %v2419, 7
    %v2421 = vsub.s32 %v2418, %v2420
    %v2422 = vrot.slane %v2408, %v2421
    %v2423 = vcombine.high %v2415, %v2415
    %v2424 = vcombine.high %v2422, %v2422
    %v2425 = vcombine.high %v1447, %v1447
    %v2427 = vunpack.c.l.s4 1983009808
    %v2428 = vunpack.c.0.s8 %v2427
    %v2429 = vlaneseq
    %v2430 = vshrl.u32 %v2429, 7
    %v2431 = vsub.s32 %v2428, %v2430
    %v2432 = vrot.slane %v1447, %v2431
    %v2434 = vunpack.c.l.s4 1983009808
    %v2435 = vunpack.c.0.s8 %v2434
    %v2436 = vlaneseq
    %v2437 = vshrl.u32 %v2436, 7
    %v2438 = vsub.s32 %v2435, %v2437
    %v2439 = vrot.slane %v2425, %v2438
    %v2440 = vcombine.high %v2432, %v2432
    %v2441 = vcombine.high %v2439, %v2439
    %v2442 = vcombine.high %v1448, %v1448
    %v2444 = vunpack.c.l.s4 1983009808
    %v2445 = vunpack.c.0.s8 %v2444
    %v2446 = vlaneseq
    %v2447 = vshrl.u32 %v2446, 7
    %v2448 = vsub.s32 %v2445, %v2447
    %v2449 = vrot.slane %v1448, %v2448
    %v2451 = vunpack.c.l.s4 1983009808
    %v2452 = vunpack.c.0.s8 %v2451
    %v2453 = vlaneseq
    %v2454 = vshrl.u32 %v2453, 7
    %v2455 = vsub.s32 %v2452, %v2454
    %v2456 = vrot.slane %v2442, %v2455
    %v2457 = vcombine.high %v2449, %v2449
    %v2458 = vcombine.high %v2456, %v2456
    %v2459 = vcombine.high %v1449, %v1449
    %v2461 = vunpack.c.l.s4 1983009808
    %v2462 = vunpack.c.0.s8 %v2461
    %v2463 = vlaneseq
    %v2464 = vshrl.u32 %v2463, 7
    %v2465 = vsub.s32 %v2462, %v2464
    %v2466 = vrot.slane %v1449, %v2465
    %v2468 = vunpack.c.l.s4 1983009808
    %v2469 = vunpack.c.0.s8 %v2468
    %v2470 = vlaneseq
    %v2471 = vshrl.u32 %v2470, 7
    %v2472 = vsub.s32 %v2469, %v2471
    %v2473 = vrot.slane %v2459, %v2472
    %v2474 = vcombine.high %v2466, %v2466
    %v2475 = vcombine.high %v2473, %v2473
    %v2476 = vcombine.high %v1450, %v1450
    %v2478 = vunpack.c.l.s4 1983009808
    %v2479 = vunpack.c.0.s8 %v2478
    %v2480 = vlaneseq
    %v2481 = vshrl.u32 %v2480, 7
    %v2482 = vsub.s32 %v2479, %v2481
    %v2483 = vrot.slane %v1450, %v2482
    %v2485 = vunpack.c.l.s4 1983009808
    %v2486 = vunpack.c.0.s8 %v2485
    %v2487 = vlaneseq
    %v2488 = vshrl.u32 %v2487, 7
    %v2489 = vsub.s32 %v2486, %v2488
    %v2490 = vrot.slane %v2476, %v2489
    %v2491 = vcombine.high %v2483, %v2483
    %v2492 = vcombine.high %v2490, %v2490
    %v2493 = vcombine.high %v1451, %v1451
    %v2495 = vunpack.c.l.s4 1983009808
    %v2496 = vunpack.c.0.s8 %v2495
    %v2497 = vlaneseq
    %v2498 = vshrl.u32 %v2497, 7
    %v2499 = vsub.s32 %v2496, %v2498
    %v2500 = vrot.slane %v1451, %v2499
    %v2502 = vunpack.c.l.s4 1983009808
    %v2503 = vunpack.c.0.s8 %v2502
    %v2504 = vlaneseq
    %v2505 = vshrl.u32 %v2504, 7
    %v2506 = vsub.s32 %v2503, %v2505
    %v2507 = vrot.slane %v2493, %v2506
    %v2508 = vcombine.high %v2500, %v2500
    %v2509 = vcombine.high %v2507, %v2507
    %v2510 = vcombine.high %v1452, %v1452
    %v2512 = vunpack.c.l.s4 1983009808
    %v2513 = vunpack.c.0.s8 %v2512
    %v2514 = vlaneseq
    %v2515 = vshrl.u32 %v2514, 7
    %v2516 = vsub.s32 %v2513, %v2515
    %v2517 = vrot.slane %v1452, %v2516
    %v2519 = vunpack.c.l.s4 1983009808
    %v2520 = vunpack.c.0.s8 %v2519
    %v2521 = vlaneseq
    %v2522 = vshrl.u32 %v2521, 7
    %v2523 = vsub.s32 %v2520, %v2522
    %v2524 = vrot.slane %v2510, %v2523
    %v2525 = vcombine.high %v2517, %v2517
    %v2526 = vcombine.high %v2524, %v2524
    %v2527 = vcombine.high %v1453, %v1453
    %v2529 = vunpack.c.l.s4 1983009808
    %v2530 = vunpack.c.0.s8 %v2529
    %v2531 = vlaneseq
    %v2532 = vshrl.u32 %v2531, 7
    %v2533 = vsub.s32 %v2530, %v2532
    %v2534 = vrot.slane %v1453, %v2533
    %v2536 = vunpack.c.l.s4 1983009808
    %v2537 = vunpack.c.0.s8 %v2536
    %v2538 = vlaneseq
    %v2539 = vshrl.u32 %v2538, 7
    %v2540 = vsub.s32 %v2537, %v2539
    %v2541 = vrot.slane %v2527, %v2540
    %v2542 = vcombine.high %v2534, %v2534
    %v2543 = vcombine.high %v2541, %v2541
    %v2544 = vcombine.high %v1454, %v1454
    %v2546 = vunpack.c.l.s4 1983009808
    %v2547 = vunpack.c.0.s8 %v2546
    %v2548 = vlaneseq
    %v2549 = vshrl.u32 %v2548, 7
    %v2550 = vsub.s32 %v2547, %v2549
    %v2551 = vrot.slane %v1454, %v2550
    %v2553 = vunpack.c.l.s4 1983009808
    %v2554 = vunpack.c.0.s8 %v2553
    %v2555 = vlaneseq
    %v2556 = vshrl.u32 %v2555, 7
    %v2557 = vsub.s32 %v2554, %v2556
    %v2558 = vrot.slane %v2544, %v2557
    %v2559 = vcombine.high %v2551, %v2551
    %v2560 = vcombine.high %v2558, %v2558
    %v2561 = vcombine.high %v1455, %v1455
    %v2563 = vunpack.c.l.s4 1983009808
    %v2564 = vunpack.c.0.s8 %v2563
    %v2565 = vlaneseq
    %v2566 = vshrl.u32 %v2565, 7
    %v2567 = vsub.s32 %v2564, %v2566
    %v2568 = vrot.slane %v1455, %v2567
    %v2570 = vunpack.c.l.s4 1983009808
    %v2571 = vunpack.c.0.s8 %v2570
    %v2572 = vlaneseq
    %v2573 = vshrl.u32 %v2572, 7
    %v2574 = vsub.s32 %v2571, %v2573
    %v2575 = vrot.slane %v2561, %v2574
    %v2576 = vcombine.high %v2568, %v2568
    %v2577 = vcombine.high %v2575, %v2575
    %v2578 = vcombine.high %v1456, %v1456
    %v2580 = vunpack.c.l.s4 1983009808
    %v2581 = vunpack.c.0.s8 %v2580
    %v2582 = vlaneseq
    %v2583 = vshrl.u32 %v2582, 7
    %v2584 = vsub.s32 %v2581, %v2583
    %v2585 = vrot.slane %v1456, %v2584
    %v2587 = vunpack.c.l.s4 1983009808
    %v2588 = vunpack.c.0.s8 %v2587
    %v2589 = vlaneseq
    %v2590 = vshrl.u32 %v2589, 7
    %v2591 = vsub.s32 %v2588, %v2590
    %v2592 = vrot.slane %v2578, %v2591
    %v2593 = vcombine.high %v2585, %v2585
    %v2594 = vcombine.high %v2592, %v2592
    %v2595 = vcombine.high %v1457, %v1457
    %v2597 = vunpack.c.l.s4 1983009808
    %v2598 = vunpack.c.0.s8 %v2597
    %v2599 = vlaneseq
    %v2600 = vshrl.u32 %v2599, 7
    %v2601 = vsub.s32 %v2598, %v2600
    %v2602 = vrot.slane %v1457, %v2601
    %v2604 = vunpack.c.l.s4 1983009808
    %v2605 = vunpack.c.0.s8 %v2604
    %v2606 = vlaneseq
    %v2607 = vshrl.u32 %v2606, 7
    %v2608 = vsub.s32 %v2605, %v2607
    %v2609 = vrot.slane %v2595, %v2608
    %v2610 = vcombine.high %v2602, %v2602
    %v2611 = vcombine.high %v2609, %v2609
    %v2612 = vcombine.low %v1531, %v1539
    %v2613 = vcombine.low %v1538, %v1540
    %v2615 = vunpack.c.l.s4 1983009808
    %v2616 = vunpack.c.0.s8 %v2615
    %v2617 = vlaneseq
    %v2618 = vshrl.u32 %v2617, 7
    %v2619 = vsub.s32 %v2616, %v2618
    %v2620 = vrot.slane %v2612, %v2619
    %v2622 = vunpack.c.l.s4 1983009808
    %v2623 = vunpack.c.0.s8 %v2622
    %v2624 = vlaneseq
    %v2625 = vshrl.u32 %v2624, 7
    %v2626 = vsub.s32 %v2623, %v2625
    %v2627 = vrot.slane %v2613, %v2626
    %v2628 = vcombine.low %v2620, %v2627
    %v2629 = vcombine.low %v1548, %v1556
    %v2630 = vcombine.low %v1555, %v1557
    %v2632 = vunpack.c.l.s4 1983009808
    %v2633 = vunpack.c.0.s8 %v2632
    %v2634 = vlaneseq
    %v2635 = vshrl.u32 %v2634, 7
    %v2636 = vsub.s32 %v2633, %v2635
    %v2637 = vrot.slane %v2629, %v2636
    %v2639 = vunpack.c.l.s4 1983009808
    %v2640 = vunpack.c.0.s8 %v2639
    %v2641 = vlaneseq
    %v2642 = vshrl.u32 %v2641, 7
    %v2643 = vsub.s32 %v2640, %v2642
    %v2644 = vrot.slane %v2630, %v2643
    %v2645 = vcombine.low %v2637, %v2644
    %v2646 = vcombine.low %v1565, %v1573
    %v2647 = vcombine.low %v1572, %v1574
    %v2649 = vunpack.c.l.s4 1983009808
    %v2650 = vunpack.c.0.s8 %v2649
    %v2651 = vlaneseq
    %v2652 = vshrl.u32 %v2651, 7
    %v2653 = vsub.s32 %v2650, %v2652
    %v2654 = vrot.slane %v2646, %v2653
    %v2656 = vunpack.c.l.s4 1983009808
    %v2657 = vunpack.c.0.s8 %v2656
    %v2658 = vlaneseq
    %v2659 = vshrl.u32 %v2658, 7
    %v2660 = vsub.s32 %v2657, %v2659
    %v2661 = vrot.slane %v2647, %v2660
    %v2662 = vcombine.low %v2654, %v2661
    %v2663 = vcombine.low %v1582, %v1590
    %v2664 = vcombine.low %v1589, %v1591
    %v2666 = vunpack.c.l.s4 1983009808
    %v2667 = vunpack.c.0.s8 %v2666
    %v2668 = vlaneseq
    %v2669 = vshrl.u32 %v2668, 7
    %v2670 = vsub.s32 %v2667, %v2669
    %v2671 = vrot.slane %v2663, %v2670
    %v2673 = vunpack.c.l.s4 1983009808
    %v2674 = vunpack.c.0.s8 %v2673
    %v2675 = vlaneseq
    %v2676 = vshrl.u32 %v2675, 7
    %v2677 = vsub.s32 %v2674, %v2676
    %v2678 = vrot.slane %v2664, %v2677
    %v2679 = vcombine.low %v2671, %v2678
    %v2680 = vcombine.low %v1599, %v1607
    %v2681 = vcombine.low %v1606, %v1608
    %v2683 = vunpack.c.l.s4 1983009808
    %v2684 = vunpack.c.0.s8 %v2683
    %v2685 = vlaneseq
    %v2686 = vshrl.u32 %v2685, 7
    %v2687 = vsub.s32 %v2684, %v2686
    %v2688 = vrot.slane %v2680, %v2687
    %v2690 = vunpack.c.l.s4 1983009808
    %v2691 = vunpack.c.0.s8 %v2690
    %v2692 = vlaneseq
    %v2693 = vshrl.u32 %v2692, 7
    %v2694 = vsub.s32 %v2691, %v2693
    %v2695 = vrot.slane %v2681, %v2694
    %v2696 = vcombine.low %v2688, %v2695
    %v2697 = vcombine.low %v1616, %v1624
    %v2698 = vcombine.low %v1623, %v1625
    %v2700 = vunpack.c.l.s4 1983009808
    %v2701 = vunpack.c.0.s8 %v2700
    %v2702 = vlaneseq
    %v2703 = vshrl.u32 %v2702, 7
    %v2704 = vsub.s32 %v2701, %v2703
    %v2705 = vrot.slane %v2697, %v2704
    %v2707 = vunpack.c.l.s4 1983009808
    %v2708 = vunpack.c.0.s8 %v2707
    %v2709 = vlaneseq
    %v2710 = vshrl.u32 %v2709, 7
    %v2711 = vsub.s32 %v2708, %v2710
    %v2712 = vrot.slane %v2698, %v2711
    %v2713 = vcombine.low %v2705, %v2712
    %v2714 = vcombine.low %v1633, %v1641
    %v2715 = vcombine.low %v1640, %v1642
    %v2717 = vunpack.c.l.s4 1983009808
    %v2718 = vunpack.c.0.s8 %v2717
    %v2719 = vlaneseq
    %v2720 = vshrl.u32 %v2719, 7
    %v2721 = vsub.s32 %v2718, %v2720
    %v2722 = vrot.slane %v2714, %v2721
    %v2724 = vunpack.c.l.s4 1983009808
    %v2725 = vunpack.c.0.s8 %v2724
    %v2726 = vlaneseq
    %v2727 = vshrl.u32 %v2726, 7
    %v2728 = vsub.s32 %v2725, %v2727
    %v2729 = vrot.slane %v2715, %v2728
    %v2730 = vcombine.low %v2722, %v2729
    %v2731 = vcombine.low %v1650, %v1658
    %v2732 = vcombine.low %v1657, %v1659
    %v2734 = vunpack.c.l.s4 1983009808
    %v2735 = vunpack.c.0.s8 %v2734
    %v2736 = vlaneseq
    %v2737 = vshrl.u32 %v2736, 7
    %v2738 = vsub.s32 %v2735, %v2737
    %v2739 = vrot.slane %v2731, %v2738
    %v2741 = vunpack.c.l.s4 1983009808
    %v2742 = vunpack.c.0.s8 %v2741
    %v2743 = vlaneseq
    %v2744 = vshrl.u32 %v2743, 7
    %v2745 = vsub.s32 %v2742, %v2744
    %v2746 = vrot.slane %v2732, %v2745
    %v2747 = vcombine.low %v2739, %v2746
    %v2748 = vcombine.low %v1667, %v1675
    %v2749 = vcombine.low %v1674, %v1676
    %v2751 = vunpack.c.l.s4 1983009808
    %v2752 = vunpack.c.0.s8 %v2751
    %v2753 = vlaneseq
    %v2754 = vshrl.u32 %v2753, 7
    %v2755 = vsub.s32 %v2752, %v2754
    %v2756 = vrot.slane %v2748, %v2755
    %v2758 = vunpack.c.l.s4 1983009808
    %v2759 = vunpack.c.0.s8 %v2758
    %v2760 = vlaneseq
    %v2761 = vshrl.u32 %v2760, 7
    %v2762 = vsub.s32 %v2759, %v2761
    %v2763 = vrot.slane %v2749, %v2762
    %v2764 = vcombine.low %v2756, %v2763
    %v2765 = vcombine.low %v1684, %v1692
    %v2766 = vcombine.low %v1691, %v1693
    %v2768 = vunpack.c.l.s4 1983009808
    %v2769 = vunpack.c.0.s8 %v2768
    %v2770 = vlaneseq
    %v2771 = vshrl.u32 %v2770, 7
    %v2772 = vsub.s32 %v2769, %v2771
    %v2773 = vrot.slane %v2765, %v2772
    %v2775 = vunpack.c.l.s4 1983009808
    %v2776 = vunpack.c.0.s8 %v2775
    %v2777 = vlaneseq
    %v2778 = vshrl.u32 %v2777, 7
    %v2779 = vsub.s32 %v2776, %v2778
    %v2780 = vrot.slane %v2766, %v2779
    %v2781 = vcombine.low %v2773, %v2780
    %v2782 = vcombine.low %v1701, %v1709
    %v2783 = vcombine.low %v1708, %v1710
    %v2785 = vunpack.c.l.s4 1983009808
    %v2786 = vunpack.c.0.s8 %v2785
    %v2787 = vlaneseq
    %v2788 = vshrl.u32 %v2787, 7
    %v2789 = vsub.s32 %v2786, %v2788
    %v2790 = vrot.slane %v2782, %v2789
    %v2792 = vunpack.c.l.s4 1983009808
    %v2793 = vunpack.c.0.s8 %v2792
    %v2794 = vlaneseq
    %v2795 = vshrl.u32 %v2794, 7
    %v2796 = vsub.s32 %v2793, %v2795
    %v2797 = vrot.slane %v2783, %v2796
    %v2798 = vcombine.low %v2790, %v2797
    %v2799 = vcombine.low %v1718, %v1726
    %v2800 = vcombine.low %v1725, %v1727
    %v2802 = vunpack.c.l.s4 1983009808
    %v2803 = vunpack.c.0.s8 %v2802
    %v2804 = vlaneseq
    %v2805 = vshrl.u32 %v2804, 7
    %v2806 = vsub.s32 %v2803, %v2805
    %v2807 = vrot.slane %v2799, %v2806
    %v2809 = vunpack.c.l.s4 1983009808
    %v2810 = vunpack.c.0.s8 %v2809
    %v2811 = vlaneseq
    %v2812 = vshrl.u32 %v2811, 7
    %v2813 = vsub.s32 %v2810, %v2812
    %v2814 = vrot.slane %v2800, %v2813
    %v2815 = vcombine.low %v2807, %v2814
    %v2816 = vcombine.low %v1735, %v1743
    %v2817 = vcombine.low %v1742, %v1744
    %v2819 = vunpack.c.l.s4 1983009808
    %v2820 = vunpack.c.0.s8 %v2819
    %v2821 = vlaneseq
    %v2822 = vshrl.u32 %v2821, 7
    %v2823 = vsub.s32 %v2820, %v2822
    %v2824 = vrot.slane %v2816, %v2823
    %v2826 = vunpack.c.l.s4 1983009808
    %v2827 = vunpack.c.0.s8 %v2826
    %v2828 = vlaneseq
    %v2829 = vshrl.u32 %v2828, 7
    %v2830 = vsub.s32 %v2827, %v2829
    %v2831 = vrot.slane %v2817, %v2830
    %v2832 = vcombine.low %v2824, %v2831
    %v2833 = vcombine.low %v1752, %v1760
    %v2834 = vcombine.low %v1759, %v1761
    %v2836 = vunpack.c.l.s4 1983009808
    %v2837 = vunpack.c.0.s8 %v2836
    %v2838 = vlaneseq
    %v2839 = vshrl.u32 %v2838, 7
    %v2840 = vsub.s32 %v2837, %v2839
    %v2841 = vrot.slane %v2833, %v2840
    %v2843 = vunpack.c.l.s4 1983009808
    %v2844 = vunpack.c.0.s8 %v2843
    %v2845 = vlaneseq
    %v2846 = vshrl.u32 %v2845, 7
    %v2847 = vsub.s32 %v2844, %v2846
    %v2848 = vrot.slane %v2834, %v2847
    %v2849 = vcombine.low %v2841, %v2848
    %v2850 = vcombine.low %v1769, %v1777
    %v2851 = vcombine.low %v1776, %v1778
    %v2853 = vunpack.c.l.s4 1983009808
    %v2854 = vunpack.c.0.s8 %v2853
    %v2855 = vlaneseq
    %v2856 = vshrl.u32 %v2855, 7
    %v2857 = vsub.s32 %v2854, %v2856
    %v2858 = vrot.slane %v2850, %v2857
    %v2860 = vunpack.c.l.s4 1983009808
    %v2861 = vunpack.c.0.s8 %v2860
    %v2862 = vlaneseq
    %v2863 = vshrl.u32 %v2862, 7
    %v2864 = vsub.s32 %v2861, %v2863
    %v2865 = vrot.slane %v2851, %v2864
    %v2866 = vcombine.low %v2858, %v2865
    %v2867 = vcombine.low %v1786, %v1794
    %v2868 = vcombine.low %v1793, %v1795
    %v2870 = vunpack.c.l.s4 1983009808
    %v2871 = vunpack.c.0.s8 %v2870
    %v2872 = vlaneseq
    %v2873 = vshrl.u32 %v2872, 7
    %v2874 = vsub.s32 %v2871, %v2873
    %v2875 = vrot.slane %v2867, %v2874
    %v2877 = vunpack.c.l.s4 1983009808
    %v2878 = vunpack.c.0.s8 %v2877
    %v2879 = vlaneseq
    %v2880 = vshrl.u32 %v2879, 7
    %v2881 = vsub.s32 %v2878, %v2880
    %v2882 = vrot.slane %v2868, %v2881
    %v2883 = vcombine.low %v2875, %v2882
    %v2884 = vcombine.low %v1803, %v1811
    %v2885 = vcombine.low %v1810, %v1812
    %v2887 = vunpack.c.l.s4 1983009808
    %v2888 = vunpack.c.0.s8 %v2887
    %v2889 = vlaneseq
    %v2890 = vshrl.u32 %v2889, 7
    %v2891 = vsub.s32 %v2888, %v2890
    %v2892 = vrot.slane %v2884, %v2891
    %v2894 = vunpack.c.l.s4 1983009808
    %v2895 = vunpack.c.0.s8 %v2894
    %v2896 = vlaneseq
    %v2897 = vshrl.u32 %v2896, 7
    %v2898 = vsub.s32 %v2895, %v2897
    %v2899 = vrot.slane %v2885, %v2898
    %v2900 = vcombine.low %v2892, %v2899
    %v2901 = vcombine.low %v1820, %v1828
    %v2902 = vcombine.low %v1827, %v1829
    %v2904 = vunpack.c.l.s4 1983009808
    %v2905 = vunpack.c.0.s8 %v2904
    %v2906 = vlaneseq
    %v2907 = vshrl.u32 %v2906, 7
    %v2908 = vsub.s32 %v2905, %v2907
    %v2909 = vrot.slane %v2901, %v2908
    %v2911 = vunpack.c.l.s4 1983009808
    %v2912 = vunpack.c.0.s8 %v2911
    %v2913 = vlaneseq
    %v2914 = vshrl.u32 %v2913, 7
    %v2915 = vsub.s32 %v2912, %v2914
    %v2916 = vrot.slane %v2902, %v2915
    %v2917 = vcombine.low %v2909, %v2916
    %v2918 = vcombine.low %v1837, %v1845
    %v2919 = vcombine.low %v1844, %v1846
    %v2921 = vunpack.c.l.s4 1983009808
    %v2922 = vunpack.c.0.s8 %v2921
    %v2923 = vlaneseq
    %v2924 = vshrl.u32 %v2923, 7
    %v2925 = vsub.s32 %v2922, %v2924
    %v2926 = vrot.slane %v2918, %v2925
    %v2928 = vunpack.c.l.s4 1983009808
    %v2929 = vunpack.c.0.s8 %v2928
    %v2930 = vlaneseq
    %v2931 = vshrl.u32 %v2930, 7
    %v2932 = vsub.s32 %v2929, %v2931
    %v2933 = vrot.slane %v2919, %v2932
    %v2934 = vcombine.low %v2926, %v2933
    %v2935 = vcombine.low %v1854, %v1862
    %v2936 = vcombine.low %v1861, %v1863
    %v2938 = vunpack.c.l.s4 1983009808
    %v2939 = vunpack.c.0.s8 %v2938
    %v2940 = vlaneseq
    %v2941 = vshrl.u32 %v2940, 7
    %v2942 = vsub.s32 %v2939, %v2941
    %v2943 = vrot.slane %v2935, %v2942
    %v2945 = vunpack.c.l.s4 1983009808
    %v2946 = vunpack.c.0.s8 %v2945
    %v2947 = vlaneseq
    %v2948 = vshrl.u32 %v2947, 7
    %v2949 = vsub.s32 %v2946, %v2948
    %v2950 = vrot.slane %v2936, %v2949
    %v2951 = vcombine.low %v2943, %v2950
    %v2952 = vcombine.low %v1871, %v1879
    %v2953 = vcombine.low %v1878, %v1880
    %v2955 = vunpack.c.l.s4 1983009808
    %v2956 = vunpack.c.0.s8 %v2955
    %v2957 = vlaneseq
    %v2958 = vshrl.u32 %v2957, 7
    %v2959 = vsub.s32 %v2956, %v2958
    %v2960 = vrot.slane %v2952, %v2959
    %v2962 = vunpack.c.l.s4 1983009808
    %v2963 = vunpack.c.0.s8 %v2962
    %v2964 = vlaneseq
    %v2965 = vshrl.u32 %v2964, 7
    %v2966 = vsub.s32 %v2963, %v2965
    %v2967 = vrot.slane %v2953, %v2966
    %v2968 = vcombine.low %v2960, %v2967
    %v2969 = vcombine.low %v1888, %v1896
    %v2970 = vcombine.low %v1895, %v1897
    %v2972 = vunpack.c.l.s4 1983009808
    %v2973 = vunpack.c.0.s8 %v2972
    %v2974 = vlaneseq
    %v2975 = vshrl.u32 %v2974, 7
    %v2976 = vsub.s32 %v2973, %v2975
    %v2977 = vrot.slane %v2969, %v2976
    %v2979 = vunpack.c.l.s4 1983009808
    %v2980 = vunpack.c.0.s8 %v2979
    %v2981 = vlaneseq
    %v2982 = vshrl.u32 %v2981, 7
    %v2983 = vsub.s32 %v2980, %v2982
    %v2984 = vrot.slane %v2970, %v2983
    %v2985 = vcombine.low %v2977, %v2984
    %v2986 = vcombine.low %v1905, %v1913
    %v2987 = vcombine.low %v1912, %v1914
    %v2989 = vunpack.c.l.s4 1983009808
    %v2990 = vunpack.c.0.s8 %v2989
    %v2991 = vlaneseq
    %v2992 = vshrl.u32 %v2991, 7
    %v2993 = vsub.s32 %v2990, %v2992
    %v2994 = vrot.slane %v2986, %v2993
    %v2996 = vunpack.c.l.s4 1983009808
    %v2997 = vunpack.c.0.s8 %v2996
    %v2998 = vlaneseq
    %v2999 = vshrl.u32 %v2998, 7
    %v3000 = vsub.s32 %v2997, %v2999
    %v3001 = vrot.slane %v2987, %v3000
    %v3002 = vcombine.low %v2994, %v3001
    %v3003 = vcombine.low %v1922, %v1930
    %v3004 = vcombine.low %v1929, %v1931
    %v3006 = vunpack.c.l.s4 1983009808
    %v3007 = vunpack.c.0.s8 %v3006
    %v3008 = vlaneseq
    %v3009 = vshrl.u32 %v3008, 7
    %v3010 = vsub.s32 %v3007, %v3009
    %v3011 = vrot.slane %v3003, %v3010
    %v3013 = vunpack.c.l.s4 1983009808
    %v3014 = vunpack.c.0.s8 %v3013
    %v3015 = vlaneseq
    %v3016 = vshrl.u32 %v3015, 7
    %v3017 = vsub.s32 %v3014, %v3016
    %v3018 = vrot.slane %v3004, %v3017
    %v3019 = vcombine.low %v3011, %v3018
    %v3020 = vcombine.low %v1939, %v1947
    %v3021 = vcombine.low %v1946, %v1948
    %v3023 = vunpack.c.l.s4 1983009808
    %v3024 = vunpack.c.0.s8 %v3023
    %v3025 = vlaneseq
    %v3026 = vshrl.u32 %v3025, 7
    %v3027 = vsub.s32 %v3024, %v3026
    %v3028 = vrot.slane %v3020, %v3027
    %v3030 = vunpack.c.l.s4 1983009808
    %v3031 = vunpack.c.0.s8 %v3030
    %v3032 = vlaneseq
    %v3033 = vshrl.u32 %v3032, 7
    %v3034 = vsub.s32 %v3031, %v3033
    %v3035 = vrot.slane %v3021, %v3034
    %v3036 = vcombine.low %v3028, %v3035
    %v3037 = vcombine.low %v1956, %v1964
    %v3038 = vcombine.low %v1963, %v1965
    %v3040 = vunpack.c.l.s4 1983009808
    %v3041 = vunpack.c.0.s8 %v3040
    %v3042 = vlaneseq
    %v3043 = vshrl.u32 %v3042, 7
    %v3044 = vsub.s32 %v3041, %v3043
    %v3045 = vrot.slane %v3037, %v3044
    %v3047 = vunpack.c.l.s4 1983009808
    %v3048 = vunpack.c.0.s8 %v3047
    %v3049 = vlaneseq
    %v3050 = vshrl.u32 %v3049, 7
    %v3051 = vsub.s32 %v3048, %v3050
    %v3052 = vrot.slane %v3038, %v3051
    %v3053 = vcombine.low %v3045, %v3052
    %v3054 = vcombine.low %v1973, %v1981
    %v3055 = vcombine.low %v1980, %v1982
    %v3057 = vunpack.c.l.s4 1983009808
    %v3058 = vunpack.c.0.s8 %v3057
    %v3059 = vlaneseq
    %v3060 = vshrl.u32 %v3059, 7
    %v3061 = vsub.s32 %v3058, %v3060
    %v3062 = vrot.slane %v3054, %v3061
    %v3064 = vunpack.c.l.s4 1983009808
    %v3065 = vunpack.c.0.s8 %v3064
    %v3066 = vlaneseq
    %v3067 = vshrl.u32 %v3066, 7
    %v3068 = vsub.s32 %v3065, %v3067
    %v3069 = vrot.slane %v3055, %v3068
    %v3070 = vcombine.low %v3062, %v3069
    %v3071 = vcombine.low %v1990, %v1998
    %v3072 = vcombine.low %v1997, %v1999
    %v3074 = vunpack.c.l.s4 1983009808
    %v3075 = vunpack.c.0.s8 %v3074
    %v3076 = vlaneseq
    %v3077 = vshrl.u32 %v3076, 7
    %v3078 = vsub.s32 %v3075, %v3077
    %v3079 = vrot.slane %v3071, %v3078
    %v3081 = vunpack.c.l.s4 1983009808
    %v3082 = vunpack.c.0.s8 %v3081
    %v3083 = vlaneseq
    %v3084 = vshrl.u32 %v3083, 7
    %v3085 = vsub.s32 %v3082, %v3084
    %v3086 = vrot.slane %v3072, %v3085
    %v3087 = vcombine.low %v3079, %v3086
    %v3088 = vcombine.low %v2007, %v2015
    %v3089 = vcombine.low %v2014, %v2016
    %v3091 = vunpack.c.l.s4 1983009808
    %v3092 = vunpack.c.0.s8 %v3091
    %v3093 = vlaneseq
    %v3094 = vshrl.u32 %v3093, 7
    %v3095 = vsub.s32 %v3092, %v3094
    %v3096 = vrot.slane %v3088, %v3095
    %v3098 = vunpack.c.l.s4 1983009808
    %v3099 = vunpack.c.0.s8 %v3098
    %v3100 = vlaneseq
    %v3101 = vshrl.u32 %v3100, 7
    %v3102 = vsub.s32 %v3099, %v3101
    %v3103 = vrot.slane %v3089, %v3102
    %v3104 = vcombine.low %v3096, %v3103
    %v3105 = vcombine.low %v2024, %v2032
    %v3106 = vcombine.low %v2031, %v2033
    %v3108 = vunpack.c.l.s4 1983009808
    %v3109 = vunpack.c.0.s8 %v3108
    %v3110 = vlaneseq
    %v3111 = vshrl.u32 %v3110, 7
    %v3112 = vsub.s32 %v3109, %v3111
    %v3113 = vrot.slane %v3105, %v3112
    %v3115 = vunpack.c.l.s4 1983009808
    %v3116 = vunpack.c.0.s8 %v3115
    %v3117 = vlaneseq
    %v3118 = vshrl.u32 %v3117, 7
    %v3119 = vsub.s32 %v3116, %v3118
    %v3120 = vrot.slane %v3106, %v3119
    %v3121 = vcombine.low %v3113, %v3120
    %v3122 = vcombine.low %v2041, %v2049
    %v3123 = vcombine.low %v2048, %v2050
    %v3125 = vunpack.c.l.s4 1983009808
    %v3126 = vunpack.c.0.s8 %v3125
    %v3127 = vlaneseq
    %v3128 = vshrl.u32 %v3127, 7
    %v3129 = vsub.s32 %v3126, %v3128
    %v3130 = vrot.slane %v3122, %v3129
    %v3132 = vunpack.c.l.s4 1983009808
    %v3133 = vunpack.c.0.s8 %v3132
    %v3134 = vlaneseq
    %v3135 = vshrl.u32 %v3134, 7
    %v3136 = vsub.s32 %v3133, %v3135
    %v3137 = vrot.slane %v3123, %v3136
    %v3138 = vcombine.low %v3130, %v3137
    %v3139 = vcombine.low %v2058, %v2066
    %v3140 = vcombine.low %v2065, %v2067
    %v3142 = vunpack.c.l.s4 1983009808
    %v3143 = vunpack.c.0.s8 %v3142
    %v3144 = vlaneseq
    %v3145 = vshrl.u32 %v3144, 7
    %v3146 = vsub.s32 %v3143, %v3145
    %v3147 = vrot.slane %v3139, %v3146
    %v3149 = vunpack.c.l.s4 1983009808
    %v3150 = vunpack.c.0.s8 %v3149
    %v3151 = vlaneseq
    %v3152 = vshrl.u32 %v3151, 7
    %v3153 = vsub.s32 %v3150, %v3152
    %v3154 = vrot.slane %v3140, %v3153
    %v3155 = vcombine.low %v3147, %v3154
    %v3156 = vcombine.low %v2075, %v2083
    %v3157 = vcombine.low %v2082, %v2084
    %v3159 = vunpack.c.l.s4 1983009808
    %v3160 = vunpack.c.0.s8 %v3159
    %v3161 = vlaneseq
    %v3162 = vshrl.u32 %v3161, 7
    %v3163 = vsub.s32 %v3160, %v3162
    %v3164 = vrot.slane %v3156, %v3163
    %v3166 = vunpack.c.l.s4 1983009808
    %v3167 = vunpack.c.0.s8 %v3166
    %v3168 = vlaneseq
    %v3169 = vshrl.u32 %v3168, 7
    %v3170 = vsub.s32 %v3167, %v3169
    %v3171 = vrot.slane %v3157, %v3170
    %v3172 = vcombine.low %v3164, %v3171
    %v3173 = vcombine.low %v2092, %v2100
    %v3174 = vcombine.low %v2099, %v2101
    %v3176 = vunpack.c.l.s4 1983009808
    %v3177 = vunpack.c.0.s8 %v3176
    %v3178 = vlaneseq
    %v3179 = vshrl.u32 %v3178, 7
    %v3180 = vsub.s32 %v3177, %v3179
    %v3181 = vrot.slane %v3173, %v3180
    %v3183 = vunpack.c.l.s4 1983009808
    %v3184 = vunpack.c.0.s8 %v3183
    %v3185 = vlaneseq
    %v3186 = vshrl.u32 %v3185, 7
    %v3187 = vsub.s32 %v3184, %v3186
    %v3188 = vrot.slane %v3174, %v3187
    %v3189 = vcombine.low %v3181, %v3188
    %v3190 = vcombine.low %v2109, %v2117
    %v3191 = vcombine.low %v2116, %v2118
    %v3193 = vunpack.c.l.s4 1983009808
    %v3194 = vunpack.c.0.s8 %v3193
    %v3195 = vlaneseq
    %v3196 = vshrl.u32 %v3195, 7
    %v3197 = vsub.s32 %v3194, %v3196
    %v3198 = vrot.slane %v3190, %v3197
    %v3200 = vunpack.c.l.s4 1983009808
    %v3201 = vunpack.c.0.s8 %v3200
    %v3202 = vlaneseq
    %v3203 = vshrl.u32 %v3202, 7
    %v3204 = vsub.s32 %v3201, %v3203
    %v3205 = vrot.slane %v3191, %v3204
    %v3206 = vcombine.low %v3198, %v3205
    %v3207 = vcombine.low %v2126, %v2134
    %v3208 = vcombine.low %v2133, %v2135
    %v3210 = vunpack.c.l.s4 1983009808
    %v3211 = vunpack.c.0.s8 %v3210
    %v3212 = vlaneseq
    %v3213 = vshrl.u32 %v3212, 7
    %v3214 = vsub.s32 %v3211, %v3213
    %v3215 = vrot.slane %v3207, %v3214
    %v3217 = vunpack.c.l.s4 1983009808
    %v3218 = vunpack.c.0.s8 %v3217
    %v3219 = vlaneseq
    %v3220 = vshrl.u32 %v3219, 7
    %v3221 = vsub.s32 %v3218, %v3220
    %v3222 = vrot.slane %v3208, %v3221
    %v3223 = vcombine.low %v3215, %v3222
    %v3224 = vcombine.low %v2143, %v2151
    %v3225 = vcombine.low %v2150, %v2152
    %v3227 = vunpack.c.l.s4 1983009808
    %v3228 = vunpack.c.0.s8 %v3227
    %v3229 = vlaneseq
    %v3230 = vshrl.u32 %v3229, 7
    %v3231 = vsub.s32 %v3228, %v3230
    %v3232 = vrot.slane %v3224, %v3231
    %v3234 = vunpack.c.l.s4 1983009808
    %v3235 = vunpack.c.0.s8 %v3234
    %v3236 = vlaneseq
    %v3237 = vshrl.u32 %v3236, 7
    %v3238 = vsub.s32 %v3235, %v3237
    %v3239 = vrot.slane %v3225, %v3238
    %v3240 = vcombine.low %v3232, %v3239
    %v3241 = vcombine.low %v2160, %v2168
    %v3242 = vcombine.low %v2167, %v2169
    %v3244 = vunpack.c.l.s4 1983009808
    %v3245 = vunpack.c.0.s8 %v3244
    %v3246 = vlaneseq
    %v3247 = vshrl.u32 %v3246, 7
    %v3248 = vsub.s32 %v3245, %v3247
    %v3249 = vrot.slane %v3241, %v3248
    %v3251 = vunpack.c.l.s4 1983009808
    %v3252 = vunpack.c.0.s8 %v3251
    %v3253 = vlaneseq
    %v3254 = vshrl.u32 %v3253, 7
    %v3255 = vsub.s32 %v3252, %v3254
    %v3256 = vrot.slane %v3242, %v3255
    %v3257 = vcombine.low %v3249, %v3256
    %v3258 = vcombine.low %v2177, %v2185
    %v3259 = vcombine.low %v2184, %v2186
    %v3261 = vunpack.c.l.s4 1983009808
    %v3262 = vunpack.c.0.s8 %v3261
    %v3263 = vlaneseq
    %v3264 = vshrl.u32 %v3263, 7
    %v3265 = vsub.s32 %v3262, %v3264
    %v3266 = vrot.slane %v3258, %v3265
    %v3268 = vunpack.c.l.s4 1983009808
    %v3269 = vunpack.c.0.s8 %v3268
    %v3270 = vlaneseq
    %v3271 = vshrl.u32 %v3270, 7
    %v3272 = vsub.s32 %v3269, %v3271
    %v3273 = vrot.slane %v3259, %v3272
    %v3274 = vcombine.low %v3266, %v3273
    %v3275 = vcombine.low %v2194, %v2202
    %v3276 = vcombine.low %v2201, %v2203
    %v3278 = vunpack.c.l.s4 1983009808
    %v3279 = vunpack.c.0.s8 %v3278
    %v3280 = vlaneseq
    %v3281 = vshrl.u32 %v3280, 7
    %v3282 = vsub.s32 %v3279, %v3281
    %v3283 = vrot.slane %v3275, %v3282
    %v3285 = vunpack.c.l.s4 1983009808
    %v3286 = vunpack.c.0.s8 %v3285
    %v3287 = vlaneseq
    %v3288 = vshrl.u32 %v3287, 7
    %v3289 = vsub.s32 %v3286, %v3288
    %v3290 = vrot.slane %v3276, %v3289
    %v3291 = vcombine.low %v3283, %v3290
    %v3292 = vcombine.low %v2211, %v2219
    %v3293 = vcombine.low %v2218, %v2220
    %v3295 = vunpack.c.l.s4 1983009808
    %v3296 = vunpack.c.0.s8 %v3295
    %v3297 = vlaneseq
    %v3298 = vshrl.u32 %v3297, 7
    %v3299 = vsub.s32 %v3296, %v3298
    %v3300 = vrot.slane %v3292, %v3299
    %v3302 = vunpack.c.l.s4 1983009808
    %v3303 = vunpack.c.0.s8 %v3302
    %v3304 = vlaneseq
    %v3305 = vshrl.u32 %v3304, 7
    %v3306 = vsub.s32 %v3303, %v3305
    %v3307 = vrot.slane %v3293, %v3306
    %v3308 = vcombine.low %v3300, %v3307
    %v3309 = vcombine.low %v2228, %v2236
    %v3310 = vcombine.low %v2235, %v2237
    %v3312 = vunpack.c.l.s4 1983009808
    %v3313 = vunpack.c.0.s8 %v3312
    %v3314 = vlaneseq
    %v3315 = vshrl.u32 %v3314, 7
    %v3316 = vsub.s32 %v3313, %v3315
    %v3317 = vrot.slane %v3309, %v3316
    %v3319 = vunpack.c.l.s4 1983009808
    %v3320 = vunpack.c.0.s8 %v3319
    %v3321 = vlaneseq
    %v3322 = vshrl.u32 %v3321, 7
    %v3323 = vsub.s32 %v3320, %v3322
    %v3324 = vrot.slane %v3310, %v3323
    %v3325 = vcombine.low %v3317, %v3324
    %v3326 = vcombine.low %v2245, %v2253
    %v3327 = vcombine.low %v2252, %v2254
    %v3329 = vunpack.c.l.s4 1983009808
    %v3330 = vunpack.c.0.s8 %v3329
    %v3331 = vlaneseq
    %v3332 = vshrl.u32 %v3331, 7
    %v3333 = vsub.s32 %v3330, %v3332
    %v3334 = vrot.slane %v3326, %v3333
    %v3336 = vunpack.c.l.s4 1983009808
    %v3337 = vunpack.c.0.s8 %v3336
    %v3338 = vlaneseq
    %v3339 = vshrl.u32 %v3338, 7
    %v3340 = vsub.s32 %v3337, %v3339
    %v3341 = vrot.slane %v3327, %v3340
    %v3342 = vcombine.low %v3334, %v3341
    %v3343 = vcombine.low %v2262, %v2270
    %v3344 = vcombine.low %v2269, %v2271
    %v3346 = vunpack.c.l.s4 1983009808
    %v3347 = vunpack.c.0.s8 %v3346
    %v3348 = vlaneseq
    %v3349 = vshrl.u32 %v3348, 7
    %v3350 = vsub.s32 %v3347, %v3349
    %v3351 = vrot.slane %v3343, %v3350
    %v3353 = vunpack.c.l.s4 1983009808
    %v3354 = vunpack.c.0.s8 %v3353
    %v3355 = vlaneseq
    %v3356 = vshrl.u32 %v3355, 7
    %v3357 = vsub.s32 %v3354, %v3356
    %v3358 = vrot.slane %v3344, %v3357
    %v3359 = vcombine.low %v3351, %v3358
    %v3360 = vcombine.low %v2279, %v2287
    %v3361 = vcombine.low %v2286, %v2288
    %v3363 = vunpack.c.l.s4 1983009808
    %v3364 = vunpack.c.0.s8 %v3363
    %v3365 = vlaneseq
    %v3366 = vshrl.u32 %v3365, 7
    %v3367 = vsub.s32 %v3364, %v3366
    %v3368 = vrot.slane %v3360, %v3367
    %v3370 = vunpack.c.l.s4 1983009808
    %v3371 = vunpack.c.0.s8 %v3370
    %v3372 = vlaneseq
    %v3373 = vshrl.u32 %v3372, 7
    %v3374 = vsub.s32 %v3371, %v3373
    %v3375 = vrot.slane %v3361, %v3374
    %v3376 = vcombine.low %v3368, %v3375
    %v3377 = vcombine.low %v2296, %v2304
    %v3378 = vcombine.low %v2303, %v2305
    %v3380 = vunpack.c.l.s4 1983009808
    %v3381 = vunpack.c.0.s8 %v3380
    %v3382 = vlaneseq
    %v3383 = vshrl.u32 %v3382, 7
    %v3384 = vsub.s32 %v3381, %v3383
    %v3385 = vrot.slane %v3377, %v3384
    %v3387 = vunpack.c.l.s4 1983009808
    %v3388 = vunpack.c.0.s8 %v3387
    %v3389 = vlaneseq
    %v3390 = vshrl.u32 %v3389, 7
    %v3391 = vsub.s32 %v3388, %v3390
    %v3392 = vrot.slane %v3378, %v3391
    %v3393 = vcombine.low %v3385, %v3392
    %v3394 = vcombine.low %v2313, %v2321
    %v3395 = vcombine.low %v2320, %v2322
    %v3397 = vunpack.c.l.s4 1983009808
    %v3398 = vunpack.c.0.s8 %v3397
    %v3399 = vlaneseq
    %v3400 = vshrl.u32 %v3399, 7
    %v3401 = vsub.s32 %v3398, %v3400
    %v3402 = vrot.slane %v3394, %v3401
    %v3404 = vunpack.c.l.s4 1983009808
    %v3405 = vunpack.c.0.s8 %v3404
    %v3406 = vlaneseq
    %v3407 = vshrl.u32 %v3406, 7
    %v3408 = vsub.s32 %v3405, %v3407
    %v3409 = vrot.slane %v3395, %v3408
    %v3410 = vcombine.low %v3402, %v3409
    %v3411 = vcombine.low %v2330, %v2338
    %v3412 = vcombine.low %v2337, %v2339
    %v3414 = vunpack.c.l.s4 1983009808
    %v3415 = vunpack.c.0.s8 %v3414
    %v3416 = vlaneseq
    %v3417 = vshrl.u32 %v3416, 7
    %v3418 = vsub.s32 %v3415, %v3417
    %v3419 = vrot.slane %v3411, %v3418
    %v3421 = vunpack.c.l.s4 1983009808
    %v3422 = vunpack.c.0.s8 %v3421
    %v3423 = vlaneseq
    %v3424 = vshrl.u32 %v3423, 7
    %v3425 = vsub.s32 %v3422, %v3424
    %v3426 = vrot.slane %v3412, %v3425
    %v3427 = vcombine.low %v3419, %v3426
    %v3428 = vcombine.low %v2347, %v2355
    %v3429 = vcombine.low %v2354, %v2356
    %v3431 = vunpack.c.l.s4 1983009808
    %v3432 = vunpack.c.0.s8 %v3431
    %v3433 = vlaneseq
    %v3434 = vshrl.u32 %v3433, 7
    %v3435 = vsub.s32 %v3432, %v3434
    %v3436 = vrot.slane %v3428, %v3435
    %v3438 = vunpack.c.l.s4 1983009808
    %v3439 = vunpack.c.0.s8 %v3438
    %v3440 = vlaneseq
    %v3441 = vshrl.u32 %v3440, 7
    %v3442 = vsub.s32 %v3439, %v3441
    %v3443 = vrot.slane %v3429, %v3442
    %v3444 = vcombine.low %v3436, %v3443
    %v3445 = vcombine.low %v2364, %v2372
    %v3446 = vcombine.low %v2371, %v2373
    %v3448 = vunpack.c.l.s4 1983009808
    %v3449 = vunpack.c.0.s8 %v3448
    %v3450 = vlaneseq
    %v3451 = vshrl.u32 %v3450, 7
    %v3452 = vsub.s32 %v3449, %v3451
    %v3453 = vrot.slane %v3445, %v3452
    %v3455 = vunpack.c.l.s4 1983009808
    %v3456 = vunpack.c.0.s8 %v3455
    %v3457 = vlaneseq
    %v3458 = vshrl.u32 %v3457, 7
    %v3459 = vsub.s32 %v3456, %v3458
    %v3460 = vrot.slane %v3446, %v3459
    %v3461 = vcombine.low %v3453, %v3460
    %v3462 = vcombine.low %v2381, %v2389
    %v3463 = vcombine.low %v2388, %v2390
    %v3465 = vunpack.c.l.s4 1983009808
    %v3466 = vunpack.c.0.s8 %v3465
    %v3467 = vlaneseq
    %v3468 = vshrl.u32 %v3467, 7
    %v3469 = vsub.s32 %v3466, %v3468
    %v3470 = vrot.slane %v3462, %v3469
    %v3472 = vunpack.c.l.s4 1983009808
    %v3473 = vunpack.c.0.s8 %v3472
    %v3474 = vlaneseq
    %v3475 = vshrl.u32 %v3474, 7
    %v3476 = vsub.s32 %v3473, %v3475
    %v3477 = vrot.slane %v3463, %v3476
    %v3478 = vcombine.low %v3470, %v3477
    %v3479 = vcombine.low %v2398, %v2406
    %v3480 = vcombine.low %v2405, %v2407
    %v3482 = vunpack.c.l.s4 1983009808
    %v3483 = vunpack.c.0.s8 %v3482
    %v3484 = vlaneseq
    %v3485 = vshrl.u32 %v3484, 7
    %v3486 = vsub.s32 %v3483, %v3485
    %v3487 = vrot.slane %v3479, %v3486
    %v3489 = vunpack.c.l.s4 1983009808
    %v3490 = vunpack.c.0.s8 %v3489
    %v3491 = vlaneseq
    %v3492 = vshrl.u32 %v3491, 7
    %v3493 = vsub.s32 %v3490, %v3492
    %v3494 = vrot.slane %v3480, %v3493
    %v3495 = vcombine.low %v3487, %v3494
    %v3496 = vcombine.low %v2415, %v2423
    %v3497 = vcombine.low %v2422, %v2424
    %v3499 = vunpack.c.l.s4 1983009808
    %v3500 = vunpack.c.0.s8 %v3499
    %v3501 = vlaneseq
    %v3502 = vshrl.u32 %v3501, 7
    %v3503 = vsub.s32 %v3500, %v3502
    %v3504 = vrot.slane %v3496, %v3503
    %v3506 = vunpack.c.l.s4 1983009808
    %v3507 = vunpack.c.0.s8 %v3506
    %v3508 = vlaneseq
    %v3509 = vshrl.u32 %v3508, 7
    %v3510 = vsub.s32 %v3507, %v3509
    %v3511 = vrot.slane %v3497, %v3510
    %v3512 = vcombine.low %v3504, %v3511
    %v3513 = vcombine.low %v2432, %v2440
    %v3514 = vcombine.low %v2439, %v2441
    %v3516 = vunpack.c.l.s4 1983009808
    %v3517 = vunpack.c.0.s8 %v3516
    %v3518 = vlaneseq
    %v3519 = vshrl.u32 %v3518, 7
    %v3520 = vsub.s32 %v3517, %v3519
    %v3521 = vrot.slane %v3513, %v3520
    %v3523 = vunpack.c.l.s4 1983009808
    %v3524 = vunpack.c.0.s8 %v3523
    %v3525 = vlaneseq
    %v3526 = vshrl.u32 %v3525, 7
    %v3527 = vsub.s32 %v3524, %v3526
    %v3528 = vrot.slane %v3514, %v3527
    %v3529 = vcombine.low %v3521, %v3528
    %v3530 = vcombine.low %v2449, %v2457
    %v3531 = vcombine.low %v2456, %v2458
    %v3533 = vunpack.c.l.s4 1983009808
    %v3534 = vunpack.c.0.s8 %v3533
    %v3535 = vlaneseq
    %v3536 = vshrl.u32 %v3535, 7
    %v3537 = vsub.s32 %v3534, %v3536
    %v3538 = vrot.slane %v3530, %v3537
    %v3540 = vunpack.c.l.s4 1983009808
    %v3541 = vunpack.c.0.s8 %v3540
    %v3542 = vlaneseq
    %v3543 = vshrl.u32 %v3542, 7
    %v3544 = vsub.s32 %v3541, %v3543
    %v3545 = vrot.slane %v3531, %v3544
    %v3546 = vcombine.low %v3538, %v3545
    %v3547 = vcombine.low %v2466, %v2474
    %v3548 = vcombine.low %v2473, %v2475
    %v3550 = vunpack.c.l.s4 1983009808
    %v3551 = vunpack.c.0.s8 %v3550
    %v3552 = vlaneseq
    %v3553 = vshrl.u32 %v3552, 7
    %v3554 = vsub.s32 %v3551, %v3553
    %v3555 = vrot.slane %v3547, %v3554
    %v3557 = vunpack.c.l.s4 1983009808
    %v3558 = vunpack.c.0.s8 %v3557
    %v3559 = vlaneseq
    %v3560 = vshrl.u32 %v3559, 7
    %v3561 = vsub.s32 %v3558, %v3560
    %v3562 = vrot.slane %v3548, %v3561
    %v3563 = vcombine.low %v3555, %v3562
    %v3564 = vcombine.low %v2483, %v2491
    %v3565 = vcombine.low %v2490, %v2492
    %v3567 = vunpack.c.l.s4 1983009808
    %v3568 = vunpack.c.0.s8 %v3567
    %v3569 = vlaneseq
    %v3570 = vshrl.u32 %v3569, 7
    %v3571 = vsub.s32 %v3568, %v3570
    %v3572 = vrot.slane %v3564, %v3571
    %v3574 = vunpack.c.l.s4 1983009808
    %v3575 = vunpack.c.0.s8 %v3574
    %v3576 = vlaneseq
    %v3577 = vshrl.u32 %v3576, 7
    %v3578 = vsub.s32 %v3575, %v3577
    %v3579 = vrot.slane %v3565, %v3578
    %v3580 = vcombine.low %v3572, %v3579
    %v3581 = vcombine.low %v2500, %v2508
    %v3582 = vcombine.low %v2507, %v2509
    %v3584 = vunpack.c.l.s4 1983009808
    %v3585 = vunpack.c.0.s8 %v3584
    %v3586 = vlaneseq
    %v3587 = vshrl.u32 %v3586, 7
    %v3588 = vsub.s32 %v3585, %v3587
    %v3589 = vrot.slane %v3581, %v3588
    %v3591 = vunpack.c.l.s4 1983009808
    %v3592 = vunpack.c.0.s8 %v3591
    %v3593 = vlaneseq
    %v3594 = vshrl.u32 %v3593, 7
    %v3595 = vsub.s32 %v3592, %v3594
    %v3596 = vrot.slane %v3582, %v3595
    %v3597 = vcombine.low %v3589, %v3596
    %v3598 = vcombine.low %v2517, %v2525
    %v3599 = vcombine.low %v2524, %v2526
    %v3601 = vunpack.c.l.s4 1983009808
    %v3602 = vunpack.c.0.s8 %v3601
    %v3603 = vlaneseq
    %v3604 = vshrl.u32 %v3603, 7
    %v3605 = vsub.s32 %v3602, %v3604
    %v3606 = vrot.slane %v3598, %v3605
    %v3608 = vunpack.c.l.s4 1983009808
    %v3609 = vunpack.c.0.s8 %v3608
    %v3610 = vlaneseq
    %v3611 = vshrl.u32 %v3610, 7
    %v3612 = vsub.s32 %v3609, %v3611
    %v3613 = vrot.slane %v3599, %v3612
    %v3614 = vcombine.low %v3606, %v3613
    %v3615 = vcombine.low %v2534, %v2542
    %v3616 = vcombine.low %v2541, %v2543
    %v3618 = vunpack.c.l.s4 1983009808
    %v3619 = vunpack.c.0.s8 %v3618
    %v3620 = vlaneseq
    %v3621 = vshrl.u32 %v3620, 7
    %v3622 = vsub.s32 %v3619, %v3621
    %v3623 = vrot.slane %v3615, %v3622
    %v3625 = vunpack.c.l.s4 1983009808
    %v3626 = vunpack.c.0.s8 %v3625
    %v3627 = vlaneseq
    %v3628 = vshrl.u32 %v3627, 7
    %v3629 = vsub.s32 %v3626, %v3628
    %v3630 = vrot.slane %v3616, %v3629
    %v3631 = vcombine.low %v3623, %v3630
    %v3632 = vcombine.low %v2551, %v2559
    %v3633 = vcombine.low %v2558, %v2560
    %v3635 = vunpack.c.l.s4 1983009808
    %v3636 = vunpack.c.0.s8 %v3635
    %v3637 = vlaneseq
    %v3638 = vshrl.u32 %v3637, 7
    %v3639 = vsub.s32 %v3636, %v3638
    %v3640 = vrot.slane %v3632, %v3639
    %v3642 = vunpack.c.l.s4 1983009808
    %v3643 = vunpack.c.0.s8 %v3642
    %v3644 = vlaneseq
    %v3645 = vshrl.u32 %v3644, 7
    %v3646 = vsub.s32 %v3643, %v3645
    %v3647 = vrot.slane %v3633, %v3646
    %v3648 = vcombine.low %v3640, %v3647
    %v3649 = vcombine.low %v2568, %v2576
    %v3650 = vcombine.low %v2575, %v2577
    %v3652 = vunpack.c.l.s4 1983009808
    %v3653 = vunpack.c.0.s8 %v3652
    %v3654 = vlaneseq
    %v3655 = vshrl.u32 %v3654, 7
    %v3656 = vsub.s32 %v3653, %v3655
    %v3657 = vrot.slane %v3649, %v3656
    %v3659 = vunpack.c.l.s4 1983009808
    %v3660 = vunpack.c.0.s8 %v3659
    %v3661 = vlaneseq
    %v3662 = vshrl.u32 %v3661, 7
    %v3663 = vsub.s32 %v3660, %v3662
    %v3664 = vrot.slane %v3650, %v3663
    %v3665 = vcombine.low %v3657, %v3664
    %v3666 = vcombine.low %v2585, %v2593
    %v3667 = vcombine.low %v2592, %v2594
    %v3669 = vunpack.c.l.s4 1983009808
    %v3670 = vunpack.c.0.s8 %v3669
    %v3671 = vlaneseq
    %v3672 = vshrl.u32 %v3671, 7
    %v3673 = vsub.s32 %v3670, %v3672
    %v3674 = vrot.slane %v3666, %v3673
    %v3676 = vunpack.c.l.s4 1983009808
    %v3677 = vunpack.c.0.s8 %v3676
    %v3678 = vlaneseq
    %v3679 = vshrl.u32 %v3678, 7
    %v3680 = vsub.s32 %v3677, %v3679
    %v3681 = vrot.slane %v3667, %v3680
    %v3682 = vcombine.low %v3674, %v3681
    %v3683 = vcombine.low %v2602, %v2610
    %v3684 = vcombine.low %v2609, %v2611
    %v3686 = vunpack.c.l.s4 1983009808
    %v3687 = vunpack.c.0.s8 %v3686
    %v3688 = vlaneseq
    %v3689 = vshrl.u32 %v3688, 7
    %v3690 = vsub.s32 %v3687, %v3689
    %v3691 = vrot.slane %v3683, %v3690
    %v3693 = vunpack.c.l.s4 1983009808
    %v3694 = vunpack.c.0.s8 %v3693
    %v3695 = vlaneseq
    %v3696 = vshrl.u32 %v3695, 7
    %v3697 = vsub.s32 %v3694, %v3696
    %v3698 = vrot.slane %v3684, %v3697
    %v3699 = vcombine.low %v3691, %v3698
    %3700 = vset.pattern.permute.xlu0 0
    %3701 = vperm.xlu0 %3700, %v2628
    %v3702 = vpop.permute.xlu0 %3701
    %3703 = vset.pattern.permute.xlu0 0
    %3704 = vperm.xlu0 %3703, %v2645
    %v3705 = vpop.permute.xlu0 %3704
    %3706 = vset.pattern.permute.xlu0 0
    %3707 = vperm.xlu0 %3706, %v2662
    %v3708 = vpop.permute.xlu0 %3707
    %3709 = vset.pattern.permute.xlu0 0
    %3710 = vperm.xlu0 %3709, %v2679
    %v3711 = vpop.permute.xlu0 %3710
    %3712 = vset.pattern.permute.xlu0 0
    %3713 = vperm.xlu0 %3712, %v2696
    %v3714 = vpop.permute.xlu0 %3713
    %3715 = vset.pattern.permute.xlu0 0
    %3716 = vperm.xlu0 %3715, %v2713
    %v3717 = vpop.permute.xlu0 %3716
    %3718 = vset.pattern.permute.xlu0 0
    %3719 = vperm.xlu0 %3718, %v2730
    %v3720 = vpop.permute.xlu0 %3719
    %3721 = vset.pattern.permute.xlu0 0
    %3722 = vperm.xlu0 %3721, %v2747
    %v3723 = vpop.permute.xlu0 %3722
    %3724 = vset.pattern.permute.xlu0 0
    %3725 = vperm.xlu0 %3724, %v2764
    %v3726 = vpop.permute.xlu0 %3725
    %3727 = vset.pattern.permute.xlu0 0
    %3728 = vperm.xlu0 %3727, %v2781
    %v3729 = vpop.permute.xlu0 %3728
    %3730 = vset.pattern.permute.xlu0 0
    %3731 = vperm.xlu0 %3730, %v2798
    %v3732 = vpop.permute.xlu0 %3731
    %3733 = vset.pattern.permute.xlu0 0
    %3734 = vperm.xlu0 %3733, %v2815
    %v3735 = vpop.permute.xlu0 %3734
    %3736 = vset.pattern.permute.xlu0 0
    %3737 = vperm.xlu0 %3736, %v2832
    %v3738 = vpop.permute.xlu0 %3737
    %3739 = vset.pattern.permute.xlu0 0
    %3740 = vperm.xlu0 %3739, %v2849
    %v3741 = vpop.permute.xlu0 %3740
    %3742 = vset.pattern.permute.xlu0 0
    %3743 = vperm.xlu0 %3742, %v2866
    %v3744 = vpop.permute.xlu0 %3743
    %3745 = vset.pattern.permute.xlu0 0
    %3746 = vperm.xlu0 %3745, %v2883
    %v3747 = vpop.permute.xlu0 %3746
    %3748 = vset.pattern.permute.xlu0 0
    %3749 = vperm.xlu0 %3748, %v2900
    %v3750 = vpop.permute.xlu0 %3749
    %3751 = vset.pattern.permute.xlu0 0
    %3752 = vperm.xlu0 %3751, %v2917
    %v3753 = vpop.permute.xlu0 %3752
    %3754 = vset.pattern.permute.xlu0 0
    %3755 = vperm.xlu0 %3754, %v2934
    %v3756 = vpop.permute.xlu0 %3755
    %3757 = vset.pattern.permute.xlu0 0
    %3758 = vperm.xlu0 %3757, %v2951
    %v3759 = vpop.permute.xlu0 %3758
    %3760 = vset.pattern.permute.xlu0 0
    %3761 = vperm.xlu0 %3760, %v2968
    %v3762 = vpop.permute.xlu0 %3761
    %3763 = vset.pattern.permute.xlu0 0
    %3764 = vperm.xlu0 %3763, %v2985
    %v3765 = vpop.permute.xlu0 %3764
    %3766 = vset.pattern.permute.xlu0 0
    %3767 = vperm.xlu0 %3766, %v3002
    %v3768 = vpop.permute.xlu0 %3767
    %3769 = vset.pattern.permute.xlu0 0
    %3770 = vperm.xlu0 %3769, %v3019
    %v3771 = vpop.permute.xlu0 %3770
    %3772 = vset.pattern.permute.xlu0 0
    %3773 = vperm.xlu0 %3772, %v3036
    %v3774 = vpop.permute.xlu0 %3773
    %3775 = vset.pattern.permute.xlu0 0
    %3776 = vperm.xlu0 %3775, %v3053
    %v3777 = vpop.permute.xlu0 %3776
    %3778 = vset.pattern.permute.xlu0 0
    %3779 = vperm.xlu0 %3778, %v3070
    %v3780 = vpop.permute.xlu0 %3779
    %3781 = vset.pattern.permute.xlu0 0
    %3782 = vperm.xlu0 %3781, %v3087
    %v3783 = vpop.permute.xlu0 %3782
    %3784 = vset.pattern.permute.xlu0 0
    %3785 = vperm.xlu0 %3784, %v3104
    %v3786 = vpop.permute.xlu0 %3785
    %3787 = vset.pattern.permute.xlu0 0
    %3788 = vperm.xlu0 %3787, %v3121
    %v3789 = vpop.permute.xlu0 %3788
    %3790 = vset.pattern.permute.xlu0 0
    %3791 = vperm.xlu0 %3790, %v3138
    %v3792 = vpop.permute.xlu0 %3791
    %3793 = vset.pattern.permute.xlu0 0
    %3794 = vperm.xlu0 %3793, %v3155
    %v3795 = vpop.permute.xlu0 %3794
    %3796 = vset.pattern.permute.xlu0 0
    %3797 = vperm.xlu0 %3796, %v3172
    %v3798 = vpop.permute.xlu0 %3797
    %3799 = vset.pattern.permute.xlu0 0
    %3800 = vperm.xlu0 %3799, %v3189
    %v3801 = vpop.permute.xlu0 %3800
    %3802 = vset.pattern.permute.xlu0 0
    %3803 = vperm.xlu0 %3802, %v3206
    %v3804 = vpop.permute.xlu0 %3803
    %3805 = vset.pattern.permute.xlu0 0
    %3806 = vperm.xlu0 %3805, %v3223
    %v3807 = vpop.permute.xlu0 %3806
    %3808 = vset.pattern.permute.xlu0 0
    %3809 = vperm.xlu0 %3808, %v3240
    %v3810 = vpop.permute.xlu0 %3809
    %3811 = vset.pattern.permute.xlu0 0
    %3812 = vperm.xlu0 %3811, %v3257
    %v3813 = vpop.permute.xlu0 %3812
    %3814 = vset.pattern.permute.xlu0 0
    %3815 = vperm.xlu0 %3814, %v3274
    %v3816 = vpop.permute.xlu0 %3815
    %3817 = vset.pattern.permute.xlu0 0
    %3818 = vperm.xlu0 %3817, %v3291
    %v3819 = vpop.permute.xlu0 %3818
    %3820 = vset.pattern.permute.xlu0 0
    %3821 = vperm.xlu0 %3820, %v3308
    %v3822 = vpop.permute.xlu0 %3821
    %3823 = vset.pattern.permute.xlu0 0
    %3824 = vperm.xlu0 %3823, %v3325
    %v3825 = vpop.permute.xlu0 %3824
    %3826 = vset.pattern.permute.xlu0 0
    %3827 = vperm.xlu0 %3826, %v3342
    %v3828 = vpop.permute.xlu0 %3827
    %3829 = vset.pattern.permute.xlu0 0
    %3830 = vperm.xlu0 %3829, %v3359
    %v3831 = vpop.permute.xlu0 %3830
    %3832 = vset.pattern.permute.xlu0 0
    %3833 = vperm.xlu0 %3832, %v3376
    %v3834 = vpop.permute.xlu0 %3833
    %3835 = vset.pattern.permute.xlu0 0
    %3836 = vperm.xlu0 %3835, %v3393
    %v3837 = vpop.permute.xlu0 %3836
    %3838 = vset.pattern.permute.xlu0 0
    %3839 = vperm.xlu0 %3838, %v3410
    %v3840 = vpop.permute.xlu0 %3839
    %3841 = vset.pattern.permute.xlu0 0
    %3842 = vperm.xlu0 %3841, %v3427
    %v3843 = vpop.permute.xlu0 %3842
    %3844 = vset.pattern.permute.xlu0 0
    %3845 = vperm.xlu0 %3844, %v3444
    %v3846 = vpop.permute.xlu0 %3845
    %3847 = vset.pattern.permute.xlu0 0
    %3848 = vperm.xlu0 %3847, %v3461
    %v3849 = vpop.permute.xlu0 %3848
    %3850 = vset.pattern.permute.xlu0 0
    %3851 = vperm.xlu0 %3850, %v3478
    %v3852 = vpop.permute.xlu0 %3851
    %3853 = vset.pattern.permute.xlu0 0
    %3854 = vperm.xlu0 %3853, %v3495
    %v3855 = vpop.permute.xlu0 %3854
    %3856 = vset.pattern.permute.xlu0 0
    %3857 = vperm.xlu0 %3856, %v3512
    %v3858 = vpop.permute.xlu0 %3857
    %3859 = vset.pattern.permute.xlu0 0
    %3860 = vperm.xlu0 %3859, %v3529
    %v3861 = vpop.permute.xlu0 %3860
    %3862 = vset.pattern.permute.xlu0 0
    %3863 = vperm.xlu0 %3862, %v3546
    %v3864 = vpop.permute.xlu0 %3863
    %3865 = vset.pattern.permute.xlu0 0
    %3866 = vperm.xlu0 %3865, %v3563
    %v3867 = vpop.permute.xlu0 %3866
    %3868 = vset.pattern.permute.xlu0 0
    %3869 = vperm.xlu0 %3868, %v3580
    %v3870 = vpop.permute.xlu0 %3869
    %3871 = vset.pattern.permute.xlu0 0
    %3872 = vperm.xlu0 %3871, %v3597
    %v3873 = vpop.permute.xlu0 %3872
    %3874 = vset.pattern.permute.xlu0 0
    %3875 = vperm.xlu0 %3874, %v3614
    %v3876 = vpop.permute.xlu0 %3875
    %3877 = vset.pattern.permute.xlu0 0
    %3878 = vperm.xlu0 %3877, %v3631
    %v3879 = vpop.permute.xlu0 %3878
    %3880 = vset.pattern.permute.xlu0 0
    %3881 = vperm.xlu0 %3880, %v3648
    %v3882 = vpop.permute.xlu0 %3881
    %3883 = vset.pattern.permute.xlu0 0
    %3884 = vperm.xlu0 %3883, %v3665
    %v3885 = vpop.permute.xlu0 %3884
    %3886 = vset.pattern.permute.xlu0 0
    %3887 = vperm.xlu0 %3886, %v3682
    %v3888 = vpop.permute.xlu0 %3887
    %3889 = vset.pattern.permute.xlu0 0
    %3890 = vperm.xlu0 %3889, %v3699
    %v3891 = vpop.permute.xlu0 %3890
    %v3892 = vlaneseq
    %v3893 = vshrl.u32 %v3892, 7
    %v3894 = vsub.s32 %v53, %v3893
    %v3895 = vrot.slane %v3702, %v3894
    %v3896 = vadd.s32 %v53, 4294967288
    %v3897 = vlaneseq
    %v3898 = vshrl.u32 %v3897, 7
    %v3899 = vsub.s32 %v3896, %v3898
    %v3900 = vrot.slane %v3705, %v3899
    %vm3901 = vcmask 130112
    %v3902 = vsel %vm3901, %v3900, %v3895
    %v3903 = vadd.s32 %v53, 4294967280
    %v3904 = vlaneseq
    %v3905 = vshrl.u32 %v3904, 7
    %v3906 = vsub.s32 %v3903, %v3905
    %v3907 = vrot.slane %v3708, %v3906
    %vm3908 = vcmask 195712
    %v3909 = vsel %vm3908, %v3907, %v3902
    %v3910 = vadd.s32 %v53, 4294967272
    %v3911 = vlaneseq
    %v3912 = vshrl.u32 %v3911, 7
    %v3913 = vsub.s32 %v3910, %v3912
    %v3914 = vrot.slane %v3711, %v3913
    %vm3915 = vcmask 261312
    %v3916 = vsel %vm3915, %v3914, %v3909
    %v3917 = vadd.s32 %v53, 4294967264
    %v3918 = vlaneseq
    %v3919 = vshrl.u32 %v3918, 7
    %v3920 = vsub.s32 %v3917, %v3919
    %v3921 = vrot.slane %v3714, %v3920
    %vm3922 = vcmask 326912
    %v3923 = vsel %vm3922, %v3921, %v3916
    %v3924 = vadd.s32 %v53, 4294967256
    %v3925 = vlaneseq
    %v3926 = vshrl.u32 %v3925, 7
    %v3927 = vsub.s32 %v3924, %v3926
    %v3928 = vrot.slane %v3717, %v3927
    %vm3929 = vcmask 392512
    %v3930 = vsel %vm3929, %v3928, %v3923
    %v3931 = vadd.s32 %v53, 4294967248
    %v3932 = vlaneseq
    %v3933 = vshrl.u32 %v3932, 7
    %v3934 = vsub.s32 %v3931, %v3933
    %v3935 = vrot.slane %v3720, %v3934
    %vm3936 = vcmask 458112
    %v3937 = vsel %vm3936, %v3935, %v3930
    %v3938 = vadd.s32 %v53, 4294967240
    %v3939 = vlaneseq
    %v3940 = vshrl.u32 %v3939, 7
    %v3941 = vsub.s32 %v3938, %v3940
    %v3942 = vrot.slane %v3723, %v3941
    %vm3943 = vcmask 523712
    %v3944 = vsel %vm3943, %v3942, %v3937
    %v3945 = vadd.s32 %v53, 4294967232
    %v3946 = vlaneseq
    %v3947 = vshrl.u32 %v3946, 7
    %v3948 = vsub.s32 %v3945, %v3947
    %v3949 = vrot.slane %v3726, %v3948
    %vm3950 = vcmask 589312
    %v3951 = vsel %vm3950, %v3949, %v3944
    %v3952 = vadd.s32 %v53, 4294967224
    %v3953 = vlaneseq
    %v3954 = vshrl.u32 %v3953, 7
    %v3955 = vsub.s32 %v3952, %v3954
    %v3956 = vrot.slane %v3729, %v3955
    %vm3957 = vcmask 654912
    %v3958 = vsel %vm3957, %v3956, %v3951
    %v3959 = vadd.s32 %v53, 4294967216
    %v3960 = vlaneseq
    %v3961 = vshrl.u32 %v3960, 7
    %v3962 = vsub.s32 %v3959, %v3961
    %v3963 = vrot.slane %v3732, %v3962
    %vm3964 = vcmask 720512
    %v3965 = vsel %vm3964, %v3963, %v3958
    %v3966 = vadd.s32 %v53, 4294967208
    %v3967 = vlaneseq
    %v3968 = vshrl.u32 %v3967, 7
    %v3969 = vsub.s32 %v3966, %v3968
    %v3970 = vrot.slane %v3735, %v3969
    %vm3971 = vcmask 786112
    %v3972 = vsel %vm3971, %v3970, %v3965
    %v3973 = vadd.s32 %v53, 4294967200
    %v3974 = vlaneseq
    %v3975 = vshrl.u32 %v3974, 7
    %v3976 = vsub.s32 %v3973, %v3975
    %v3977 = vrot.slane %v3738, %v3976
    %vm3978 = vcmask 851712
    %v3979 = vsel %vm3978, %v3977, %v3972
    %v3980 = vadd.s32 %v53, 4294967192
    %v3981 = vlaneseq
    %v3982 = vshrl.u32 %v3981, 7
    %v3983 = vsub.s32 %v3980, %v3982
    %v3984 = vrot.slane %v3741, %v3983
    %vm3985 = vcmask 917312
    %v3986 = vsel %vm3985, %v3984, %v3979
    %v3987 = vadd.s32 %v53, 4294967184
    %v3988 = vlaneseq
    %v3989 = vshrl.u32 %v3988, 7
    %v3990 = vsub.s32 %v3987, %v3989
    %v3991 = vrot.slane %v3744, %v3990
    %vm3992 = vcmask 982912
    %v3993 = vsel %vm3992, %v3991, %v3986
    %v3994 = vadd.s32 %v53, 4294967176
    %v3995 = vlaneseq
    %v3996 = vshrl.u32 %v3995, 7
    %v3997 = vsub.s32 %v3994, %v3996
    %v3998 = vrot.slane %v3747, %v3997
    %vm3999 = vcmask 1048512
    %v4000 = vsel %vm3999, %v3998, %v3993
    %v4001 = vlaneseq
    %v4002 = vshrl.u32 %v4001, 7
    %v4003 = vsub.s32 %v53, %v4002
    %v4004 = vrot.slane %v3750, %v4003
    %v4005 = vlaneseq
    %v4006 = vshrl.u32 %v4005, 7
    %v4007 = vsub.s32 %v3896, %v4006
    %v4008 = vrot.slane %v3753, %v4007
    %v4009 = vsel %vm3901, %v4008, %v4004
    %v4010 = vlaneseq
    %v4011 = vshrl.u32 %v4010, 7
    %v4012 = vsub.s32 %v3903, %v4011
    %v4013 = vrot.slane %v3756, %v4012
    %v4014 = vsel %vm3908, %v4013, %v4009
    %v4015 = vlaneseq
    %v4016 = vshrl.u32 %v4015, 7
    %v4017 = vsub.s32 %v3910, %v4016
    %v4018 = vrot.slane %v3759, %v4017
    %v4019 = vsel %vm3915, %v4018, %v4014
    %v4020 = vlaneseq
    %v4021 = vshrl.u32 %v4020, 7
    %v4022 = vsub.s32 %v3917, %v4021
    %v4023 = vrot.slane %v3762, %v4022
    %v4024 = vsel %vm3922, %v4023, %v4019
    %v4025 = vlaneseq
    %v4026 = vshrl.u32 %v4025, 7
    %v4027 = vsub.s32 %v3924, %v4026
    %v4028 = vrot.slane %v3765, %v4027
    %v4029 = vsel %vm3929, %v4028, %v4024
    %v4030 = vlaneseq
    %v4031 = vshrl.u32 %v4030, 7
    %v4032 = vsub.s32 %v3931, %v4031
    %v4033 = vrot.slane %v3768, %v4032
    %v4034 = vsel %vm3936, %v4033, %v4029
    %v4035 = vlaneseq
    %v4036 = vshrl.u32 %v4035, 7
    %v4037 = vsub.s32 %v3938, %v4036
    %v4038 = vrot.slane %v3771, %v4037
    %v4039 = vsel %vm3943, %v4038, %v4034
    %v4040 = vlaneseq
    %v4041 = vshrl.u32 %v4040, 7
    %v4042 = vsub.s32 %v3945, %v4041
    %v4043 = vrot.slane %v3774, %v4042
    %v4044 = vsel %vm3950, %v4043, %v4039
    %v4045 = vlaneseq
    %v4046 = vshrl.u32 %v4045, 7
    %v4047 = vsub.s32 %v3952, %v4046
    %v4048 = vrot.slane %v3777, %v4047
    %v4049 = vsel %vm3957, %v4048, %v4044
    %v4050 = vlaneseq
    %v4051 = vshrl.u32 %v4050, 7
    %v4052 = vsub.s32 %v3959, %v4051
    %v4053 = vrot.slane %v3780, %v4052
    %v4054 = vsel %vm3964, %v4053, %v4049
    %v4055 = vlaneseq
    %v4056 = vshrl.u32 %v4055, 7
    %v4057 = vsub.s32 %v3966, %v4056
    %v4058 = vrot.slane %v3783, %v4057
    %v4059 = vsel %vm3971, %v4058, %v4054
    %v4060 = vlaneseq
    %v4061 = vshrl.u32 %v4060, 7
    %v4062 = vsub.s32 %v3973, %v4061
    %v4063 = vrot.slane %v3786, %v4062
    %v4064 = vsel %vm3978, %v4063, %v4059
    %v4065 = vlaneseq
    %v4066 = vshrl.u32 %v4065, 7
    %v4067 = vsub.s32 %v3980, %v4066
    %v4068 = vrot.slane %v3789, %v4067
    %v4069 = vsel %vm3985, %v4068, %v4064
    %v4070 = vlaneseq
    %v4071 = vshrl.u32 %v4070, 7
    %v4072 = vsub.s32 %v3987, %v4071
    %v4073 = vrot.slane %v3792, %v4072
    %v4074 = vsel %vm3992, %v4073, %v4069
    %v4075 = vlaneseq
    %v4076 = vshrl.u32 %v4075, 7
    %v4077 = vsub.s32 %v3994, %v4076
    %v4078 = vrot.slane %v3795, %v4077
    %v4079 = vsel %vm3999, %v4078, %v4074
    %v4080 = vlaneseq
    %v4081 = vshrl.u32 %v4080, 7
    %v4082 = vsub.s32 %v53, %v4081
    %v4083 = vrot.slane %v3798, %v4082
    %v4084 = vlaneseq
    %v4085 = vshrl.u32 %v4084, 7
    %v4086 = vsub.s32 %v3896, %v4085
    %v4087 = vrot.slane %v3801, %v4086
    %v4088 = vsel %vm3901, %v4087, %v4083
    %v4089 = vlaneseq
    %v4090 = vshrl.u32 %v4089, 7
    %v4091 = vsub.s32 %v3903, %v4090
    %v4092 = vrot.slane %v3804, %v4091
    %v4093 = vsel %vm3908, %v4092, %v4088
    %v4094 = vlaneseq
    %v4095 = vshrl.u32 %v4094, 7
    %v4096 = vsub.s32 %v3910, %v4095
    %v4097 = vrot.slane %v3807, %v4096
    %v4098 = vsel %vm3915, %v4097, %v4093
    %v4099 = vlaneseq
    %v4100 = vshrl.u32 %v4099, 7
    %v4101 = vsub.s32 %v3917, %v4100
    %v4102 = vrot.slane %v3810, %v4101
    %v4103 = vsel %vm3922, %v4102, %v4098
    %v4104 = vlaneseq
    %v4105 = vshrl.u32 %v4104, 7
    %v4106 = vsub.s32 %v3924, %v4105
    %v4107 = vrot.slane %v3813, %v4106
    %v4108 = vsel %vm3929, %v4107, %v4103
    %v4109 = vlaneseq
    %v4110 = vshrl.u32 %v4109, 7
    %v4111 = vsub.s32 %v3931, %v4110
    %v4112 = vrot.slane %v3816, %v4111
    %v4113 = vsel %vm3936, %v4112, %v4108
    %v4114 = vlaneseq
    %v4115 = vshrl.u32 %v4114, 7
    %v4116 = vsub.s32 %v3938, %v4115
    %v4117 = vrot.slane %v3819, %v4116
    %v4118 = vsel %vm3943, %v4117, %v4113
    %v4119 = vlaneseq
    %v4120 = vshrl.u32 %v4119, 7
    %v4121 = vsub.s32 %v3945, %v4120
    %v4122 = vrot.slane %v3822, %v4121
    %v4123 = vsel %vm3950, %v4122, %v4118
    %v4124 = vlaneseq
    %v4125 = vshrl.u32 %v4124, 7
    %v4126 = vsub.s32 %v3952, %v4125
    %v4127 = vrot.slane %v3825, %v4126
    %v4128 = vsel %vm3957, %v4127, %v4123
    %v4129 = vlaneseq
    %v4130 = vshrl.u32 %v4129, 7
    %v4131 = vsub.s32 %v3959, %v4130
    %v4132 = vrot.slane %v3828, %v4131
    %v4133 = vsel %vm3964, %v4132, %v4128
    %v4134 = vlaneseq
    %v4135 = vshrl.u32 %v4134, 7
    %v4136 = vsub.s32 %v3966, %v4135
    %v4137 = vrot.slane %v3831, %v4136
    %v4138 = vsel %vm3971, %v4137, %v4133
    %v4139 = vlaneseq
    %v4140 = vshrl.u32 %v4139, 7
    %v4141 = vsub.s32 %v3973, %v4140
    %v4142 = vrot.slane %v3834, %v4141
    %v4143 = vsel %vm3978, %v4142, %v4138
    %v4144 = vlaneseq
    %v4145 = vshrl.u32 %v4144, 7
    %v4146 = vsub.s32 %v3980, %v4145
    %v4147 = vrot.slane %v3837, %v4146
    %v4148 = vsel %vm3985, %v4147, %v4143
    %v4149 = vlaneseq
    %v4150 = vshrl.u32 %v4149, 7
    %v4151 = vsub.s32 %v3987, %v4150
    %v4152 = vrot.slane %v3840, %v4151
    %v4153 = vsel %vm3992, %v4152, %v4148
    %v4154 = vlaneseq
    %v4155 = vshrl.u32 %v4154, 7
    %v4156 = vsub.s32 %v3994, %v4155
    %v4157 = vrot.slane %v3843, %v4156
    %v4158 = vsel %vm3999, %v4157, %v4153
    %v4159 = vlaneseq
    %v4160 = vshrl.u32 %v4159, 7
    %v4161 = vsub.s32 %v53, %v4160
    %v4162 = vrot.slane %v3846, %v4161
    %v4163 = vlaneseq
    %v4164 = vshrl.u32 %v4163, 7
    %v4165 = vsub.s32 %v3896, %v4164
    %v4166 = vrot.slane %v3849, %v4165
    %v4167 = vsel %vm3901, %v4166, %v4162
    %v4168 = vlaneseq
    %v4169 = vshrl.u32 %v4168, 7
    %v4170 = vsub.s32 %v3903, %v4169
    %v4171 = vrot.slane %v3852, %v4170
    %v4172 = vsel %vm3908, %v4171, %v4167
    %v4173 = vlaneseq
    %v4174 = vshrl.u32 %v4173, 7
    %v4175 = vsub.s32 %v3910, %v4174
    %v4176 = vrot.slane %v3855, %v4175
    %v4177 = vsel %vm3915, %v4176, %v4172
    %v4178 = vlaneseq
    %v4179 = vshrl.u32 %v4178, 7
    %v4180 = vsub.s32 %v3917, %v4179
    %v4181 = vrot.slane %v3858, %v4180
    %v4182 = vsel %vm3922, %v4181, %v4177
    %v4183 = vlaneseq
    %v4184 = vshrl.u32 %v4183, 7
    %v4185 = vsub.s32 %v3924, %v4184
    %v4186 = vrot.slane %v3861, %v4185
    %v4187 = vsel %vm3929, %v4186, %v4182
    %v4188 = vlaneseq
    %v4189 = vshrl.u32 %v4188, 7
    %v4190 = vsub.s32 %v3931, %v4189
    %v4191 = vrot.slane %v3864, %v4190
    %v4192 = vsel %vm3936, %v4191, %v4187
    %v4193 = vlaneseq
    %v4194 = vshrl.u32 %v4193, 7
    %v4195 = vsub.s32 %v3938, %v4194
    %v4196 = vrot.slane %v3867, %v4195
    %v4197 = vsel %vm3943, %v4196, %v4192
    %v4198 = vlaneseq
    %v4199 = vshrl.u32 %v4198, 7
    %v4200 = vsub.s32 %v3945, %v4199
    %v4201 = vrot.slane %v3870, %v4200
    %v4202 = vsel %vm3950, %v4201, %v4197
    %v4203 = vlaneseq
    %v4204 = vshrl.u32 %v4203, 7
    %v4205 = vsub.s32 %v3952, %v4204
    %v4206 = vrot.slane %v3873, %v4205
    %v4207 = vsel %vm3957, %v4206, %v4202
    %v4208 = vlaneseq
    %v4209 = vshrl.u32 %v4208, 7
    %v4210 = vsub.s32 %v3959, %v4209
    %v4211 = vrot.slane %v3876, %v4210
    %v4212 = vsel %vm3964, %v4211, %v4207
    %v4213 = vlaneseq
    %v4214 = vshrl.u32 %v4213, 7
    %v4215 = vsub.s32 %v3966, %v4214
    %v4216 = vrot.slane %v3879, %v4215
    %v4217 = vsel %vm3971, %v4216, %v4212
    %v4218 = vlaneseq
    %v4219 = vshrl.u32 %v4218, 7
    %v4220 = vsub.s32 %v3973, %v4219
    %v4221 = vrot.slane %v3882, %v4220
    %v4222 = vsel %vm3978, %v4221, %v4217
    %v4223 = vlaneseq
    %v4224 = vshrl.u32 %v4223, 7
    %v4225 = vsub.s32 %v3980, %v4224
    %v4226 = vrot.slane %v3885, %v4225
    %v4227 = vsel %vm3985, %v4226, %v4222
    %v4228 = vlaneseq
    %v4229 = vshrl.u32 %v4228, 7
    %v4230 = vsub.s32 %v3987, %v4229
    %v4231 = vrot.slane %v3888, %v4230
    %v4232 = vsel %vm3992, %v4231, %v4227
    %v4233 = vlaneseq
    %v4234 = vshrl.u32 %v4233, 7
    %v4235 = vsub.s32 %v3994, %v4234
    %v4236 = vrot.slane %v3891, %v4235
    %v4237 = vsel %vm3999, %v4236, %v4232
    %v4238 = vsel %vm138, %v4158, %v4000
    %v4239 = vsel %vm138, %v4237, %v4079
    %v4240 = vcombine.low %v4238, %v4239
    %v4242 = vunpack.c.l.s4 1983009808
    %v4243 = vunpack.c.0.s8 %v4242
    %v4244 = vlaneseq
    %v4245 = vshrl.u32 %v4244, 7
    %v4246 = vsub.s32 %v4243, %v4245
    %v4247 = vrot.slane %v4240, %v4246
    %4249 = vst [vmem:[#allocation9 + $0x2] sm:$0xf] %v4247
    // Predicated region
    $region26: #{prompt_routing_forward.1} parent=1 // pred_check
      _
    $region27: #{prompt_routing_forward.1} parent=1 // pred_check_branch
      %4251 = sbr.rel (0) target = $region29
    $region28: #{prompt_routing_forward.1} parent=1 // pred_region
      %s4253 = ssub.s32 96, 96
      %4254 = vsyncadd [#allocation4], %s4253
      %s4256 = sshll.u32 [#allocation9], 4
      %s4257 = int_to_ptr.vmem [resolvable:$true] %s4256
      %4259 = dma.vmem_to_hbm [thread:$0]  %s4257, 96, %s3, [#allocation4]
    $region29: #{prompt_routing_forward.1} parent=1 // pred_fallthru
      _
    // Predicated region
    $region30: #{prompt_routing_forward.1} parent=1 // pred_check
      _
    $region31: #{prompt_routing_forward.1} parent=1 // pred_check_branch
      %4261 = sbr.rel (0) target = $region33
    $region32: #{prompt_routing_forward.1} parent=1 // pred_region
      %4262 = dma.done [#allocation4], 96
    $region33: #{prompt_routing_forward.1} parent=1 // pred_fallthru
      _
    %4263 = vsyncpa [#allocation3], 1
    %4264 = vsyncpa [#allocation8], 1
    %4265 = vsyncpa [#allocation4], 1
    %4266 = vsyncpa [#allocation5], 1

</llo_original>
